<compile_context>
chip_gen: v6e
topology: v6e:2x2x1
jax: 0.10.0
libtpu: 0.0.40
codegen_flags: <defaults>
</compile_context>

<pallas_src>
import math
import functools

import jax
import jax.numpy as jnp
from jax.experimental import pallas as pl
from jax.experimental.pallas import tpu as pltpu


def _layer_norm(x, gamma, beta, eps=1e-5):
    mu = jnp.mean(x, axis=-1, keepdims=True)
    var = jnp.mean((x - mu) ** 2, axis=-1, keepdims=True)
    return (x - mu) * jax.lax.rsqrt(var + eps) * gamma + beta


def _fused_cross_attention_kernel(
    rq_ref, keys_ref, mask_ref,
    wq_ref, bq_ref, wkv_ref, bkv_ref, wo_ref, bo_ref,
    g1_ref, be1_ref,
    w1_ref, b1_ref, w2_ref, b2_ref,
    g2_ref, be2_ref,
    o_ref,
    *, num_heads, num_layers, keys_per_layer,
):
    x = rq_ref[...]                                   # (R, C) shared initial queries
    # additive padding bias, computed once per grid step (robust to all-masked rows)
    bias = mask_ref[...] * jnp.float32(-1e30)         # (1, 1, T)

    R, C = x.shape
    H = num_heads
    D = C // H
    T = keys_per_layer
    L = num_layers

    # load weights once; they stay live across the (static) layer loop
    wq, bq = wq_ref[...], bq_ref[...]                 # attention scale already folded in
    wkv, bkv = wkv_ref[...], bkv_ref[...]             # [wk | wv], (C, 2C)
    wo, bo = wo_ref[...], bo_ref[...]
    g1, be1 = g1_ref[...], be1_ref[...]
    w1, b1 = w1_ref[...], b1_ref[...]
    w2, b2 = w2_ref[...], b2_ref[...]
    g2, be2 = g2_ref[...], be2_ref[...]

    # Shared weights across layers => project K/V for ALL layers with one matmul.
    keys_flat = keys_ref[0]                           # (L*T, C)
    kv_all = jnp.dot(keys_flat, wkv,
                     preferred_element_type=jnp.float32) + bkv          # (L*T, 2C)

    for l in range(L):                                # static unroll; x never leaves VMEM
        kv = kv_all[l * T:(l + 1) * T, :]             # static, sublane-aligned slice (T, 2C)
        k = kv[:, :C]
        v = kv[:, C:]

        # ---- query projection (scale pre-folded) --------------------------------
        q = jnp.dot(x, wq, preferred_element_type=jnp.float32) + bq      # (R, C)

        # ---- multi-head attention, batched over heads (no per-head loop) --------
        q3 = q.reshape(R, H, D)
        k3 = k.reshape(T, H, D)
        v3 = v.reshape(T, H, D)

        s = jnp.einsum("rhd,thd->hrt", q3, k3,
                       preferred_element_type=jnp.float32)               # (H, R, T)
        s = s + bias                                                      # additive mask
        s = s - jnp.max(s, axis=-1, keepdims=True)
        p = jnp.exp(s)
        p = p * pl.reciprocal(jnp.sum(p, axis=-1, keepdims=True), approx=True)
        ctx = jnp.einsum("hrt,thd->rhd", p, v3,
                         preferred_element_type=jnp.float32)              # (R, H, D)
        attn = jnp.dot(ctx.reshape(R, C), wo,
                       preferred_element_type=jnp.float32) + bo           # out proj

        # ---- post-attention layer norm (module has NO residual add here) --------
        y = _layer_norm(attn, g1, be1)

        # ---- feed-forward block with residual, then final layer norm ------------
        residual = y
        h1 = jnp.maximum(
            jnp.dot(y, w1, preferred_element_type=jnp.float32) + b1, 0.0)
        h2 = jnp.dot(h1, w2, preferred_element_type=jnp.float32) + b2
        x = _layer_norm(h2 + residual, g2, be2)

    o_ref[0] = x.astype(o_ref.dtype)


def prepare_params(raw, num_heads):
    """One-time parameter transform: fold attention scale into wq/bq, fuse K|V."""
    C = raw["wq"].shape[0]
    scale = 1.0 / math.sqrt(C // num_heads)
    f32 = lambda a: jnp.asarray(a, jnp.float32)
    return {
        "rq": f32(raw["relation_query"][:, 0, :]),                  # (R, C)
        "wq": f32(raw["wq"]) * scale, "bq": f32(raw["bq"]) * scale,
        "wkv": jnp.concatenate([f32(raw["wk"]), f32(raw["wv"])], axis=1),
        "bkv": jnp.concatenate([f32(raw["bk"]), f32(raw["bv"])], axis=1),
        "wo": f32(raw["wo"]), "bo": f32(raw["bo"]),
        "ln1_g": f32(raw["ln1_g"]), "ln1_b": f32(raw["ln1_b"]),
        "w1": f32(raw["w1"]), "b1": f32(raw["b1"]),
        "w2": f32(raw["w2"]), "b2": f32(raw["b2"]),
        "ln2_g": f32(raw["ln2_g"]), "ln2_b": f32(raw["ln2_b"]),
    }


def cross_attention_forward(keys, key_padding_mask, fused_params, num_heads):
    """keys: list of (T, B, C); key_padding_mask: (B, T) bool (True = pad).
    Returns (R, B, C), matching the PyTorch module's output convention."""
    T, B, C = keys[0].shape
    L = len(keys)
    p = fused_params
    R = p["rq"].shape[0]
    F = p["w1"].shape[1]

    # single stacked copy of all encoder states, batch-major & layer-flattened: (B, L*T, C)
    keys_b = jnp.transpose(jnp.stack(keys, axis=0), (2, 0, 1, 3))        # (B, L, T, C)
    keys_b = keys_b.reshape(B, L * T, C).astype(jnp.float32)
    mask_f = key_padding_mask.astype(jnp.float32)[:, None, :]            # (B, 1, T)

    def full(shape):
        return pl.BlockSpec(shape, lambda b, _s=shape: (0,) * len(_s))

    in_specs = [
        full((R, C)),                                           # relation query (shared)
        pl.BlockSpec((1, L * T, C), lambda b: (b, 0, 0)),       # all layers' keys, batch b
        pl.BlockSpec((1, 1, T), lambda b: (b, 0, 0)),           # padding mask, batch b
        full((C, C)), full((1, C)),                             # wq (scaled), bq (scaled)
        full((C, 2 * C)), full((1, 2 * C)),                     # wkv, bkv
        full((C, C)), full((1, C)),                             # wo, bo
        full((1, C)), full((1, C)),                             # ln1 gamma, beta
        full((C, F)), full((1, F)),                             # fc1
        full((F, C)), full((1, C)),                             # fc2
        full((1, C)), full((1, C)),                             # ln2 gamma, beta
    ]

    kernel = functools.partial(
        _fused_cross_attention_kernel,
        num_heads=num_heads, num_layers=L, keys_per_layer=T)

    out = pl.pallas_call(
        kernel,
        out_shape=jax.ShapeDtypeStruct((B, R, C), jnp.float32),
        grid=(B,),
        in_specs=in_specs,
        out_specs=pl.BlockSpec((1, R, C), lambda b: (b, 0, 0)),
        compiler_params=pltpu.CompilerParams(dimension_semantics=("parallel",)),
    )(
        p["rq"], keys_b, mask_f,
        p["wq"], p["bq"], p["wkv"], p["bkv"], p["wo"], p["bo"],
        p["ln1_g"], p["ln1_b"], p["w1"], p["b1"], p["w2"], p["b2"],
        p["ln2_g"], p["ln2_b"],
    )
    return jnp.transpose(out, (1, 0, 2))                        # (R, B, C)


def _reference_forward(keys, key_padding_mask, raw, num_heads):
    """Pure-JAX reference of the module (eval mode), for correctness checking."""
    T, B, C = keys[0].shape
    H = num_heads
    D = C // H
    scale = 1.0 / math.sqrt(D)
    x = jnp.tile(raw["relation_query"], (1, B, 1)).astype(jnp.float32)    # (R, B, C)
    R = x.shape[0]
    bias = key_padding_mask.astype(jnp.float32) * -1e30                   # (B, T)
    for key in keys:
        q = (jnp.einsum("rbc,cd->rbd", x, raw["wq"]) + raw["bq"]) * scale
        k = jnp.einsum("tbc,cd->tbd", key, raw["wk"]) + raw["bk"]
        v = jnp.einsum("tbc,cd->tbd", key, raw["wv"]) + raw["bv"]
        qh = q.reshape(R, B, H, D)
        kh = k.reshape(T, B, H, D)
        vh = v.reshape(T, B, H, D)
        s = jnp.einsum("rbhd,tbhd->bhrt", qh, kh) + bias[:, None, None, :]
        p = jax.nn.softmax(s, axis=-1)
        ctx = jnp.einsum("bhrt,tbhd->rbhd", p, vh).reshape(R, B, C)
        attn = jnp.einsum("rbc,cd->rbd", ctx, raw["wo"]) + raw["bo"]
        y = _layer_norm(attn, raw["ln1_g"], raw["ln1_b"])
        residual = y
        h1 = jax.nn.relu(jnp.einsum("rbc,cf->rbf", y, raw["w1"]) + raw["b1"])
        h2 = jnp.einsum("rbf,fc->rbc", h1, raw["w2"]) + raw["b2"]
        x = _layer_norm(h2 + residual, raw["ln2_g"], raw["ln2_b"])
    return x


def init_params(rng, relation_num, embed_dim, ffn_dim):
    keys = jax.random.split(rng, 16)
    C, F, R = embed_dim, ffn_dim, relation_num
    u = lambda k, s: jax.random.uniform(k, s, jnp.float32)
    n = lambda k, s: 0.02 * jax.random.normal(k, s, jnp.float32)
    return {
        "relation_query": u(keys[0], (R, 1, C)),     # nn.init.uniform_
        # Blank_token / T / grl exist in __init__ but are unused in forward.
        "wq": n(keys[1], (C, C)), "bq": n(keys[2], (1, C)),
        "wk": n(keys[3], (C, C)), "bk": n(keys[4], (1, C)),
        "wv": n(keys[5], (C, C)), "bv": n(keys[6], (1, C)),
        "wo": n(keys[7], (C, C)), "bo": n(keys[8], (1, C)),
        "ln1_g": jnp.ones((1, C), jnp.float32), "ln1_b": jnp.zeros((1, C), jnp.float32),
        "w1": n(keys[9], (C, F)), "b1": n(keys[10], (1, F)),
        "w2": n(keys[11], (F, C)), "b2": n(keys[12], (1, C)),
        "ln2_g": jnp.ones((1, C), jnp.float32), "ln2_b": jnp.zeros((1, C), jnp.float32),
    }


if __name__ == "__main__":
    # small config: encoder_embed_dim=32, encoder_attention_heads=4, relation_num=5
    B, T, C, H, R, FFN = 2, 8, 32, 4, 5, 64

    root = jax.random.PRNGKey(0)
    k_params, k_in0, k_in1 = jax.random.split(root, 3)

    raw_params = init_params(k_params, relation_num=R, embed_dim=C, ffn_dim=FFN)
    fused_params = prepare_params(raw_params, num_heads=H)

    # keys: list of encoder states, each (T, B, C)  (fairseq time-major)
    keys = [
        jax.random.normal(k_in0, (T, B, C), jnp.float32),
        jax.random.normal(k_in1, (T, B, C), jnp.float32),
    ]
    # key_padding_mask: (B, T) bool, True = padded position
    key_padding_mask = jnp.zeros((B, T), jnp.bool_).at[1, -2:].set(True)

    out = cross_attention_forward(keys, key_padding_mask, fused_params, num_heads=H)
    out = jax.block_until_ready(out)

    ref = _reference_forward(keys, key_padding_mask, raw_params, num_heads=H)
    max_err = float(jnp.max(jnp.abs(out - ref)))

    assert out.shape == (R, B, C), out.shape
    assert bool(jnp.all(jnp.isfinite(out)))
    assert max_err < 2e-2, f"max abs err vs reference: {max_err}"
    print("KERNEL_OK")
</pallas_src>

<mosaic_0001>
module attributes {stable_mosaic.version = 11 : i64} {
  func.func @_fused_cross_attention_kernel(%arg0: i32, %arg1: memref<5x32xf32, #tpu.memory_space<vmem>>, %arg2: memref<1x16x32xf32, #tpu.memory_space<vmem>>, %arg3: memref<1x1x8xf32, #tpu.memory_space<vmem>>, %arg4: memref<32x32xf32, #tpu.memory_space<vmem>>, %arg5: memref<1x32xf32, #tpu.memory_space<vmem>>, %arg6: memref<32x64xf32, #tpu.memory_space<vmem>>, %arg7: memref<1x64xf32, #tpu.memory_space<vmem>>, %arg8: memref<32x32xf32, #tpu.memory_space<vmem>>, %arg9: memref<1x32xf32, #tpu.memory_space<vmem>>, %arg10: memref<1x32xf32, #tpu.memory_space<vmem>>, %arg11: memref<1x32xf32, #tpu.memory_space<vmem>>, %arg12: memref<32x64xf32, #tpu.memory_space<vmem>>, %arg13: memref<1x64xf32, #tpu.memory_space<vmem>>, %arg14: memref<64x32xf32, #tpu.memory_space<vmem>>, %arg15: memref<1x32xf32, #tpu.memory_space<vmem>>, %arg16: memref<1x32xf32, #tpu.memory_space<vmem>>, %arg17: memref<1x32xf32, #tpu.memory_space<vmem>>, %arg18: memref<1x5x32xf32, #tpu.memory_space<vmem>>) attributes {dimension_semantics = [#tpu.dimension_semantics<parallel>], iteration_bounds = array<i64: 2>, scalar_prefetch = 0 : i64, scratch_operands = 0 : i64, tpu.core_type = #tpu.core_type<tc>, window_params = [{pipeline_mode = #tpu.pipeline_mode<synchronous>, transform_indices = @transform_0, window_bounds = array<i64: 5, 32>}, {transform_indices = @transform_1, window_bounds = array<i64: 1, 16, 32>}, {transform_indices = @transform_2, window_bounds = array<i64: 1, 1, 8>}, {pipeline_mode = #tpu.pipeline_mode<synchronous>, transform_indices = @transform_3, window_bounds = array<i64: 32, 32>}, {pipeline_mode = #tpu.pipeline_mode<synchronous>, transform_indices = @transform_4, window_bounds = array<i64: 1, 32>}, {pipeline_mode = #tpu.pipeline_mode<synchronous>, transform_indices = @transform_5, window_bounds = array<i64: 32, 64>}, {pipeline_mode = #tpu.pipeline_mode<synchronous>, transform_indices = @transform_6, window_bounds = array<i64: 1, 64>}, {pipeline_mode = #tpu.pipeline_mode<synchronous>, transform_indices = @transform_7, window_bounds = array<i64: 32, 32>}, {pipeline_mode = #tpu.pipeline_mode<synchronous>, transform_indices = @transform_8, window_bounds = array<i64: 1, 32>}, {pipeline_mode = #tpu.pipeline_mode<synchronous>, transform_indices = @transform_9, window_bounds = array<i64: 1, 32>}, {pipeline_mode = #tpu.pipeline_mode<synchronous>, transform_indices = @transform_10, window_bounds = array<i64: 1, 32>}, {pipeline_mode = #tpu.pipeline_mode<synchronous>, transform_indices = @transform_11, window_bounds = array<i64: 32, 64>}, {pipeline_mode = #tpu.pipeline_mode<synchronous>, transform_indices = @transform_12, window_bounds = array<i64: 1, 64>}, {pipeline_mode = #tpu.pipeline_mode<synchronous>, transform_indices = @transform_13, window_bounds = array<i64: 64, 32>}, {pipeline_mode = #tpu.pipeline_mode<synchronous>, transform_indices = @transform_14, window_bounds = array<i64: 1, 32>}, {pipeline_mode = #tpu.pipeline_mode<synchronous>, transform_indices = @transform_15, window_bounds = array<i64: 1, 32>}, {pipeline_mode = #tpu.pipeline_mode<synchronous>, transform_indices = @transform_16, window_bounds = array<i64: 1, 32>}, {transform_indices = @transform_17, window_bounds = array<i64: 1, 5, 32>}]} {
    %c0 = arith.constant 0 : index
    %c0_0 = arith.constant 0 : index
    %0 = vector.load %arg1[%c0, %c0_0] : memref<5x32xf32, #tpu.memory_space<vmem>>, vector<5x32xf32>
    %c0_1 = arith.constant 0 : index
    %c0_2 = arith.constant 0 : index
    %c0_3 = arith.constant 0 : index
    %1 = vector.load %arg3[%c0_1, %c0_2, %c0_3] : memref<1x1x8xf32, #tpu.memory_space<vmem>>, vector<1x1x8xf32>
    %cst = arith.constant -1.000000e+30 : f32
    %2 = vector.broadcast %cst : f32 to vector<1x1x8xf32>
    %3 = arith.mulf %1, %2 : vector<1x1x8xf32>
    %c0_4 = arith.constant 0 : index
    %c0_5 = arith.constant 0 : index
    %4 = vector.load %arg4[%c0_4, %c0_5] : memref<32x32xf32, #tpu.memory_space<vmem>>, vector<32x32xf32>
    %c0_6 = arith.constant 0 : index
    %c0_7 = arith.constant 0 : index
    %5 = vector.load %arg5[%c0_6, %c0_7] : memref<1x32xf32, #tpu.memory_space<vmem>>, vector<1x32xf32>
    %c0_8 = arith.constant 0 : index
    %c0_9 = arith.constant 0 : index
    %6 = vector.load %arg6[%c0_8, %c0_9] : memref<32x64xf32, #tpu.memory_space<vmem>>, vector<32x64xf32>
    %c0_10 = arith.constant 0 : index
    %c0_11 = arith.constant 0 : index
    %7 = vector.load %arg7[%c0_10, %c0_11] : memref<1x64xf32, #tpu.memory_space<vmem>>, vector<1x64xf32>
    %c0_12 = arith.constant 0 : index
    %c0_13 = arith.constant 0 : index
    %8 = vector.load %arg8[%c0_12, %c0_13] : memref<32x32xf32, #tpu.memory_space<vmem>>, vector<32x32xf32>
    %c0_14 = arith.constant 0 : index
    %c0_15 = arith.constant 0 : index
    %9 = vector.load %arg9[%c0_14, %c0_15] : memref<1x32xf32, #tpu.memory_space<vmem>>, vector<1x32xf32>
    %c0_16 = arith.constant 0 : index
    %c0_17 = arith.constant 0 : index
    %10 = vector.load %arg10[%c0_16, %c0_17] : memref<1x32xf32, #tpu.memory_space<vmem>>, vector<1x32xf32>
    %c0_18 = arith.constant 0 : index
    %c0_19 = arith.constant 0 : index
    %11 = vector.load %arg11[%c0_18, %c0_19] : memref<1x32xf32, #tpu.memory_space<vmem>>, vector<1x32xf32>
    %c0_20 = arith.constant 0 : index
    %c0_21 = arith.constant 0 : index
    %12 = vector.load %arg12[%c0_20, %c0_21] : memref<32x64xf32, #tpu.memory_space<vmem>>, vector<32x64xf32>
    %c0_22 = arith.constant 0 : index
    %c0_23 = arith.constant 0 : index
    %13 = vector.load %arg13[%c0_22, %c0_23] : memref<1x64xf32, #tpu.memory_space<vmem>>, vector<1x64xf32>
    %c0_24 = arith.constant 0 : index
    %c0_25 = arith.constant 0 : index
    %14 = vector.load %arg14[%c0_24, %c0_25] : memref<64x32xf32, #tpu.memory_space<vmem>>, vector<64x32xf32>
    %c0_26 = arith.constant 0 : index
    %c0_27 = arith.constant 0 : index
    %15 = vector.load %arg15[%c0_26, %c0_27] : memref<1x32xf32, #tpu.memory_space<vmem>>, vector<1x32xf32>
    %c0_28 = arith.constant 0 : index
    %c0_29 = arith.constant 0 : index
    %16 = vector.load %arg16[%c0_28, %c0_29] : memref<1x32xf32, #tpu.memory_space<vmem>>, vector<1x32xf32>
    %c0_30 = arith.constant 0 : index
    %c0_31 = arith.constant 0 : index
    %17 = vector.load %arg17[%c0_30, %c0_31] : memref<1x32xf32, #tpu.memory_space<vmem>>, vector<1x32xf32>
    %c0_32 = arith.constant 0 : index
    %c0_33 = arith.constant 0 : index
    %c0_34 = arith.constant 0 : index
    %18 = vector.load %arg2[%c0_32, %c0_33, %c0_34] : memref<1x16x32xf32, #tpu.memory_space<vmem>>, vector<1x16x32xf32>
    %19 = vector.shape_cast %18 : vector<1x16x32xf32> to vector<16x32xf32>
    %cst_35 = arith.constant dense<0.000000e+00> : vector<16x64xf32>
    %20 = tpu.matmul %19, %6, %cst_35 {dimension_numbers = #tpu.dot_dimension_numbers<[1], [0], [0], [1], [0, 0, 1, 1], [], []>} : vector<16x32xf32>, vector<32x64xf32>, vector<16x64xf32> -> vector<16x64xf32>
    %21 = vector.broadcast %7 : vector<1x64xf32> to vector<16x64xf32>
    %22 = arith.addf %20, %21 : vector<16x64xf32>
    %23 = vector.extract_strided_slice %22 {offsets = [0, 0], sizes = [8, 64], strides = [1, 1]} : vector<16x64xf32> to vector<8x64xf32>
    %24 = vector.extract_strided_slice %23 {offsets = [0, 0], sizes = [8, 32], strides = [1, 1]} : vector<8x64xf32> to vector<8x32xf32>
    %25 = vector.extract_strided_slice %23 {offsets = [0, 32], sizes = [8, 32], strides = [1, 1]} : vector<8x64xf32> to vector<8x32xf32>
    %cst_36 = arith.constant dense<0.000000e+00> : vector<5x32xf32>
    %26 = tpu.matmul %0, %4, %cst_36 {dimension_numbers = #tpu.dot_dimension_numbers<[1], [0], [0], [1], [0, 0, 1, 1], [], []>} : vector<5x32xf32>, vector<32x32xf32>, vector<5x32xf32> -> vector<5x32xf32>
    %27 = vector.broadcast %5 : vector<1x32xf32> to vector<5x32xf32>
    %28 = arith.addf %26, %27 : vector<5x32xf32>
    %29 = vector.shape_cast %28 : vector<5x32xf32> to vector<5x4x8xf32>
    %30 = vector.shape_cast %24 : vector<8x32xf32> to vector<8x4x8xf32>
    %31 = vector.shape_cast %25 : vector<8x32xf32> to vector<8x4x8xf32>
    "tpu.trace_start"() <{level = 10 : i32, message = "rhd,thd->hrt"}> : () -> ()
    %cst_37 = arith.constant dense<0.000000e+00> : vector<4x5x8xf32>
    %32 = tpu.matmul %29, %30, %cst_37 {dimension_numbers = #tpu.dot_dimension_numbers<[2], [2], [0], [0], [0, 1, 0, 0, 1, 0], [1], [1]>} : vector<5x4x8xf32>, vector<8x4x8xf32>, vector<4x5x8xf32> -> vector<4x5x8xf32>
    "tpu.trace_stop"() : () -> ()
    %33 = vector.broadcast %3 : vector<1x1x8xf32> to vector<4x5x8xf32>
    %34 = arith.addf %32, %33 : vector<4x5x8xf32>
    %cst_38 = arith.constant dense<0xFF800000> : vector<4x5xf32>
    %35 = vector.multi_reduction <maximumf>, %34, %cst_38 [2] : vector<4x5x8xf32> to vector<4x5xf32>
    %36 = vector.shape_cast %35 : vector<4x5xf32> to vector<4x5x1xf32>
    %37 = vector.broadcast %36 : vector<4x5x1xf32> to vector<4x5x8xf32>
    %38 = arith.subf %34, %37 : vector<4x5x8xf32>
    %39 = math.exp %38 : vector<4x5x8xf32>
    %cst_39 = arith.constant dense<0.000000e+00> : vector<4x5xf32>
    %40 = vector.multi_reduction <add>, %39, %cst_39 [2] : vector<4x5x8xf32> to vector<4x5xf32>
    %41 = vector.shape_cast %40 : vector<4x5xf32> to vector<4x5x1xf32>
    %42 = tpu.reciprocal %41 {approx = true} : vector<4x5x1xf32> -> vector<4x5x1xf32>
    %43 = vector.broadcast %42 : vector<4x5x1xf32> to vector<4x5x8xf32>
    %44 = arith.mulf %39, %43 : vector<4x5x8xf32>
    "tpu.trace_start"() <{level = 10 : i32, message = "hrt,thd->rhd"}> : () -> ()
    %cst_40 = arith.constant dense<0.000000e+00> : vector<4x8x5xf32>
    %45 = tpu.matmul %31, %44, %cst_40 {dimension_numbers = #tpu.dot_dimension_numbers<[0], [2], [2], [1], [0, 1, 0, 2, 1, 1], [1], [0]>} : vector<8x4x8xf32>, vector<4x5x8xf32>, vector<4x8x5xf32> -> vector<4x8x5xf32>
    %46 = tpu.transpose %45, [2, 0, 1] : vector<4x8x5xf32> -> vector<5x4x8xf32>
    "tpu.trace_stop"() : () -> ()
    %47 = vector.shape_cast %46 : vector<5x4x8xf32> to vector<5x32xf32>
    %cst_41 = arith.constant dense<0.000000e+00> : vector<5x32xf32>
    %48 = tpu.matmul %47, %8, %cst_41 {dimension_numbers = #tpu.dot_dimension_numbers<[1], [0], [0], [1], [0, 0, 1, 1], [], []>} : vector<5x32xf32>, vector<32x32xf32>, vector<5x32xf32> -> vector<5x32xf32>
    %49 = vector.broadcast %9 : vector<1x32xf32> to vector<5x32xf32>
    %50 = arith.addf %48, %49 : vector<5x32xf32>
    %cst_42 = arith.constant dense<0.000000e+00> : vector<5xf32>
    %51 = vector.multi_reduction <add>, %50, %cst_42 [1] : vector<5x32xf32> to vector<5xf32>
    %52 = vector.shape_cast %51 : vector<5xf32> to vector<5x1xf32>
    %cst_43 = arith.constant 3.200000e+01 : f32
    %53 = vector.broadcast %cst_43 : f32 to vector<5x1xf32>
    %54 = arith.divf %52, %53 : vector<5x1xf32>
    %55 = vector.broadcast %54 : vector<5x1xf32> to vector<5x32xf32>
    %56 = arith.subf %50, %55 : vector<5x32xf32>
    %57 = arith.mulf %56, %56 : vector<5x32xf32>
    %cst_44 = arith.constant dense<0.000000e+00> : vector<5xf32>
    %58 = vector.multi_reduction <add>, %57, %cst_44 [1] : vector<5x32xf32> to vector<5xf32>
    %59 = vector.shape_cast %58 : vector<5xf32> to vector<5x1xf32>
    %cst_45 = arith.constant 3.200000e+01 : f32
    %60 = vector.broadcast %cst_45 : f32 to vector<5x1xf32>
    %61 = arith.divf %59, %60 : vector<5x1xf32>
    %62 = vector.broadcast %54 : vector<5x1xf32> to vector<5x32xf32>
    %63 = arith.subf %50, %62 : vector<5x32xf32>
    %cst_46 = arith.constant 9.99999974E-6 : f32
    %64 = vector.broadcast %cst_46 : f32 to vector<5x1xf32>
    %65 = arith.addf %61, %64 : vector<5x1xf32>
    %66 = math.rsqrt %65 : vector<5x1xf32>
    %67 = vector.broadcast %66 : vector<5x1xf32> to vector<5x32xf32>
    %68 = arith.mulf %63, %67 : vector<5x32xf32>
    %69 = vector.broadcast %10 : vector<1x32xf32> to vector<5x32xf32>
    %70 = arith.mulf %68, %69 : vector<5x32xf32>
    %71 = vector.broadcast %11 : vector<1x32xf32> to vector<5x32xf32>
    %72 = arith.addf %70, %71 : vector<5x32xf32>
    %cst_47 = arith.constant dense<0.000000e+00> : vector<5x64xf32>
    %73 = tpu.matmul %72, %12, %cst_47 {dimension_numbers = #tpu.dot_dimension_numbers<[1], [0], [0], [1], [0, 0, 1, 1], [], []>} : vector<5x32xf32>, vector<32x64xf32>, vector<5x64xf32> -> vector<5x64xf32>
    %74 = vector.broadcast %13 : vector<1x64xf32> to vector<5x64xf32>
    %75 = arith.addf %73, %74 : vector<5x64xf32>
    %cst_48 = arith.constant 0.000000e+00 : f32
    %76 = vector.broadcast %cst_48 : f32 to vector<5x64xf32>
    %77 = arith.maximumf %75, %76 : vector<5x64xf32>
    %cst_49 = arith.constant dense<0.000000e+00> : vector<5x32xf32>
    %78 = tpu.matmul %77, %14, %cst_49 {dimension_numbers = #tpu.dot_dimension_numbers<[1], [0], [0], [1], [0, 0, 1, 1], [], []>} : vector<5x64xf32>, vector<64x32xf32>, vector<5x32xf32> -> vector<5x32xf32>
    %79 = vector.broadcast %15 : vector<1x32xf32> to vector<5x32xf32>
    %80 = arith.addf %78, %79 : vector<5x32xf32>
    %81 = arith.addf %80, %72 : vector<5x32xf32>
    %cst_50 = arith.constant dense<0.000000e+00> : vector<5xf32>
    %82 = vector.multi_reduction <add>, %81, %cst_50 [1] : vector<5x32xf32> to vector<5xf32>
    %83 = vector.shape_cast %82 : vector<5xf32> to vector<5x1xf32>
    %cst_51 = arith.constant 3.200000e+01 : f32
    %84 = vector.broadcast %cst_51 : f32 to vector<5x1xf32>
    %85 = arith.divf %83, %84 : vector<5x1xf32>
    %86 = vector.broadcast %85 : vector<5x1xf32> to vector<5x32xf32>
    %87 = arith.subf %81, %86 : vector<5x32xf32>
    %88 = arith.mulf %87, %87 : vector<5x32xf32>
    %cst_52 = arith.constant dense<0.000000e+00> : vector<5xf32>
    %89 = vector.multi_reduction <add>, %88, %cst_52 [1] : vector<5x32xf32> to vector<5xf32>
    %90 = vector.shape_cast %89 : vector<5xf32> to vector<5x1xf32>
    %cst_53 = arith.constant 3.200000e+01 : f32
    %91 = vector.broadcast %cst_53 : f32 to vector<5x1xf32>
    %92 = arith.divf %90, %91 : vector<5x1xf32>
    %93 = vector.broadcast %85 : vector<5x1xf32> to vector<5x32xf32>
    %94 = arith.subf %81, %93 : vector<5x32xf32>
    %cst_54 = arith.constant 9.99999974E-6 : f32
    %95 = vector.broadcast %cst_54 : f32 to vector<5x1xf32>
    %96 = arith.addf %92, %95 : vector<5x1xf32>
    %97 = math.rsqrt %96 : vector<5x1xf32>
    %98 = vector.broadcast %97 : vector<5x1xf32> to vector<5x32xf32>
    %99 = arith.mulf %94, %98 : vector<5x32xf32>
    %100 = vector.broadcast %16 : vector<1x32xf32> to vector<5x32xf32>
    %101 = arith.mulf %99, %100 : vector<5x32xf32>
    %102 = vector.broadcast %17 : vector<1x32xf32> to vector<5x32xf32>
    %103 = arith.addf %101, %102 : vector<5x32xf32>
    %104 = vector.extract_strided_slice %22 {offsets = [8, 0], sizes = [8, 64], strides = [1, 1]} : vector<16x64xf32> to vector<8x64xf32>
    %105 = vector.extract_strided_slice %104 {offsets = [0, 0], sizes = [8, 32], strides = [1, 1]} : vector<8x64xf32> to vector<8x32xf32>
    %106 = vector.extract_strided_slice %104 {offsets = [0, 32], sizes = [8, 32], strides = [1, 1]} : vector<8x64xf32> to vector<8x32xf32>
    %cst_55 = arith.constant dense<0.000000e+00> : vector<5x32xf32>
    %107 = tpu.matmul %103, %4, %cst_55 {dimension_numbers = #tpu.dot_dimension_numbers<[1], [0], [0], [1], [0, 0, 1, 1], [], []>} : vector<5x32xf32>, vector<32x32xf32>, vector<5x32xf32> -> vector<5x32xf32>
    %108 = vector.broadcast %5 : vector<1x32xf32> to vector<5x32xf32>
    %109 = arith.addf %107, %108 : vector<5x32xf32>
    %110 = vector.shape_cast %109 : vector<5x32xf32> to vector<5x4x8xf32>
    %111 = vector.shape_cast %105 : vector<8x32xf32> to vector<8x4x8xf32>
    %112 = vector.shape_cast %106 : vector<8x32xf32> to vector<8x4x8xf32>
    "tpu.trace_start"() <{level = 10 : i32, message = "rhd,thd->hrt"}> : () -> ()
    %cst_56 = arith.constant dense<0.000000e+00> : vector<4x5x8xf32>
    %113 = tpu.matmul %110, %111, %cst_56 {dimension_numbers = #tpu.dot_dimension_numbers<[2], [2], [0], [0], [0, 1, 0, 0, 1, 0], [1], [1]>} : vector<5x4x8xf32>, vector<8x4x8xf32>, vector<4x5x8xf32> -> vector<4x5x8xf32>
    "tpu.trace_stop"() : () -> ()
    %114 = vector.broadcast %3 : vector<1x1x8xf32> to vector<4x5x8xf32>
    %115 = arith.addf %113, %114 : vector<4x5x8xf32>
    %cst_57 = arith.constant dense<0xFF800000> : vector<4x5xf32>
    %116 = vector.multi_reduction <maximumf>, %115, %cst_57 [2] : vector<4x5x8xf32> to vector<4x5xf32>
    %117 = vector.shape_cast %116 : vector<4x5xf32> to vector<4x5x1xf32>
    %118 = vector.broadcast %117 : vector<4x5x1xf32> to vector<4x5x8xf32>
    %119 = arith.subf %115, %118 : vector<4x5x8xf32>
    %120 = math.exp %119 : vector<4x5x8xf32>
    %cst_58 = arith.constant dense<0.000000e+00> : vector<4x5xf32>
    %121 = vector.multi_reduction <add>, %120, %cst_58 [2] : vector<4x5x8xf32> to vector<4x5xf32>
    %122 = vector.shape_cast %121 : vector<4x5xf32> to vector<4x5x1xf32>
    %123 = tpu.reciprocal %122 {approx = true} : vector<4x5x1xf32> -> vector<4x5x1xf32>
    %124 = vector.broadcast %123 : vector<4x5x1xf32> to vector<4x5x8xf32>
    %125 = arith.mulf %120, %124 : vector<4x5x8xf32>
    "tpu.trace_start"() <{level = 10 : i32, message = "hrt,thd->rhd"}> : () -> ()
    %cst_59 = arith.constant dense<0.000000e+00> : vector<4x8x5xf32>
    %126 = tpu.matmul %112, %125, %cst_59 {dimension_numbers = #tpu.dot_dimension_numbers<[0], [2], [2], [1], [0, 1, 0, 2, 1, 1], [1], [0]>} : vector<8x4x8xf32>, vector<4x5x8xf32>, vector<4x8x5xf32> -> vector<4x8x5xf32>
    %127 = tpu.transpose %126, [2, 0, 1] : vector<4x8x5xf32> -> vector<5x4x8xf32>
    "tpu.trace_stop"() : () -> ()
    %128 = vector.shape_cast %127 : vector<5x4x8xf32> to vector<5x32xf32>
    %cst_60 = arith.constant dense<0.000000e+00> : vector<5x32xf32>
    %129 = tpu.matmul %128, %8, %cst_60 {dimension_numbers = #tpu.dot_dimension_numbers<[1], [0], [0], [1], [0, 0, 1, 1], [], []>} : vector<5x32xf32>, vector<32x32xf32>, vector<5x32xf32> -> vector<5x32xf32>
    %130 = vector.broadcast %9 : vector<1x32xf32> to vector<5x32xf32>
    %131 = arith.addf %129, %130 : vector<5x32xf32>
    %cst_61 = arith.constant dense<0.000000e+00> : vector<5xf32>
    %132 = vector.multi_reduction <add>, %131, %cst_61 [1] : vector<5x32xf32> to vector<5xf32>
    %133 = vector.shape_cast %132 : vector<5xf32> to vector<5x1xf32>
    %cst_62 = arith.constant 3.200000e+01 : f32
    %134 = vector.broadcast %cst_62 : f32 to vector<5x1xf32>
    %135 = arith.divf %133, %134 : vector<5x1xf32>
    %136 = vector.broadcast %135 : vector<5x1xf32> to vector<5x32xf32>
    %137 = arith.subf %131, %136 : vector<5x32xf32>
    %138 = arith.mulf %137, %137 : vector<5x32xf32>
    %cst_63 = arith.constant dense<0.000000e+00> : vector<5xf32>
    %139 = vector.multi_reduction <add>, %138, %cst_63 [1] : vector<5x32xf32> to vector<5xf32>
    %140 = vector.shape_cast %139 : vector<5xf32> to vector<5x1xf32>
    %cst_64 = arith.constant 3.200000e+01 : f32
    %141 = vector.broadcast %cst_64 : f32 to vector<5x1xf32>
    %142 = arith.divf %140, %141 : vector<5x1xf32>
    %143 = vector.broadcast %135 : vector<5x1xf32> to vector<5x32xf32>
    %144 = arith.subf %131, %143 : vector<5x32xf32>
    %cst_65 = arith.constant 9.99999974E-6 : f32
    %145 = vector.broadcast %cst_65 : f32 to vector<5x1xf32>
    %146 = arith.addf %142, %145 : vector<5x1xf32>
    %147 = math.rsqrt %146 : vector<5x1xf32>
    %148 = vector.broadcast %147 : vector<5x1xf32> to vector<5x32xf32>
    %149 = arith.mulf %144, %148 : vector<5x32xf32>
    %150 = vector.broadcast %10 : vector<1x32xf32> to vector<5x32xf32>
    %151 = arith.mulf %149, %150 : vector<5x32xf32>
    %152 = vector.broadcast %11 : vector<1x32xf32> to vector<5x32xf32>
    %153 = arith.addf %151, %152 : vector<5x32xf32>
    %cst_66 = arith.constant dense<0.000000e+00> : vector<5x64xf32>
    %154 = tpu.matmul %153, %12, %cst_66 {dimension_numbers = #tpu.dot_dimension_numbers<[1], [0], [0], [1], [0, 0, 1, 1], [], []>} : vector<5x32xf32>, vector<32x64xf32>, vector<5x64xf32> -> vector<5x64xf32>
    %155 = vector.broadcast %13 : vector<1x64xf32> to vector<5x64xf32>
    %156 = arith.addf %154, %155 : vector<5x64xf32>
    %cst_67 = arith.constant 0.000000e+00 : f32
    %157 = vector.broadcast %cst_67 : f32 to vector<5x64xf32>
    %158 = arith.maximumf %156, %157 : vector<5x64xf32>
    %cst_68 = arith.constant dense<0.000000e+00> : vector<5x32xf32>
    %159 = tpu.matmul %158, %14, %cst_68 {dimension_numbers = #tpu.dot_dimension_numbers<[1], [0], [0], [1], [0, 0, 1, 1], [], []>} : vector<5x64xf32>, vector<64x32xf32>, vector<5x32xf32> -> vector<5x32xf32>
    %160 = vector.broadcast %15 : vector<1x32xf32> to vector<5x32xf32>
    %161 = arith.addf %159, %160 : vector<5x32xf32>
    %162 = arith.addf %161, %153 : vector<5x32xf32>
    %cst_69 = arith.constant dense<0.000000e+00> : vector<5xf32>
    %163 = vector.multi_reduction <add>, %162, %cst_69 [1] : vector<5x32xf32> to vector<5xf32>
    %164 = vector.shape_cast %163 : vector<5xf32> to vector<5x1xf32>
    %cst_70 = arith.constant 3.200000e+01 : f32
    %165 = vector.broadcast %cst_70 : f32 to vector<5x1xf32>
    %166 = arith.divf %164, %165 : vector<5x1xf32>
    %167 = vector.broadcast %166 : vector<5x1xf32> to vector<5x32xf32>
    %168 = arith.subf %162, %167 : vector<5x32xf32>
    %169 = arith.mulf %168, %168 : vector<5x32xf32>
    %cst_71 = arith.constant dense<0.000000e+00> : vector<5xf32>
    %170 = vector.multi_reduction <add>, %169, %cst_71 [1] : vector<5x32xf32> to vector<5xf32>
    %171 = vector.shape_cast %170 : vector<5xf32> to vector<5x1xf32>
    %cst_72 = arith.constant 3.200000e+01 : f32
    %172 = vector.broadcast %cst_72 : f32 to vector<5x1xf32>
    %173 = arith.divf %171, %172 : vector<5x1xf32>
    %174 = vector.broadcast %166 : vector<5x1xf32> to vector<5x32xf32>
    %175 = arith.subf %162, %174 : vector<5x32xf32>
    %cst_73 = arith.constant 9.99999974E-6 : f32
    %176 = vector.broadcast %cst_73 : f32 to vector<5x1xf32>
    %177 = arith.addf %173, %176 : vector<5x1xf32>
    %178 = math.rsqrt %177 : vector<5x1xf32>
    %179 = vector.broadcast %178 : vector<5x1xf32> to vector<5x32xf32>
    %180 = arith.mulf %175, %179 : vector<5x32xf32>
    %181 = vector.broadcast %16 : vector<1x32xf32> to vector<5x32xf32>
    %182 = arith.mulf %180, %181 : vector<5x32xf32>
    %183 = vector.broadcast %17 : vector<1x32xf32> to vector<5x32xf32>
    %184 = arith.addf %182, %183 : vector<5x32xf32>
    %c0_74 = arith.constant 0 : index
    %c0_75 = arith.constant 0 : index
    %c0_76 = arith.constant 0 : index
    %185 = vector.load %arg18[%c0_74, %c0_75, %c0_76] : memref<1x5x32xf32, #tpu.memory_space<vmem>>, vector<1x5x32xf32>
    %186 = vector.shape_cast %185 : vector<1x5x32xf32> to vector<5x32xf32>
    %187 = vector.shape_cast %184 : vector<5x32xf32> to vector<1x5x32xf32>
    tpu.vector_store %arg18[%c0_74, %c0_75, %c0_76], %187 {strides = array<i32>} : memref<1x5x32xf32, #tpu.memory_space<vmem>>, vector<1x5x32xf32>,
    return
  }
  func.func @transform_0(%arg0: i32) -> (i32, i32) {
    %c0_i32 = arith.constant 0 : i32
    %c0_i32_0 = arith.constant 0 : i32
    %c0_i32_1 = arith.constant 0 : i32
    return %c0_i32, %c0_i32_0 : i32, i32
  }
  func.func @transform_1(%arg0: i32) -> (i32, i32, i32) {
    %c0_i32 = arith.constant 0 : i32
    %c0_i32_0 = arith.constant 0 : i32
    %c0_i32_1 = arith.constant 0 : i32
    return %arg0, %c0_i32, %c0_i32_0 : i32, i32, i32
  }
  func.func @transform_2(%arg0: i32) -> (i32, i32, i32) {
    %c0_i32 = arith.constant 0 : i32
    %c0_i32_0 = arith.constant 0 : i32
    %c0_i32_1 = arith.constant 0 : i32
    return %arg0, %c0_i32, %c0_i32_0 : i32, i32, i32
  }
  func.func @transform_3(%arg0: i32) -> (i32, i32) {
    %c0_i32 = arith.constant 0 : i32
    %c0_i32_0 = arith.constant 0 : i32
    %c0_i32_1 = arith.constant 0 : i32
    return %c0_i32, %c0_i32_0 : i32, i32
  }
  func.func @transform_4(%arg0: i32) -> (i32, i32) {
    %c0_i32 = arith.constant 0 : i32
    %c0_i32_0 = arith.constant 0 : i32
    %c0_i32_1 = arith.constant 0 : i32
    return %c0_i32, %c0_i32_0 : i32, i32
  }
  func.func @transform_5(%arg0: i32) -> (i32, i32) {
    %c0_i32 = arith.constant 0 : i32
    %c0_i32_0 = arith.constant 0 : i32
    %c0_i32_1 = arith.constant 0 : i32
    return %c0_i32, %c0_i32_0 : i32, i32
  }
  func.func @transform_6(%arg0: i32) -> (i32, i32) {
    %c0_i32 = arith.constant 0 : i32
    %c0_i32_0 = arith.constant 0 : i32
    %c0_i32_1 = arith.constant 0 : i32
    return %c0_i32, %c0_i32_0 : i32, i32
  }
  func.func @transform_7(%arg0: i32) -> (i32, i32) {
    %c0_i32 = arith.constant 0 : i32
    %c0_i32_0 = arith.constant 0 : i32
    %c0_i32_1 = arith.constant 0 : i32
    return %c0_i32, %c0_i32_0 : i32, i32
  }
  func.func @transform_8(%arg0: i32) -> (i32, i32) {
    %c0_i32 = arith.constant 0 : i32
    %c0_i32_0 = arith.constant 0 : i32
    %c0_i32_1 = arith.constant 0 : i32
    return %c0_i32, %c0_i32_0 : i32, i32
  }
  func.func @transform_9(%arg0: i32) -> (i32, i32) {
    %c0_i32 = arith.constant 0 : i32
    %c0_i32_0 = arith.constant 0 : i32
    %c0_i32_1 = arith.constant 0 : i32
    return %c0_i32, %c0_i32_0 : i32, i32
  }
  func.func @transform_10(%arg0: i32) -> (i32, i32) {
    %c0_i32 = arith.constant 0 : i32
    %c0_i32_0 = arith.constant 0 : i32
    %c0_i32_1 = arith.constant 0 : i32
    return %c0_i32, %c0_i32_0 : i32, i32
  }
  func.func @transform_11(%arg0: i32) -> (i32, i32) {
    %c0_i32 = arith.constant 0 : i32
    %c0_i32_0 = arith.constant 0 : i32
    %c0_i32_1 = arith.constant 0 : i32
    return %c0_i32, %c0_i32_0 : i32, i32
  }
  func.func @transform_12(%arg0: i32) -> (i32, i32) {
    %c0_i32 = arith.constant 0 : i32
    %c0_i32_0 = arith.constant 0 : i32
    %c0_i32_1 = arith.constant 0 : i32
    return %c0_i32, %c0_i32_0 : i32, i32
  }
  func.func @transform_13(%arg0: i32) -> (i32, i32) {
    %c0_i32 = arith.constant 0 : i32
    %c0_i32_0 = arith.constant 0 : i32
    %c0_i32_1 = arith.constant 0 : i32
    return %c0_i32, %c0_i32_0 : i32, i32
  }
  func.func @transform_14(%arg0: i32) -> (i32, i32) {
    %c0_i32 = arith.constant 0 : i32
    %c0_i32_0 = arith.constant 0 : i32
    %c0_i32_1 = arith.constant 0 : i32
    return %c0_i32, %c0_i32_0 : i32, i32
  }
  func.func @transform_15(%arg0: i32) -> (i32, i32) {
    %c0_i32 = arith.constant 0 : i32
    %c0_i32_0 = arith.constant 0 : i32
    %c0_i32_1 = arith.constant 0 : i32
    return %c0_i32, %c0_i32_0 : i32, i32
  }
  func.func @transform_16(%arg0: i32) -> (i32, i32) {
    %c0_i32 = arith.constant 0 : i32
    %c0_i32_0 = arith.constant 0 : i32
    %c0_i32_1 = arith.constant 0 : i32
    return %c0_i32, %c0_i32_0 : i32, i32
  }
  func.func @transform_17(%arg0: i32) -> (i32, i32, i32) {
    %c0_i32 = arith.constant 0 : i32
    %c0_i32_0 = arith.constant 0 : i32
    %c0_i32_1 = arith.constant 0 : i32
    return %arg0, %c0_i32, %c0_i32_0 : i32, i32, i32
  }
}

</mosaic_0001>

<llo_original>
// kernel: tpu_custom_call.1
$region0: #{tpu_custom_call.1}
  #allocation0 [shape = 'u32[]', space=smem, size = 0x4, offset = 0x4, fixed_abs, tag = 'smem constant byte address 0x4 - core index']
  #allocation1 [shape = 'u32[144,128]{1,0:T(1,128)}', space=vmem, size = 0x12000, scoped, tag = 'internal scratch']
  %s0 = inlined_call_operand.hbm [shape: f32[5,32], index: 0, kind: input, shape index: {}]
  %s1 = inlined_call_operand.vmem [shape: f32[2,16,32], index: 1, kind: input, shape index: {}]
  %s2 = inlined_call_operand.vmem [shape: f32[2,1,8], index: 2, kind: input, shape index: {}]
  %s3 = inlined_call_operand.vmem [shape: f32[32,32], index: 3, kind: input, shape index: {}]
  %s4 = inlined_call_operand.vmem [shape: f32[1,32], index: 4, kind: input, shape index: {}]
  %s5 = inlined_call_operand.vmem [shape: f32[32,64], index: 5, kind: input, shape index: {}]
  %s6 = inlined_call_operand.vmem [shape: f32[1,64], index: 6, kind: input, shape index: {}]
  %s7 = inlined_call_operand.hbm [shape: f32[32,32], index: 7, kind: input, shape index: {}]
  %s8 = inlined_call_operand.vmem [shape: f32[1,32], index: 8, kind: input, shape index: {}]
  %s9 = inlined_call_operand.vmem [shape: f32[1,32], index: 9, kind: input, shape index: {}]
  %s10 = inlined_call_operand.vmem [shape: f32[1,32], index: 10, kind: input, shape index: {}]
  %s11 = inlined_call_operand.hbm [shape: f32[32,64], index: 11, kind: input, shape index: {}]
  %s12 = inlined_call_operand.vmem [shape: f32[1,64], index: 12, kind: input, shape index: {}]
  %s13 = inlined_call_operand.vmem [shape: f32[64,32], index: 13, kind: input, shape index: {}]
  %s14 = inlined_call_operand.vmem [shape: f32[1,32], index: 14, kind: input, shape index: {}]
  %s15 = inlined_call_operand.vmem [shape: f32[1,32], index: 15, kind: input, shape index: {}]
  %s16 = inlined_call_operand.vmem [shape: f32[1,32], index: 16, kind: input, shape index: {}]
  %s17 = inlined_call_operand.vmem [shape: f32[2,5,32], index: 17, kind: output, shape index: {}]
  %s18 = sld [smem:[#allocation0]]
  $region113: #{tpu_custom_call.1} parent=0
    _
  %s20 = ssub.s32 1, %s18
  %s21 = scalar_select 0, %s20, %s18
  $region1: #{tpu_custom_call.1} parent=0
    #allocation2 [shape = 'u8[4096]{0}', space=vmem, size = 0x1000, scoped, tag = 'input window, operand 0, single buffered']
    #allocation3 [shape = 's32[2]{0}', space=sflag, size = 0x8, scoped, tag = 'scoped memory for tpu_custom_call.1']
    #allocation4 [shape = 'u8[16384]{0}', space=vmem, size = 0x4000, scoped, tag = 'input window, operand 7, single buffered']
    #allocation5 [shape = 's32[1]{0}', space=sflag, size = 0x4, scoped, tag = 'scoped memory for tpu_custom_call.1']
    #allocation6 [shape = 'u8[16384]{0}', space=vmem, size = 0x4000, scoped, tag = 'input window, operand 11, single buffered']
    %22 = vsyncpa [#allocation3], 0
    %23 = vsyncpa [#allocation5], 0
    loop: start=0, step=1, limit=4
    $region2: #{tpu_custom_call.1} parent=1 // loop_pre_header
      _
    $region3: #{tpu_custom_call.1} parent=1 // loop_header
      %s25 = sphi 0, %s29
      %p26 = scmp.ge.s32.totalorder %s25, 4
      %s33 = sphi 0, %s33
      %s35 = sphi 0, %s33
      %s36 = sphi 0, %s35
      %s50 = sphi 0, %s36
      %s56 = sphi 0, %s58
      %s59 = sphi 0, %s56
      %s60 = sphi 0, %s59
      %s76 = sphi 0, %s60
      %s82 = sphi 0, %s84
      %s85 = sphi 0, %s82
      %s86 = sphi 0, %s85
      %s102 = sphi 0, %s86
      %s106 = sphi 0, %s106
      %s108 = sphi 0, %s106
      %s109 = sphi 0, %s108
      %s123 = sphi 0, %s109
      %s127 = sphi 0, %s127
      %s129 = sphi 0, %s127
      %s130 = sphi 0, %s129
      %s144 = sphi 0, %s130
      %s148 = sphi 0, %s148
      %s150 = sphi 0, %s148
      %s151 = sphi 0, %s150
      %s165 = sphi 0, %s151
      %s169 = sphi 0, %s169
      %s171 = sphi 0, %s169
      %s172 = sphi 0, %s171
      %s186 = sphi 0, %s172
      %s190 = sphi 0, %s190
      %s192 = sphi 0, %s190
      %s193 = sphi 0, %s192
      %s207 = sphi 0, %s193
      %s211 = sphi 0, %s211
      %s213 = sphi 0, %s211
      %s214 = sphi 0, %s213
      %s228 = sphi 0, %s214
      %s232 = sphi 0, %s232
      %s234 = sphi 0, %s232
      %s235 = sphi 0, %s234
      %s249 = sphi 0, %s235
      %s253 = sphi 0, %s253
      %s255 = sphi 0, %s253
      %s256 = sphi 0, %s255
      %s270 = sphi 0, %s256
      %s274 = sphi 0, %s274
      %s276 = sphi 0, %s274
      %s277 = sphi 0, %s276
      %s291 = sphi 0, %s277
      %s295 = sphi 0, %s295
      %s297 = sphi 0, %s295
      %s298 = sphi 0, %s297
      %s312 = sphi 0, %s298
      %s316 = sphi 0, %s316
      %s318 = sphi 0, %s316
      %s319 = sphi 0, %s318
      %s333 = sphi 0, %s319
      %s337 = sphi 0, %s337
      %s339 = sphi 0, %s337
      %s340 = sphi 0, %s339
      %s354 = sphi 0, %s340
      %s358 = sphi 0, %s358
      %s360 = sphi 0, %s358
      %s361 = sphi 0, %s360
      %s375 = sphi 0, %s361
      %s379 = sphi 0, %s379
      %s381 = sphi 0, %s379
      %s382 = sphi 0, %s381
      %s396 = sphi 0, %s382
      %s402 = sphi 0, %s404
      %s405 = sphi 0, %s402
      %s406 = sphi 0, %s405
      %s422 = sphi 0, %s406
    $region4: #{tpu_custom_call.1} parent=1 // loop_header_branch
      %28 = sbr.rel (%p26) target = $region8
    $region5: #{tpu_custom_call.1} parent=1 // loop_body
      %s30 = ssub.s32 %s25, 1
      %s31 = ssub.s32 %s25, 2
      %s32 = sadd.s32 %s25, 1
      %s34 = sadd.s32 %s33, 1
      %p37 = scmp.eq.s32.totalorder %s25, 1
      %p38 = scmp.ne.s32.totalorder %s33, %s35
      %p39 = scmp.eq.s32.totalorder %s25, 0
      %p40 = por %p38, %p39
      %p41 = scmp.ne.s32.totalorder %s33, %s35
      %p42 = scmp.eq.s32.totalorder %s30, 1
      %p43 = por %p41, %p42
      %p44 = scmp.ne.s32.totalorder %s35, %s36
      %p45 = scmp.eq.s32.totalorder %s30, 0
      %p46 = por %p44, %p45
      %p47 = scmp.ne.s32.totalorder %s35, %s36
      %p48 = scmp.eq.s32.totalorder %s31, 1
      %p49 = por %p47, %p48
      %p51 = scmp.ne.s32.totalorder %s36, %s50
      %p52 = scmp.eq.s32.totalorder %s31, 0
      %p53 = por %p51, %p52
      %s54 = ssub.s32 %s25, %s32
      %p55 = scmp.eq.s32.totalorder %s54, 0
      %s57 = sadd.s32 %s56, 1
      %s58 = scalar_select %p55, %s56, %s57
      %p61 = pneg %p55
      %p62 = scmp.eq.s32.totalorder %s25, 1
      %p63 = por %p61, %p62
      %p64 = scmp.ne.s32.totalorder %s56, %s59
      %p65 = scmp.eq.s32.totalorder %s25, 0
      %p66 = por %p64, %p65
      %p67 = scmp.ne.s32.totalorder %s56, %s59
      %p68 = scmp.eq.s32.totalorder %s30, 1
      %p69 = por %p67, %p68
      %p70 = scmp.ne.s32.totalorder %s59, %s60
      %p71 = scmp.eq.s32.totalorder %s30, 0
      %p72 = por %p70, %p71
      %p73 = scmp.ne.s32.totalorder %s59, %s60
      %p74 = scmp.eq.s32.totalorder %s31, 1
      %p75 = por %p73, %p74
      %p77 = scmp.ne.s32.totalorder %s60, %s76
      %p78 = scmp.eq.s32.totalorder %s31, 0
      %p79 = por %p77, %p78
      %s80 = ssub.s32 %s25, %s32
      %p81 = scmp.eq.s32.totalorder %s80, 0
      %s83 = sadd.s32 %s82, 1
      %s84 = scalar_select %p81, %s82, %s83
      %p87 = pneg %p81
      %p88 = scmp.eq.s32.totalorder %s25, 1
      %p89 = por %p87, %p88
      %p90 = scmp.ne.s32.totalorder %s82, %s85
      %p91 = scmp.eq.s32.totalorder %s25, 0
      %p92 = por %p90, %p91
      %p93 = scmp.ne.s32.totalorder %s82, %s85
      %p94 = scmp.eq.s32.totalorder %s30, 1
      %p95 = por %p93, %p94
      %p96 = scmp.ne.s32.totalorder %s85, %s86
      %p97 = scmp.eq.s32.totalorder %s30, 0
      %p98 = por %p96, %p97
      %p99 = scmp.ne.s32.totalorder %s85, %s86
      %p100 = scmp.eq.s32.totalorder %s31, 1
      %p101 = por %p99, %p100
      %p103 = scmp.ne.s32.totalorder %s86, %s102
      %p104 = scmp.eq.s32.totalorder %s31, 0
      %p105 = por %p103, %p104
      %s107 = sadd.s32 %s106, 1
      %p110 = scmp.eq.s32.totalorder %s25, 1
      %p111 = scmp.ne.s32.totalorder %s106, %s108
      %p112 = scmp.eq.s32.totalorder %s25, 0
      %p113 = por %p111, %p112
      %p114 = scmp.ne.s32.totalorder %s106, %s108
      %p115 = scmp.eq.s32.totalorder %s30, 1
      %p116 = por %p114, %p115
      %p117 = scmp.ne.s32.totalorder %s108, %s109
      %p118 = scmp.eq.s32.totalorder %s30, 0
      %p119 = por %p117, %p118
      %p120 = scmp.ne.s32.totalorder %s108, %s109
      %p121 = scmp.eq.s32.totalorder %s31, 1
      %p122 = por %p120, %p121
      %p124 = scmp.ne.s32.totalorder %s109, %s123
      %p125 = scmp.eq.s32.totalorder %s31, 0
      %p126 = por %p124, %p125
      %s128 = sadd.s32 %s127, 1
      %p131 = scmp.eq.s32.totalorder %s25, 1
      %p132 = scmp.ne.s32.totalorder %s127, %s129
      %p133 = scmp.eq.s32.totalorder %s25, 0
      %p134 = por %p132, %p133
      %p135 = scmp.ne.s32.totalorder %s127, %s129
      %p136 = scmp.eq.s32.totalorder %s30, 1
      %p137 = por %p135, %p136
      %p138 = scmp.ne.s32.totalorder %s129, %s130
      %p139 = scmp.eq.s32.totalorder %s30, 0
      %p140 = por %p138, %p139
      %p141 = scmp.ne.s32.totalorder %s129, %s130
      %p142 = scmp.eq.s32.totalorder %s31, 1
      %p143 = por %p141, %p142
      %p145 = scmp.ne.s32.totalorder %s130, %s144
      %p146 = scmp.eq.s32.totalorder %s31, 0
      %p147 = por %p145, %p146
      %s149 = sadd.s32 %s148, 1
      %p152 = scmp.eq.s32.totalorder %s25, 1
      %p153 = scmp.ne.s32.totalorder %s148, %s150
      %p154 = scmp.eq.s32.totalorder %s25, 0
      %p155 = por %p153, %p154
      %p156 = scmp.ne.s32.totalorder %s148, %s150
      %p157 = scmp.eq.s32.totalorder %s30, 1
      %p158 = por %p156, %p157
      %p159 = scmp.ne.s32.totalorder %s150, %s151
      %p160 = scmp.eq.s32.totalorder %s30, 0
      %p161 = por %p159, %p160
      %p162 = scmp.ne.s32.totalorder %s150, %s151
      %p163 = scmp.eq.s32.totalorder %s31, 1
      %p164 = por %p162, %p163
      %p166 = scmp.ne.s32.totalorder %s151, %s165
      %p167 = scmp.eq.s32.totalorder %s31, 0
      %p168 = por %p166, %p167
      %s170 = sadd.s32 %s169, 1
      %p173 = scmp.eq.s32.totalorder %s25, 1
      %p174 = scmp.ne.s32.totalorder %s169, %s171
      %p175 = scmp.eq.s32.totalorder %s25, 0
      %p176 = por %p174, %p175
      %p177 = scmp.ne.s32.totalorder %s169, %s171
      %p178 = scmp.eq.s32.totalorder %s30, 1
      %p179 = por %p177, %p178
      %p180 = scmp.ne.s32.totalorder %s171, %s172
      %p181 = scmp.eq.s32.totalorder %s30, 0
      %p182 = por %p180, %p181
      %p183 = scmp.ne.s32.totalorder %s171, %s172
      %p184 = scmp.eq.s32.totalorder %s31, 1
      %p185 = por %p183, %p184
      %p187 = scmp.ne.s32.totalorder %s172, %s186
      %p188 = scmp.eq.s32.totalorder %s31, 0
      %p189 = por %p187, %p188
      %s191 = sadd.s32 %s190, 1
      %p194 = scmp.eq.s32.totalorder %s25, 1
      %p195 = scmp.ne.s32.totalorder %s190, %s192
      %p196 = scmp.eq.s32.totalorder %s25, 0
      %p197 = por %p195, %p196
      %p198 = scmp.ne.s32.totalorder %s190, %s192
      %p199 = scmp.eq.s32.totalorder %s30, 1
      %p200 = por %p198, %p199
      %p201 = scmp.ne.s32.totalorder %s192, %s193
      %p202 = scmp.eq.s32.totalorder %s30, 0
      %p203 = por %p201, %p202
      %p204 = scmp.ne.s32.totalorder %s192, %s193
      %p205 = scmp.eq.s32.totalorder %s31, 1
      %p206 = por %p204, %p205
      %p208 = scmp.ne.s32.totalorder %s193, %s207
      %p209 = scmp.eq.s32.totalorder %s31, 0
      %p210 = por %p208, %p209
      %s212 = sadd.s32 %s211, 1
      %p215 = scmp.eq.s32.totalorder %s25, 1
      %p216 = scmp.ne.s32.totalorder %s211, %s213
      %p217 = scmp.eq.s32.totalorder %s25, 0
      %p218 = por %p216, %p217
      %p219 = scmp.ne.s32.totalorder %s211, %s213
      %p220 = scmp.eq.s32.totalorder %s30, 1
      %p221 = por %p219, %p220
      %p222 = scmp.ne.s32.totalorder %s213, %s214
      %p223 = scmp.eq.s32.totalorder %s30, 0
      %p224 = por %p222, %p223
      %p225 = scmp.ne.s32.totalorder %s213, %s214
      %p226 = scmp.eq.s32.totalorder %s31, 1
      %p227 = por %p225, %p226
      %p229 = scmp.ne.s32.totalorder %s214, %s228
      %p230 = scmp.eq.s32.totalorder %s31, 0
      %p231 = por %p229, %p230
      %s233 = sadd.s32 %s232, 1
      %p236 = scmp.eq.s32.totalorder %s25, 1
      %p237 = scmp.ne.s32.totalorder %s232, %s234
      %p238 = scmp.eq.s32.totalorder %s25, 0
      %p239 = por %p237, %p238
      %p240 = scmp.ne.s32.totalorder %s232, %s234
      %p241 = scmp.eq.s32.totalorder %s30, 1
      %p242 = por %p240, %p241
      %p243 = scmp.ne.s32.totalorder %s234, %s235
      %p244 = scmp.eq.s32.totalorder %s30, 0
      %p245 = por %p243, %p244
      %p246 = scmp.ne.s32.totalorder %s234, %s235
      %p247 = scmp.eq.s32.totalorder %s31, 1
      %p248 = por %p246, %p247
      %p250 = scmp.ne.s32.totalorder %s235, %s249
      %p251 = scmp.eq.s32.totalorder %s31, 0
      %p252 = por %p250, %p251
      %s254 = sadd.s32 %s253, 1
      %p257 = scmp.eq.s32.totalorder %s25, 1
      %p258 = scmp.ne.s32.totalorder %s253, %s255
      %p259 = scmp.eq.s32.totalorder %s25, 0
      %p260 = por %p258, %p259
      %p261 = scmp.ne.s32.totalorder %s253, %s255
      %p262 = scmp.eq.s32.totalorder %s30, 1
      %p263 = por %p261, %p262
      %p264 = scmp.ne.s32.totalorder %s255, %s256
      %p265 = scmp.eq.s32.totalorder %s30, 0
      %p266 = por %p264, %p265
      %p267 = scmp.ne.s32.totalorder %s255, %s256
      %p268 = scmp.eq.s32.totalorder %s31, 1
      %p269 = por %p267, %p268
      %p271 = scmp.ne.s32.totalorder %s256, %s270
      %p272 = scmp.eq.s32.totalorder %s31, 0
      %p273 = por %p271, %p272
      %s275 = sadd.s32 %s274, 1
      %p278 = scmp.eq.s32.totalorder %s25, 1
      %p279 = scmp.ne.s32.totalorder %s274, %s276
      %p280 = scmp.eq.s32.totalorder %s25, 0
      %p281 = por %p279, %p280
      %p282 = scmp.ne.s32.totalorder %s274, %s276
      %p283 = scmp.eq.s32.totalorder %s30, 1
      %p284 = por %p282, %p283
      %p285 = scmp.ne.s32.totalorder %s276, %s277
      %p286 = scmp.eq.s32.totalorder %s30, 0
      %p287 = por %p285, %p286
      %p288 = scmp.ne.s32.totalorder %s276, %s277
      %p289 = scmp.eq.s32.totalorder %s31, 1
      %p290 = por %p288, %p289
      %p292 = scmp.ne.s32.totalorder %s277, %s291
      %p293 = scmp.eq.s32.totalorder %s31, 0
      %p294 = por %p292, %p293
      %s296 = sadd.s32 %s295, 1
      %p299 = scmp.eq.s32.totalorder %s25, 1
      %p300 = scmp.ne.s32.totalorder %s295, %s297
      %p301 = scmp.eq.s32.totalorder %s25, 0
      %p302 = por %p300, %p301
      %p303 = scmp.ne.s32.totalorder %s295, %s297
      %p304 = scmp.eq.s32.totalorder %s30, 1
      %p305 = por %p303, %p304
      %p306 = scmp.ne.s32.totalorder %s297, %s298
      %p307 = scmp.eq.s32.totalorder %s30, 0
      %p308 = por %p306, %p307
      %p309 = scmp.ne.s32.totalorder %s297, %s298
      %p310 = scmp.eq.s32.totalorder %s31, 1
      %p311 = por %p309, %p310
      %p313 = scmp.ne.s32.totalorder %s298, %s312
      %p314 = scmp.eq.s32.totalorder %s31, 0
      %p315 = por %p313, %p314
      %s317 = sadd.s32 %s316, 1
      %p320 = scmp.eq.s32.totalorder %s25, 1
      %p321 = scmp.ne.s32.totalorder %s316, %s318
      %p322 = scmp.eq.s32.totalorder %s25, 0
      %p323 = por %p321, %p322
      %p324 = scmp.ne.s32.totalorder %s316, %s318
      %p325 = scmp.eq.s32.totalorder %s30, 1
      %p326 = por %p324, %p325
      %p327 = scmp.ne.s32.totalorder %s318, %s319
      %p328 = scmp.eq.s32.totalorder %s30, 0
      %p329 = por %p327, %p328
      %p330 = scmp.ne.s32.totalorder %s318, %s319
      %p331 = scmp.eq.s32.totalorder %s31, 1
      %p332 = por %p330, %p331
      %p334 = scmp.ne.s32.totalorder %s319, %s333
      %p335 = scmp.eq.s32.totalorder %s31, 0
      %p336 = por %p334, %p335
      %s338 = sadd.s32 %s337, 1
      %p341 = scmp.eq.s32.totalorder %s25, 1
      %p342 = scmp.ne.s32.totalorder %s337, %s339
      %p343 = scmp.eq.s32.totalorder %s25, 0
      %p344 = por %p342, %p343
      %p345 = scmp.ne.s32.totalorder %s337, %s339
      %p346 = scmp.eq.s32.totalorder %s30, 1
      %p347 = por %p345, %p346
      %p348 = scmp.ne.s32.totalorder %s339, %s340
      %p349 = scmp.eq.s32.totalorder %s30, 0
      %p350 = por %p348, %p349
      %p351 = scmp.ne.s32.totalorder %s339, %s340
      %p352 = scmp.eq.s32.totalorder %s31, 1
      %p353 = por %p351, %p352
      %p355 = scmp.ne.s32.totalorder %s340, %s354
      %p356 = scmp.eq.s32.totalorder %s31, 0
      %p357 = por %p355, %p356
      %s359 = sadd.s32 %s358, 1
      %p362 = scmp.eq.s32.totalorder %s25, 1
      %p363 = scmp.ne.s32.totalorder %s358, %s360
      %p364 = scmp.eq.s32.totalorder %s25, 0
      %p365 = por %p363, %p364
      %p366 = scmp.ne.s32.totalorder %s358, %s360
      %p367 = scmp.eq.s32.totalorder %s30, 1
      %p368 = por %p366, %p367
      %p369 = scmp.ne.s32.totalorder %s360, %s361
      %p370 = scmp.eq.s32.totalorder %s30, 0
      %p371 = por %p369, %p370
      %p372 = scmp.ne.s32.totalorder %s360, %s361
      %p373 = scmp.eq.s32.totalorder %s31, 1
      %p374 = por %p372, %p373
      %p376 = scmp.ne.s32.totalorder %s361, %s375
      %p377 = scmp.eq.s32.totalorder %s31, 0
      %p378 = por %p376, %p377
      %s380 = sadd.s32 %s379, 1
      %p383 = scmp.eq.s32.totalorder %s25, 1
      %p384 = scmp.ne.s32.totalorder %s379, %s381
      %p385 = scmp.eq.s32.totalorder %s25, 0
      %p386 = por %p384, %p385
      %p387 = scmp.ne.s32.totalorder %s379, %s381
      %p388 = scmp.eq.s32.totalorder %s30, 1
      %p389 = por %p387, %p388
      %p390 = scmp.ne.s32.totalorder %s381, %s382
      %p391 = scmp.eq.s32.totalorder %s30, 0
      %p392 = por %p390, %p391
      %p393 = scmp.ne.s32.totalorder %s381, %s382
      %p394 = scmp.eq.s32.totalorder %s31, 1
      %p395 = por %p393, %p394
      %p397 = scmp.ne.s32.totalorder %s382, %s396
      %p398 = scmp.eq.s32.totalorder %s31, 0
      %p399 = por %p397, %p398
      %s400 = ssub.s32 %s25, %s32
      %p401 = scmp.eq.s32.totalorder %s400, 0
      %s403 = sadd.s32 %s402, 1
      %s404 = scalar_select %p401, %s402, %s403
      %p407 = pneg %p401
      %p408 = scmp.eq.s32.totalorder %s25, 1
      %p409 = por %p407, %p408
      %p410 = scmp.ne.s32.totalorder %s402, %s405
      %p411 = scmp.eq.s32.totalorder %s25, 0
      %p412 = por %p410, %p411
      %p413 = scmp.ne.s32.totalorder %s402, %s405
      %p414 = scmp.eq.s32.totalorder %s30, 1
      %p415 = por %p413, %p414
      %p416 = scmp.ne.s32.totalorder %s405, %s406
      %p417 = scmp.eq.s32.totalorder %s30, 0
      %p418 = por %p416, %p417
      %p419 = scmp.ne.s32.totalorder %s405, %s406
      %p420 = scmp.eq.s32.totalorder %s31, 1
      %p421 = por %p419, %p420
      %p423 = scmp.ne.s32.totalorder %s406, %s422
      %p424 = scmp.eq.s32.totalorder %s31, 0
      %p425 = por %p423, %p424
      %p426 = scmp.le.s32.totalorder 1, %s25
      %p427 = scmp.lt.s32.totalorder %s25, 3
      %p428 = pnand %p426, %p427
      %p429 = pneg %p428
      // Predicated region
      $region9: #{tpu_custom_call.1} parent=5 // pred_check
        _
      $region10: #{tpu_custom_call.1} parent=5 // pred_check_branch
        %431 = sbr.rel (%p428) target = $region12
      $region11: #{tpu_custom_call.1} parent=5 // pred_region
        %s432 = ssub.s32 %s25, 1
        // Predicated region
        $region13: #{tpu_custom_call.1} parent=11 // pred_check
          %p433 = pneg %p46
        $region14: #{tpu_custom_call.1} parent=11 // pred_check_branch
          %435 = sbr.rel (%p433) target = $region16
        $region15: #{tpu_custom_call.1} parent=11 // pred_region
          %s437 = ssub.s32 128, 128
          %438 = vsyncadd [#allocation3], %s437
          %s440 = sshll.u32 [#allocation2], 4
          %s441 = int_to_ptr.vmem [resolvable:$true] %s440
          %443 = dma.hbm_to_vmem [thread:$0]  %s0, 128, %s441, [#allocation3]
        $region16: #{tpu_custom_call.1} parent=11 // pred_fallthru
          _
        // Predicated region
        $region17: #{tpu_custom_call.1} parent=11 // pred_check
          %p444 = pneg %p119
        $region18: #{tpu_custom_call.1} parent=11 // pred_check_branch
          %446 = sbr.rel (%p444) target = $region20
        $region19: #{tpu_custom_call.1} parent=11 // pred_region
          _
        $region20: #{tpu_custom_call.1} parent=11 // pred_fallthru
          _
        // Predicated region
        $region21: #{tpu_custom_call.1} parent=11 // pred_check
          %p447 = pneg %p140
        $region22: #{tpu_custom_call.1} parent=11 // pred_check_branch
          %449 = sbr.rel (%p447) target = $region24
        $region23: #{tpu_custom_call.1} parent=11 // pred_region
          _
        $region24: #{tpu_custom_call.1} parent=11 // pred_fallthru
          _
        // Predicated region
        $region25: #{tpu_custom_call.1} parent=11 // pred_check
          %p450 = pneg %p161
        $region26: #{tpu_custom_call.1} parent=11 // pred_check_branch
          %452 = sbr.rel (%p450) target = $region28
        $region27: #{tpu_custom_call.1} parent=11 // pred_region
          _
        $region28: #{tpu_custom_call.1} parent=11 // pred_fallthru
          _
        // Predicated region
        $region29: #{tpu_custom_call.1} parent=11 // pred_check
          %p453 = pneg %p182
        $region30: #{tpu_custom_call.1} parent=11 // pred_check_branch
          %455 = sbr.rel (%p453) target = $region32
        $region31: #{tpu_custom_call.1} parent=11 // pred_region
          _
        $region32: #{tpu_custom_call.1} parent=11 // pred_fallthru
          _
        // Predicated region
        $region33: #{tpu_custom_call.1} parent=11 // pred_check
          %p456 = pneg %p203
        $region34: #{tpu_custom_call.1} parent=11 // pred_check_branch
          %458 = sbr.rel (%p456) target = $region36
        $region35: #{tpu_custom_call.1} parent=11 // pred_region
          %s460 = ssub.s32 512, 512
          %461 = vsyncadd [#allocation5], %s460
          %s462 = sshll.u32 [#allocation4], 4
          %s463 = int_to_ptr.vmem [resolvable:$true] %s462
          %468 = dma.hbm_to_vmem [thread:$0]  %s7, 512, %s463, [#allocation5], 128, 128, 8
        $region36: #{tpu_custom_call.1} parent=11 // pred_fallthru
          _
        // Predicated region
        $region37: #{tpu_custom_call.1} parent=11 // pred_check
          %p469 = pneg %p224
        $region38: #{tpu_custom_call.1} parent=11 // pred_check_branch
          %471 = sbr.rel (%p469) target = $region40
        $region39: #{tpu_custom_call.1} parent=11 // pred_region
          _
        $region40: #{tpu_custom_call.1} parent=11 // pred_fallthru
          _
        // Predicated region
        $region41: #{tpu_custom_call.1} parent=11 // pred_check
          %p472 = pneg %p245
        $region42: #{tpu_custom_call.1} parent=11 // pred_check_branch
          %474 = sbr.rel (%p472) target = $region44
        $region43: #{tpu_custom_call.1} parent=11 // pred_region
          _
        $region44: #{tpu_custom_call.1} parent=11 // pred_fallthru
          _
        // Predicated region
        $region45: #{tpu_custom_call.1} parent=11 // pred_check
          %p475 = pneg %p266
        $region46: #{tpu_custom_call.1} parent=11 // pred_check_branch
          %477 = sbr.rel (%p475) target = $region48
        $region47: #{tpu_custom_call.1} parent=11 // pred_region
          _
        $region48: #{tpu_custom_call.1} parent=11 // pred_fallthru
          _
        // Predicated region
        $region49: #{tpu_custom_call.1} parent=11 // pred_check
          %p478 = pneg %p287
        $region50: #{tpu_custom_call.1} parent=11 // pred_check_branch
          %480 = sbr.rel (%p478) target = $region52
        $region51: #{tpu_custom_call.1} parent=11 // pred_region
          %s482 = ssub.s32 512, 512
          %483 = vsyncadd [#allocation5], %s482
          %s484 = sshll.u32 [#allocation6], 4
          %s485 = int_to_ptr.vmem [resolvable:$true] %s484
          %490 = dma.hbm_to_vmem [thread:$0]  %s11, 512, %s485, [#allocation5], 128, 128, 8
        $region52: #{tpu_custom_call.1} parent=11 // pred_fallthru
          _
        // Predicated region
        $region53: #{tpu_custom_call.1} parent=11 // pred_check
          %p491 = pneg %p308
        $region54: #{tpu_custom_call.1} parent=11 // pred_check_branch
          %493 = sbr.rel (%p491) target = $region56
        $region55: #{tpu_custom_call.1} parent=11 // pred_region
          _
        $region56: #{tpu_custom_call.1} parent=11 // pred_fallthru
          _
        // Predicated region
        $region57: #{tpu_custom_call.1} parent=11 // pred_check
          %p494 = pneg %p329
        $region58: #{tpu_custom_call.1} parent=11 // pred_check_branch
          %496 = sbr.rel (%p494) target = $region60
        $region59: #{tpu_custom_call.1} parent=11 // pred_region
          _
        $region60: #{tpu_custom_call.1} parent=11 // pred_fallthru
          _
        // Predicated region
        $region61: #{tpu_custom_call.1} parent=11 // pred_check
          %p497 = pneg %p350
        $region62: #{tpu_custom_call.1} parent=11 // pred_check_branch
          %499 = sbr.rel (%p497) target = $region64
        $region63: #{tpu_custom_call.1} parent=11 // pred_region
          _
        $region64: #{tpu_custom_call.1} parent=11 // pred_fallthru
          _
        // Predicated region
        $region65: #{tpu_custom_call.1} parent=11 // pred_check
          %p500 = pneg %p371
        $region66: #{tpu_custom_call.1} parent=11 // pred_check_branch
          %502 = sbr.rel (%p500) target = $region68
        $region67: #{tpu_custom_call.1} parent=11 // pred_region
          _
        $region68: #{tpu_custom_call.1} parent=11 // pred_fallthru
          _
        // Predicated region
        $region69: #{tpu_custom_call.1} parent=11 // pred_check
          %p503 = pneg %p392
        $region70: #{tpu_custom_call.1} parent=11 // pred_check_branch
          %505 = sbr.rel (%p503) target = $region72
        $region71: #{tpu_custom_call.1} parent=11 // pred_region
          _
        $region72: #{tpu_custom_call.1} parent=11 // pred_fallthru
          _
      $region12: #{tpu_custom_call.1} parent=5 // pred_fallthru
        _
      %p506 = scmp.lt.s32.totalorder %s25, 2
      // Predicated region
      $region73: #{tpu_custom_call.1} parent=5 // pred_check
        %p507 = pneg %p506
      $region74: #{tpu_custom_call.1} parent=5 // pred_check_branch
        %509 = sbr.rel (%p507) target = $region76
      $region75: #{tpu_custom_call.1} parent=5 // pred_region
        // Predicated region
        $region77: #{tpu_custom_call.1} parent=75 // pred_check
          %p510 = pneg %p66
        $region78: #{tpu_custom_call.1} parent=75 // pred_check_branch
          %512 = sbr.rel (%p510) target = $region80
        $region79: #{tpu_custom_call.1} parent=75 // pred_region
          %p513 = scmp.lt.s32.totalorder %s25, 1
          %s514 = scalar_select %p513, %s25, 1
          %s515 = smul.addr %s514, 2
          %s516 = smul.addr %s515, 8
          %s517 = scalar_lea.vmem %s1, %s516
        $region80: #{tpu_custom_call.1} parent=75 // pred_fallthru
          _
        // Predicated region
        $region81: #{tpu_custom_call.1} parent=75 // pred_check
          %p518 = pneg %p92
        $region82: #{tpu_custom_call.1} parent=75 // pred_check_branch
          %520 = sbr.rel (%p518) target = $region84
        $region83: #{tpu_custom_call.1} parent=75 // pred_region
          %p521 = scmp.lt.s32.totalorder %s25, 1
          %s522 = scalar_select %p521, %s25, 1
          %s523 = scalar_lea.vmem %s2, %s522
        $region84: #{tpu_custom_call.1} parent=75 // pred_fallthru
          _
      $region76: #{tpu_custom_call.1} parent=5 // pred_fallthru
        _
      %p524 = scmp.le.s32.totalorder 1, %s25
      %p525 = scmp.lt.s32.totalorder %s25, 3
      %p526 = pnand %p524, %p525
      %p527 = pneg %p526
      // Predicated region
      $region85: #{tpu_custom_call.1} parent=5 // pred_check
        _
      $region86: #{tpu_custom_call.1} parent=5 // pred_check_branch
        %529 = sbr.rel (%p526) target = $region88
      $region87: #{tpu_custom_call.1} parent=5 // pred_region
        %s530 = ssub.s32 %s25, 1
        // Predicated region
        $region89: #{tpu_custom_call.1} parent=87 // pred_check
          %p531 = pneg %p46
        $region90: #{tpu_custom_call.1} parent=87 // pred_check_branch
          %533 = sbr.rel (%p531) target = $region92
        $region91: #{tpu_custom_call.1} parent=87 // pred_region
          %534 = dma.done [#allocation3], 128
        $region92: #{tpu_custom_call.1} parent=87 // pred_fallthru
          _
        // Predicated region
        $region93: #{tpu_custom_call.1} parent=87 // pred_check
          %p535 = pneg %p203
        $region94: #{tpu_custom_call.1} parent=87 // pred_check_branch
          %537 = sbr.rel (%p535) target = $region96
        $region95: #{tpu_custom_call.1} parent=87 // pred_region
          %538 = dma.done [#allocation5], 512
        $region96: #{tpu_custom_call.1} parent=87 // pred_fallthru
          _
        // Predicated region
        $region97: #{tpu_custom_call.1} parent=87 // pred_check
          %p539 = pneg %p287
        $region98: #{tpu_custom_call.1} parent=87 // pred_check_branch
          %541 = sbr.rel (%p539) target = $region100
        $region99: #{tpu_custom_call.1} parent=87 // pred_region
          %542 = dma.done [#allocation5], 512
        $region100: #{tpu_custom_call.1} parent=87 // pred_fallthru
          _
        %p543 = pneg %p46
        %p544 = pneg %p43
        %p545 = scmp.lt.s32.totalorder %s30, 1
        %s546 = scalar_select %p545, %s30, 1
        %s547 = smul.addr %s546, 2
        %s548 = smul.addr %s547, 8
        %s549 = scalar_lea.vmem %s1, %s548
        %p550 = pneg %p72
        %p551 = pneg %p69
        %p552 = scmp.lt.s32.totalorder %s30, 1
        %s553 = scalar_select %p552, %s30, 1
        %s554 = scalar_lea.vmem %s2, %s553
        %p555 = pneg %p98
        %p556 = pneg %p95
        %p557 = pneg %p119
        %p558 = pneg %p116
        %p559 = pneg %p140
        %p560 = pneg %p137
        %p561 = pneg %p161
        %p562 = pneg %p158
        %p563 = pneg %p182
        %p564 = pneg %p179
        %p565 = pneg %p203
        %p566 = pneg %p200
        %p567 = pneg %p224
        %p568 = pneg %p221
        %p569 = pneg %p245
        %p570 = pneg %p242
        %p571 = pneg %p266
        %p572 = pneg %p263
        %p573 = pneg %p287
        %p574 = pneg %p284
        %p575 = pneg %p308
        %p576 = pneg %p305
        %p577 = pneg %p329
        %p578 = pneg %p326
        %p579 = pneg %p350
        %p580 = pneg %p347
        %p581 = pneg %p371
        %p582 = pneg %p368
        %p583 = pneg %p392
        %p584 = pneg %p389
        %p585 = pneg %p418
        %p586 = pneg %p415
        %p587 = scmp.lt.s32.totalorder %s30, 1
        %s588 = scalar_select %p587, %s30, 1
        %s589 = smul.addr %s588, 8
        %s590 = scalar_lea.vmem %s17, %s589
        %p591 = scmp.lt.s32.totalorder %s30, 1
        %s592 = scalar_select %p591, %s30, 1
        %s593 = smul.addr %s592, 2
        %s594 = smul.addr %s593, 8
        %s595 = scalar_lea.vmem %s1, %s594
        %p596 = scmp.lt.s32.totalorder %s30, 1
        %s597 = scalar_select %p596, %s30, 1
        %s598 = scalar_lea.vmem %s2, %s597
        %p599 = scmp.lt.s32.totalorder %s30, 1
        %s600 = scalar_select %p599, %s30, 1
        %s601 = smul.addr %s600, 8
        %s602 = scalar_lea.vmem %s17, %s601
        %v603 = vld [vmem:[#allocation2] sm:$0x1f]
        %v604 = vld [vmem:[%s598] sm:$0x1]
        %v605 = vmul.f32 %v604, -1e+30
        %v606 = vld [vmem:[%s3] sm:$0xff]
        %v607 = vld [vmem:[%s3 + $0x8] sm:$0xff]
        %v608 = vld [vmem:[%s3 + $0x10] sm:$0xff]
        %v609 = vld [vmem:[%s3 + $0x18] sm:$0xff]
        %v610 = vld [vmem:[%s4] sm:$0x1]
        %v611 = vld [vmem:[%s5] sm:$0xff]
        %v612 = vld [vmem:[%s5 + $0x8] sm:$0xff]
        %v613 = vld [vmem:[%s5 + $0x10] sm:$0xff]
        %v614 = vld [vmem:[%s5 + $0x18] sm:$0xff]
        %v615 = vld [vmem:[%s6] sm:$0x1]
        %v616 = vld [vmem:[#allocation4] sm:$0xff]
        %v617 = vld [vmem:[#allocation4 + $0x8] sm:$0xff]
        %v618 = vld [vmem:[#allocation4 + $0x10] sm:$0xff]
        %v619 = vld [vmem:[#allocation4 + $0x18] sm:$0xff]
        %v620 = vld [vmem:[%s8] sm:$0x1]
        %v621 = vld [vmem:[%s9] sm:$0x1]
        %v622 = vld [vmem:[%s10] sm:$0x1]
        %v623 = vld [vmem:[#allocation6] sm:$0xff]
        %v624 = vld [vmem:[#allocation6 + $0x8] sm:$0xff]
        %v625 = vld [vmem:[#allocation6 + $0x10] sm:$0xff]
        %v626 = vld [vmem:[#allocation6 + $0x18] sm:$0xff]
        %v627 = vld [vmem:[%s12] sm:$0x1]
        %v628 = vld [vmem:[%s13] sm:$0xff]
        %v629 = vld [vmem:[%s13 + $0x8] sm:$0xff]
        %v630 = vld [vmem:[%s13 + $0x10] sm:$0xff]
        %v631 = vld [vmem:[%s13 + $0x18] sm:$0xff]
        %v632 = vld [vmem:[%s13 + $0x20] sm:$0xff]
        %v633 = vld [vmem:[%s13 + $0x28] sm:$0xff]
        %v634 = vld [vmem:[%s13 + $0x30] sm:$0xff]
        %v635 = vld [vmem:[%s13 + $0x38] sm:$0xff]
        %v636 = vld [vmem:[%s14] sm:$0x1]
        %v637 = vld [vmem:[%s15] sm:$0x1]
        %v638 = vld [vmem:[%s16] sm:$0x1]
        %v639 = vld [vmem:[%s595] sm:$0xff]
        %v640 = vld [vmem:[%s595 + $0x8] sm:$0xff]
        %v642 = vlaneseq
        %v643 = vshrl.u32 %v642, 7
        %v644 = vsub.s32 0, %v643
        %v645 = vrot.slane %v615, %v644
        %vm647 = vcmask 261120
        %v649 = vsel %vm647, %v639, 0
        %v652 = vsel %vm647, %v640, 0
        %654 = vmatprep.subr.mxu0 0.0
        %655 = vmatpush1.msra.mxu0 0.0
        %656 = vmatprep.subr.mxu0 0.0
        %657 = vmatpush1.msra.mxu0 0.0
        %658 = vmatprep.subr.mxu0 0.0
        %659 = vmatpush1.msra.mxu0 0.0
        %660 = vmatprep.subr.mxu0 0.0
        %661 = vmatpush1.msra.mxu0 0.0
        %662 = vmatprep.subr.mxu0 0.0
        %663 = vmatpush1.msra.mxu0 0.0
        %664 = vmatprep.subr.mxu0 0.0
        %665 = vmatpush1.msra.mxu0 0.0
        %666 = vmatprep.subr.mxu0 0.0
        %667 = vmatpush1.msra.mxu0 0.0
        %668 = vmatprep.subr.mxu0 0.0
        %669 = vmatpush1.msra.mxu0 0.0
        %670 = vmatprep.subr.mxu0 0.0
        %671 = vmatpush1.msra.mxu0 0.0
        %672 = vmatprep.subr.mxu0 0.0
        %673 = vmatpush1.msra.mxu0 0.0
        %674 = vmatprep.subr.mxu0 0.0
        %675 = vmatpush1.msra.mxu0 0.0
        %676 = vmatprep.subr.mxu0 0.0
        %677 = vmatpush1.msra.mxu0 0.0
        %678 = vmatprep.subr.mxu0 0.0
        %679 = vmatpush1.msra.mxu0 %v614
        %680 = vmatprep.subr.mxu0 0.0
        %681 = vmatpush1.msra.mxu0 %v613
        %682 = vmatprep.subr.mxu0 0.0
        %683 = vmatpush1.msra.mxu0 %v612
        %684 = vmatprep.subr.mxu0 0.0
        %685 = vmatpush1.msra.mxu0 %v611
        %686 = vmatprep.subr.mxu0 0.0
        %687 = vmatpush2.msra.mxu0 0.0
        %688 = vmatprep.subr.mxu0 0.0
        %689 = vmatpush2.msra.mxu0 0.0
        %690 = vmatprep.subr.mxu0 0.0
        %691 = vmatpush2.msra.mxu0 0.0
        %692 = vmatprep.subr.mxu0 0.0
        %693 = vmatpush2.msra.mxu0 0.0
        %694 = vmatprep.subr.mxu0 0.0
        %695 = vmatpush2.msra.mxu0 0.0
        %696 = vmatprep.subr.mxu0 0.0
        %697 = vmatpush2.msra.mxu0 0.0
        %698 = vmatprep.subr.mxu0 0.0
        %699 = vmatpush2.msra.mxu0 0.0
        %700 = vmatprep.subr.mxu0 0.0
        %701 = vmatpush2.msra.mxu0 0.0
        %702 = vmatprep.subr.mxu0 0.0
        %703 = vmatpush2.msra.mxu0 0.0
        %704 = vmatprep.subr.mxu0 0.0
        %705 = vmatpush2.msra.mxu0 0.0
        %706 = vmatprep.subr.mxu0 0.0
        %707 = vmatpush2.msra.mxu0 0.0
        %708 = vmatprep.subr.mxu0 0.0
        %709 = vmatpush2.msra.mxu0 0.0
        %710 = vmatprep.subr.mxu0 0.0
        %711 = vmatpush2.msra.mxu0 0.0
        %712 = vmatprep.subr.mxu0 0.0
        %713 = vmatpush2.msra.mxu0 0.0
        %714 = vmatprep.subr.mxu0 0.0
        %715 = vmatpush2.msra.mxu0 0.0
        %716 = vmatprep.subr.mxu0 0.0
        %717 = vmatpush2.msra.mxu0 0.0
        %718 = vmatprep.mubr.f32.mxu0 0.0
        %719 = vmatmul.mubr.f32.gmra.mxu0 %v649
        %v720 = vpop.f32.mrf.mxu0
        %v721 = vadd.f32 %v645, %v720
        %v722 = vpop.f32.mrf.mxu0
        %723 = vmatprep.mubr.f32.mxu0 0.0
        %724 = vmatmul.mubr.f32.gmra.mxu0 %v652
        %v725 = vpop.f32.mrf.mxu0
        %v726 = vadd.f32 %v645, %v725
        %v727 = vpop.f32.mrf.mxu0
        %728 = vdwg.mxu0
        %v730 = vlaneseq
        %v731 = vshrl.u32 %v730, 7
        %v732 = vsub.s32 0, %v731
        %v733 = vrot.slane %v610, %v732
        %v736 = vsel %vm647, %v603, 0
        %738 = vmatprep.subr.mxu0 0.0
        %739 = vmatpush1.msra.mxu0 0.0
        %740 = vmatprep.subr.mxu0 0.0
        %741 = vmatpush1.msra.mxu0 0.0
        %742 = vmatprep.subr.mxu0 0.0
        %743 = vmatpush1.msra.mxu0 0.0
        %744 = vmatprep.subr.mxu0 0.0
        %745 = vmatpush1.msra.mxu0 0.0
        %746 = vmatprep.subr.mxu0 0.0
        %747 = vmatpush1.msra.mxu0 0.0
        %748 = vmatprep.subr.mxu0 0.0
        %749 = vmatpush1.msra.mxu0 0.0
        %750 = vmatprep.subr.mxu0 0.0
        %751 = vmatpush1.msra.mxu0 0.0
        %752 = vmatprep.subr.mxu0 0.0
        %753 = vmatpush1.msra.mxu0 0.0
        %754 = vmatprep.subr.mxu0 0.0
        %755 = vmatpush1.msra.mxu0 0.0
        %756 = vmatprep.subr.mxu0 0.0
        %757 = vmatpush1.msra.mxu0 0.0
        %758 = vmatprep.subr.mxu0 0.0
        %759 = vmatpush1.msra.mxu0 0.0
        %760 = vmatprep.subr.mxu0 0.0
        %761 = vmatpush1.msra.mxu0 0.0
        %762 = vmatprep.subr.mxu0 0.0
        %763 = vmatpush1.msra.mxu0 %v609
        %764 = vmatprep.subr.mxu0 0.0
        %765 = vmatpush1.msra.mxu0 %v608
        %766 = vmatprep.subr.mxu0 0.0
        %767 = vmatpush1.msra.mxu0 %v607
        %768 = vmatprep.subr.mxu0 0.0
        %769 = vmatpush1.msra.mxu0 %v606
        %770 = vmatprep.subr.mxu0 0.0
        %771 = vmatpush2.msra.mxu0 0.0
        %772 = vmatprep.subr.mxu0 0.0
        %773 = vmatpush2.msra.mxu0 0.0
        %774 = vmatprep.subr.mxu0 0.0
        %775 = vmatpush2.msra.mxu0 0.0
        %776 = vmatprep.subr.mxu0 0.0
        %777 = vmatpush2.msra.mxu0 0.0
        %778 = vmatprep.subr.mxu0 0.0
        %779 = vmatpush2.msra.mxu0 0.0
        %780 = vmatprep.subr.mxu0 0.0
        %781 = vmatpush2.msra.mxu0 0.0
        %782 = vmatprep.subr.mxu0 0.0
        %783 = vmatpush2.msra.mxu0 0.0
        %784 = vmatprep.subr.mxu0 0.0
        %785 = vmatpush2.msra.mxu0 0.0
        %786 = vmatprep.subr.mxu0 0.0
        %787 = vmatpush2.msra.mxu0 0.0
        %788 = vmatprep.subr.mxu0 0.0
        %789 = vmatpush2.msra.mxu0 0.0
        %790 = vmatprep.subr.mxu0 0.0
        %791 = vmatpush2.msra.mxu0 0.0
        %792 = vmatprep.subr.mxu0 0.0
        %793 = vmatpush2.msra.mxu0 0.0
        %794 = vmatprep.subr.mxu0 0.0
        %795 = vmatpush2.msra.mxu0 0.0
        %796 = vmatprep.subr.mxu0 0.0
        %797 = vmatpush2.msra.mxu0 0.0
        %798 = vmatprep.subr.mxu0 0.0
        %799 = vmatpush2.msra.mxu0 0.0
        %800 = vmatprep.subr.mxu0 0.0
        %801 = vmatpush2.msra.mxu0 0.0
        %802 = vmatprep.mubr.f32.mxu0 0.0
        %803 = vmatmul.mubr.f32.gmra.mxu0 %v736
        %v804 = vpop.f32.mrf.mxu0
        %v805 = vadd.f32 %v733, %v804
        %v806 = vpop.f32.mrf.mxu0
        %807 = vdwg.mxu0
        %809 = vrot.lane.b32.xlu0 %v805, 120
        %v810 = vpop.permute.xlu0 %809
        %811 = vrot.lane.b32.xlu0 %v805, 112
        %v812 = vpop.permute.xlu0 %811
        %813 = vrot.lane.b32.xlu0 %v805, 104
        %v814 = vpop.permute.xlu0 %813
        %816 = vrot.lane.b32.xlu0 %v721, 120
        %v817 = vpop.permute.xlu0 %816
        %819 = vrot.lane.b32.xlu0 %v721, 112
        %v820 = vpop.permute.xlu0 %819
        %822 = vrot.lane.b32.xlu0 %v721, 104
        %v823 = vpop.permute.xlu0 %822
        %v826 = vlaneseq
        %v827 = vshrl.u32 %v826, 7
        %v828 = vsub.s32 0, %v827
        %v829 = vrot.slane %v605, %v828
        %831 = vxpose.xlu0.b32.start [1/16] %v721, 128
        %832 = vxpose.xlu0.b32.cont [2/16] 0.0, 128
        %833 = vxpose.xlu0.b32.cont [3/16] 0.0, 128
        %834 = vxpose.xlu0.b32.cont [4/16] 0.0, 128
        %835 = vxpose.xlu0.b32.cont [5/16] 0.0, 128
        %836 = vxpose.xlu0.b32.cont [6/16] 0.0, 128
        %837 = vxpose.xlu0.b32.cont [7/16] 0.0, 128
        %838 = vxpose.xlu0.b32.cont [8/16] 0.0, 128
        %839 = vxpose.xlu0.b32.cont [9/16] 0.0, 128
        %840 = vxpose.xlu0.b32.cont [10/16] 0.0, 128
        %841 = vxpose.xlu0.b32.cont [11/16] 0.0, 128
        %842 = vxpose.xlu0.b32.cont [12/16] 0.0, 128
        %843 = vxpose.xlu0.b32.cont [13/16] 0.0, 128
        %844 = vxpose.xlu0.b32.cont [14/16] 0.0, 128
        %845 = vxpose.xlu0.b32.cont [15/16] 0.0, 128
        %846 = vxpose.xlu0.b32.end [16/16] 0.0, 128
        %v847 = vpop.trf.xlu0
        %v848 = vpop.trf.xlu0
        %v849 = vpop.trf.xlu0
        %v850 = vpop.trf.xlu0
        %v851 = vpop.trf.xlu0
        %v852 = vpop.trf.xlu0
        %v853 = vpop.trf.xlu0
        %v854 = vpop.trf.xlu0
        %v855 = vpop.trf.xlu0
        %v856 = vpop.trf.xlu0
        %v857 = vpop.trf.xlu0
        %v858 = vpop.trf.xlu0
        %v859 = vpop.trf.xlu0
        %v860 = vpop.trf.xlu0
        %v861 = vpop.trf.xlu0
        %v862 = vpop.trf.xlu0
        %863 = vxpose.xlu0.b32.start [1/16] %v817, 128
        %864 = vxpose.xlu0.b32.cont [2/16] 0.0, 128
        %865 = vxpose.xlu0.b32.cont [3/16] 0.0, 128
        %866 = vxpose.xlu0.b32.cont [4/16] 0.0, 128
        %867 = vxpose.xlu0.b32.cont [5/16] 0.0, 128
        %868 = vxpose.xlu0.b32.cont [6/16] 0.0, 128
        %869 = vxpose.xlu0.b32.cont [7/16] 0.0, 128
        %870 = vxpose.xlu0.b32.cont [8/16] 0.0, 128
        %871 = vxpose.xlu0.b32.cont [9/16] 0.0, 128
        %872 = vxpose.xlu0.b32.cont [10/16] 0.0, 128
        %873 = vxpose.xlu0.b32.cont [11/16] 0.0, 128
        %874 = vxpose.xlu0.b32.cont [12/16] 0.0, 128
        %875 = vxpose.xlu0.b32.cont [13/16] 0.0, 128
        %876 = vxpose.xlu0.b32.cont [14/16] 0.0, 128
        %877 = vxpose.xlu0.b32.cont [15/16] 0.0, 128
        %878 = vxpose.xlu0.b32.end [16/16] 0.0, 128
        %v879 = vpop.trf.xlu0
        %v880 = vpop.trf.xlu0
        %v881 = vpop.trf.xlu0
        %v882 = vpop.trf.xlu0
        %v883 = vpop.trf.xlu0
        %v884 = vpop.trf.xlu0
        %v885 = vpop.trf.xlu0
        %v886 = vpop.trf.xlu0
        %v887 = vpop.trf.xlu0
        %v888 = vpop.trf.xlu0
        %v889 = vpop.trf.xlu0
        %v890 = vpop.trf.xlu0
        %v891 = vpop.trf.xlu0
        %v892 = vpop.trf.xlu0
        %v893 = vpop.trf.xlu0
        %v894 = vpop.trf.xlu0
        %895 = vxpose.xlu0.b32.start [1/16] %v820, 128
        %896 = vxpose.xlu0.b32.cont [2/16] 0.0, 128
        %897 = vxpose.xlu0.b32.cont [3/16] 0.0, 128
        %898 = vxpose.xlu0.b32.cont [4/16] 0.0, 128
        %899 = vxpose.xlu0.b32.cont [5/16] 0.0, 128
        %900 = vxpose.xlu0.b32.cont [6/16] 0.0, 128
        %901 = vxpose.xlu0.b32.cont [7/16] 0.0, 128
        %902 = vxpose.xlu0.b32.cont [8/16] 0.0, 128
        %903 = vxpose.xlu0.b32.cont [9/16] 0.0, 128
        %904 = vxpose.xlu0.b32.cont [10/16] 0.0, 128
        %905 = vxpose.xlu0.b32.cont [11/16] 0.0, 128
        %906 = vxpose.xlu0.b32.cont [12/16] 0.0, 128
        %907 = vxpose.xlu0.b32.cont [13/16] 0.0, 128
        %908 = vxpose.xlu0.b32.cont [14/16] 0.0, 128
        %909 = vxpose.xlu0.b32.cont [15/16] 0.0, 128
        %910 = vxpose.xlu0.b32.end [16/16] 0.0, 128
        %v911 = vpop.trf.xlu0
        %v912 = vpop.trf.xlu0
        %v913 = vpop.trf.xlu0
        %v914 = vpop.trf.xlu0
        %v915 = vpop.trf.xlu0
        %v916 = vpop.trf.xlu0
        %v917 = vpop.trf.xlu0
        %v918 = vpop.trf.xlu0
        %v919 = vpop.trf.xlu0
        %v920 = vpop.trf.xlu0
        %v921 = vpop.trf.xlu0
        %v922 = vpop.trf.xlu0
        %v923 = vpop.trf.xlu0
        %v924 = vpop.trf.xlu0
        %v925 = vpop.trf.xlu0
        %v926 = vpop.trf.xlu0
        %927 = vxpose.xlu0.b32.start [1/16] %v823, 128
        %928 = vxpose.xlu0.b32.cont [2/16] 0.0, 128
        %929 = vxpose.xlu0.b32.cont [3/16] 0.0, 128
        %930 = vxpose.xlu0.b32.cont [4/16] 0.0, 128
        %931 = vxpose.xlu0.b32.cont [5/16] 0.0, 128
        %932 = vxpose.xlu0.b32.cont [6/16] 0.0, 128
        %933 = vxpose.xlu0.b32.cont [7/16] 0.0, 128
        %934 = vxpose.xlu0.b32.cont [8/16] 0.0, 128
        %935 = vxpose.xlu0.b32.cont [9/16] 0.0, 128
        %936 = vxpose.xlu0.b32.cont [10/16] 0.0, 128
        %937 = vxpose.xlu0.b32.cont [11/16] 0.0, 128
        %938 = vxpose.xlu0.b32.cont [12/16] 0.0, 128
        %939 = vxpose.xlu0.b32.cont [13/16] 0.0, 128
        %940 = vxpose.xlu0.b32.cont [14/16] 0.0, 128
        %941 = vxpose.xlu0.b32.cont [15/16] 0.0, 128
        %942 = vxpose.xlu0.b32.end [16/16] 0.0, 128
        %v943 = vpop.trf.xlu0
        %v944 = vpop.trf.xlu0
        %v945 = vpop.trf.xlu0
        %v946 = vpop.trf.xlu0
        %v947 = vpop.trf.xlu0
        %v948 = vpop.trf.xlu0
        %v949 = vpop.trf.xlu0
        %v950 = vpop.trf.xlu0
        %v951 = vpop.trf.xlu0
        %v952 = vpop.trf.xlu0
        %v953 = vpop.trf.xlu0
        %v954 = vpop.trf.xlu0
        %v955 = vpop.trf.xlu0
        %v956 = vpop.trf.xlu0
        %v957 = vpop.trf.xlu0
        %v958 = vpop.trf.xlu0
        %vm959 = vcmask 64512
        %v960 = vsel %vm959, %v805, 0
        %962 = vmatprep.subr.mxu0 0.0
        %963 = vmatpush1.msra.mxu0 0.0
        %964 = vmatprep.subr.mxu0 0.0
        %965 = vmatpush1.msra.mxu0 0.0
        %966 = vmatprep.subr.mxu0 0.0
        %967 = vmatpush1.msra.mxu0 0.0
        %968 = vmatprep.subr.mxu0 0.0
        %969 = vmatpush1.msra.mxu0 0.0
        %970 = vmatprep.subr.mxu0 0.0
        %971 = vmatpush1.msra.mxu0 0.0
        %972 = vmatprep.subr.mxu0 0.0
        %973 = vmatpush1.msra.mxu0 0.0
        %974 = vmatprep.subr.mxu0 0.0
        %975 = vmatpush1.msra.mxu0 0.0
        %976 = vmatprep.subr.mxu0 0.0
        %977 = vmatpush1.msra.mxu0 0.0
        %978 = vmatprep.subr.mxu0 0.0
        %979 = vmatpush1.msra.mxu0 0.0
        %980 = vmatprep.subr.mxu0 0.0
        %981 = vmatpush1.msra.mxu0 0.0
        %982 = vmatprep.subr.mxu0 0.0
        %983 = vmatpush1.msra.mxu0 0.0
        %984 = vmatprep.subr.mxu0 0.0
        %985 = vmatpush1.msra.mxu0 0.0
        %986 = vmatprep.subr.mxu0 0.0
        %987 = vmatpush1.msra.mxu0 0.0
        %988 = vmatprep.subr.mxu0 0.0
        %989 = vmatpush1.msra.mxu0 0.0
        %990 = vmatprep.subr.mxu0 0.0
        %991 = vmatpush1.msra.mxu0 0.0
        %992 = vmatprep.subr.mxu0 0.0
        %993 = vmatpush1.msra.mxu0 %v847
        %994 = vmatprep.subr.mxu0 0.0
        %995 = vmatpush2.msra.mxu0 0.0
        %996 = vmatprep.subr.mxu0 0.0
        %997 = vmatpush2.msra.mxu0 0.0
        %998 = vmatprep.subr.mxu0 0.0
        %999 = vmatpush2.msra.mxu0 0.0
        %1000 = vmatprep.subr.mxu0 0.0
        %1001 = vmatpush2.msra.mxu0 0.0
        %1002 = vmatprep.subr.mxu0 0.0
        %1003 = vmatpush2.msra.mxu0 0.0
        %1004 = vmatprep.subr.mxu0 0.0
        %1005 = vmatpush2.msra.mxu0 0.0
        %1006 = vmatprep.subr.mxu0 0.0
        %1007 = vmatpush2.msra.mxu0 0.0
        %1008 = vmatprep.subr.mxu0 0.0
        %1009 = vmatpush2.msra.mxu0 0.0
        %1010 = vmatprep.subr.mxu0 0.0
        %1011 = vmatpush2.msra.mxu0 0.0
        %1012 = vmatprep.subr.mxu0 0.0
        %1013 = vmatpush2.msra.mxu0 0.0
        %1014 = vmatprep.subr.mxu0 0.0
        %1015 = vmatpush2.msra.mxu0 0.0
        %1016 = vmatprep.subr.mxu0 0.0
        %1017 = vmatpush2.msra.mxu0 0.0
        %1018 = vmatprep.subr.mxu0 0.0
        %1019 = vmatpush2.msra.mxu0 0.0
        %1020 = vmatprep.subr.mxu0 0.0
        %1021 = vmatpush2.msra.mxu0 0.0
        %1022 = vmatprep.subr.mxu0 0.0
        %1023 = vmatpush2.msra.mxu0 0.0
        %1024 = vmatprep.subr.mxu0 0.0
        %1025 = vmatpush2.msra.mxu0 0.0
        %1026 = vmatprep.mubr.f32.mxu0 0.0
        %1027 = vmatmul.mubr.f32.gmra.mxu0 %v960
        %v1028 = vpop.f32.mrf.mxu0
        %v1029 = vadd.f32 %v829, %v1028
        %v1030 = vpop.f32.mrf.mxu0
        %1031 = vdwg.mxu0
        %v1032 = vsel %vm959, %v810, 0
        %1034 = vmatprep.subr.mxu0 0.0
        %1035 = vmatpush1.msra.mxu0 0.0
        %1036 = vmatprep.subr.mxu0 0.0
        %1037 = vmatpush1.msra.mxu0 0.0
        %1038 = vmatprep.subr.mxu0 0.0
        %1039 = vmatpush1.msra.mxu0 0.0
        %1040 = vmatprep.subr.mxu0 0.0
        %1041 = vmatpush1.msra.mxu0 0.0
        %1042 = vmatprep.subr.mxu0 0.0
        %1043 = vmatpush1.msra.mxu0 0.0
        %1044 = vmatprep.subr.mxu0 0.0
        %1045 = vmatpush1.msra.mxu0 0.0
        %1046 = vmatprep.subr.mxu0 0.0
        %1047 = vmatpush1.msra.mxu0 0.0
        %1048 = vmatprep.subr.mxu0 0.0
        %1049 = vmatpush1.msra.mxu0 0.0
        %1050 = vmatprep.subr.mxu0 0.0
        %1051 = vmatpush1.msra.mxu0 0.0
        %1052 = vmatprep.subr.mxu0 0.0
        %1053 = vmatpush1.msra.mxu0 0.0
        %1054 = vmatprep.subr.mxu0 0.0
        %1055 = vmatpush1.msra.mxu0 0.0
        %1056 = vmatprep.subr.mxu0 0.0
        %1057 = vmatpush1.msra.mxu0 0.0
        %1058 = vmatprep.subr.mxu0 0.0
        %1059 = vmatpush1.msra.mxu0 0.0
        %1060 = vmatprep.subr.mxu0 0.0
        %1061 = vmatpush1.msra.mxu0 0.0
        %1062 = vmatprep.subr.mxu0 0.0
        %1063 = vmatpush1.msra.mxu0 0.0
        %1064 = vmatprep.subr.mxu0 0.0
        %1065 = vmatpush1.msra.mxu0 %v879
        %1066 = vmatprep.subr.mxu0 0.0
        %1067 = vmatpush2.msra.mxu0 0.0
        %1068 = vmatprep.subr.mxu0 0.0
        %1069 = vmatpush2.msra.mxu0 0.0
        %1070 = vmatprep.subr.mxu0 0.0
        %1071 = vmatpush2.msra.mxu0 0.0
        %1072 = vmatprep.subr.mxu0 0.0
        %1073 = vmatpush2.msra.mxu0 0.0
        %1074 = vmatprep.subr.mxu0 0.0
        %1075 = vmatpush2.msra.mxu0 0.0
        %1076 = vmatprep.subr.mxu0 0.0
        %1077 = vmatpush2.msra.mxu0 0.0
        %1078 = vmatprep.subr.mxu0 0.0
        %1079 = vmatpush2.msra.mxu0 0.0
        %1080 = vmatprep.subr.mxu0 0.0
        %1081 = vmatpush2.msra.mxu0 0.0
        %1082 = vmatprep.subr.mxu0 0.0
        %1083 = vmatpush2.msra.mxu0 0.0
        %1084 = vmatprep.subr.mxu0 0.0
        %1085 = vmatpush2.msra.mxu0 0.0
        %1086 = vmatprep.subr.mxu0 0.0
        %1087 = vmatpush2.msra.mxu0 0.0
        %1088 = vmatprep.subr.mxu0 0.0
        %1089 = vmatpush2.msra.mxu0 0.0
        %1090 = vmatprep.subr.mxu0 0.0
        %1091 = vmatpush2.msra.mxu0 0.0
        %1092 = vmatprep.subr.mxu0 0.0
        %1093 = vmatpush2.msra.mxu0 0.0
        %1094 = vmatprep.subr.mxu0 0.0
        %1095 = vmatpush2.msra.mxu0 0.0
        %1096 = vmatprep.subr.mxu0 0.0
        %1097 = vmatpush2.msra.mxu0 0.0
        %1098 = vmatprep.mubr.f32.mxu0 0.0
        %1099 = vmatmul.mubr.f32.gmra.mxu0 %v1032
        %v1100 = vpop.f32.mrf.mxu0
        %v1101 = vadd.f32 %v829, %v1100
        %v1102 = vpop.f32.mrf.mxu0
        %1103 = vdwg.mxu0
        %v1104 = vsel %vm959, %v812, 0
        %1106 = vmatprep.subr.mxu0 0.0
        %1107 = vmatpush1.msra.mxu0 0.0
        %1108 = vmatprep.subr.mxu0 0.0
        %1109 = vmatpush1.msra.mxu0 0.0
        %1110 = vmatprep.subr.mxu0 0.0
        %1111 = vmatpush1.msra.mxu0 0.0
        %1112 = vmatprep.subr.mxu0 0.0
        %1113 = vmatpush1.msra.mxu0 0.0
        %1114 = vmatprep.subr.mxu0 0.0
        %1115 = vmatpush1.msra.mxu0 0.0
        %1116 = vmatprep.subr.mxu0 0.0
        %1117 = vmatpush1.msra.mxu0 0.0
        %1118 = vmatprep.subr.mxu0 0.0
        %1119 = vmatpush1.msra.mxu0 0.0
        %1120 = vmatprep.subr.mxu0 0.0
        %1121 = vmatpush1.msra.mxu0 0.0
        %1122 = vmatprep.subr.mxu0 0.0
        %1123 = vmatpush1.msra.mxu0 0.0
        %1124 = vmatprep.subr.mxu0 0.0
        %1125 = vmatpush1.msra.mxu0 0.0
        %1126 = vmatprep.subr.mxu0 0.0
        %1127 = vmatpush1.msra.mxu0 0.0
        %1128 = vmatprep.subr.mxu0 0.0
        %1129 = vmatpush1.msra.mxu0 0.0
        %1130 = vmatprep.subr.mxu0 0.0
        %1131 = vmatpush1.msra.mxu0 0.0
        %1132 = vmatprep.subr.mxu0 0.0
        %1133 = vmatpush1.msra.mxu0 0.0
        %1134 = vmatprep.subr.mxu0 0.0
        %1135 = vmatpush1.msra.mxu0 0.0
        %1136 = vmatprep.subr.mxu0 0.0
        %1137 = vmatpush1.msra.mxu0 %v911
        %1138 = vmatprep.subr.mxu0 0.0
        %1139 = vmatpush2.msra.mxu0 0.0
        %1140 = vmatprep.subr.mxu0 0.0
        %1141 = vmatpush2.msra.mxu0 0.0
        %1142 = vmatprep.subr.mxu0 0.0
        %1143 = vmatpush2.msra.mxu0 0.0
        %1144 = vmatprep.subr.mxu0 0.0
        %1145 = vmatpush2.msra.mxu0 0.0
        %1146 = vmatprep.subr.mxu0 0.0
        %1147 = vmatpush2.msra.mxu0 0.0
        %1148 = vmatprep.subr.mxu0 0.0
        %1149 = vmatpush2.msra.mxu0 0.0
        %1150 = vmatprep.subr.mxu0 0.0
        %1151 = vmatpush2.msra.mxu0 0.0
        %1152 = vmatprep.subr.mxu0 0.0
        %1153 = vmatpush2.msra.mxu0 0.0
        %1154 = vmatprep.subr.mxu0 0.0
        %1155 = vmatpush2.msra.mxu0 0.0
        %1156 = vmatprep.subr.mxu0 0.0
        %1157 = vmatpush2.msra.mxu0 0.0
        %1158 = vmatprep.subr.mxu0 0.0
        %1159 = vmatpush2.msra.mxu0 0.0
        %1160 = vmatprep.subr.mxu0 0.0
        %1161 = vmatpush2.msra.mxu0 0.0
        %1162 = vmatprep.subr.mxu0 0.0
        %1163 = vmatpush2.msra.mxu0 0.0
        %1164 = vmatprep.subr.mxu0 0.0
        %1165 = vmatpush2.msra.mxu0 0.0
        %1166 = vmatprep.subr.mxu0 0.0
        %1167 = vmatpush2.msra.mxu0 0.0
        %1168 = vmatprep.subr.mxu0 0.0
        %1169 = vmatpush2.msra.mxu0 0.0
        %1170 = vmatprep.mubr.f32.mxu0 0.0
        %1171 = vmatmul.mubr.f32.gmra.mxu0 %v1104
        %v1172 = vpop.f32.mrf.mxu0
        %v1173 = vadd.f32 %v829, %v1172
        %v1174 = vpop.f32.mrf.mxu0
        %1175 = vdwg.mxu0
        %v1176 = vsel %vm959, %v814, 0
        %1178 = vmatprep.subr.mxu0 0.0
        %1179 = vmatpush1.msra.mxu0 0.0
        %1180 = vmatprep.subr.mxu0 0.0
        %1181 = vmatpush1.msra.mxu0 0.0
        %1182 = vmatprep.subr.mxu0 0.0
        %1183 = vmatpush1.msra.mxu0 0.0
        %1184 = vmatprep.subr.mxu0 0.0
        %1185 = vmatpush1.msra.mxu0 0.0
        %1186 = vmatprep.subr.mxu0 0.0
        %1187 = vmatpush1.msra.mxu0 0.0
        %1188 = vmatprep.subr.mxu0 0.0
        %1189 = vmatpush1.msra.mxu0 0.0
        %1190 = vmatprep.subr.mxu0 0.0
        %1191 = vmatpush1.msra.mxu0 0.0
        %1192 = vmatprep.subr.mxu0 0.0
        %1193 = vmatpush1.msra.mxu0 0.0
        %1194 = vmatprep.subr.mxu0 0.0
        %1195 = vmatpush1.msra.mxu0 0.0
        %1196 = vmatprep.subr.mxu0 0.0
        %1197 = vmatpush1.msra.mxu0 0.0
        %1198 = vmatprep.subr.mxu0 0.0
        %1199 = vmatpush1.msra.mxu0 0.0
        %1200 = vmatprep.subr.mxu0 0.0
        %1201 = vmatpush1.msra.mxu0 0.0
        %1202 = vmatprep.subr.mxu0 0.0
        %1203 = vmatpush1.msra.mxu0 0.0
        %1204 = vmatprep.subr.mxu0 0.0
        %1205 = vmatpush1.msra.mxu0 0.0
        %1206 = vmatprep.subr.mxu0 0.0
        %1207 = vmatpush1.msra.mxu0 0.0
        %1208 = vmatprep.subr.mxu0 0.0
        %1209 = vmatpush1.msra.mxu0 %v943
        %1210 = vmatprep.subr.mxu0 0.0
        %1211 = vmatpush2.msra.mxu0 0.0
        %1212 = vmatprep.subr.mxu0 0.0
        %1213 = vmatpush2.msra.mxu0 0.0
        %1214 = vmatprep.subr.mxu0 0.0
        %1215 = vmatpush2.msra.mxu0 0.0
        %1216 = vmatprep.subr.mxu0 0.0
        %1217 = vmatpush2.msra.mxu0 0.0
        %1218 = vmatprep.subr.mxu0 0.0
        %1219 = vmatpush2.msra.mxu0 0.0
        %1220 = vmatprep.subr.mxu0 0.0
        %1221 = vmatpush2.msra.mxu0 0.0
        %1222 = vmatprep.subr.mxu0 0.0
        %1223 = vmatpush2.msra.mxu0 0.0
        %1224 = vmatprep.subr.mxu0 0.0
        %1225 = vmatpush2.msra.mxu0 0.0
        %1226 = vmatprep.subr.mxu0 0.0
        %1227 = vmatpush2.msra.mxu0 0.0
        %1228 = vmatprep.subr.mxu0 0.0
        %1229 = vmatpush2.msra.mxu0 0.0
        %1230 = vmatprep.subr.mxu0 0.0
        %1231 = vmatpush2.msra.mxu0 0.0
        %1232 = vmatprep.subr.mxu0 0.0
        %1233 = vmatpush2.msra.mxu0 0.0
        %1234 = vmatprep.subr.mxu0 0.0
        %1235 = vmatpush2.msra.mxu0 0.0
        %1236 = vmatprep.subr.mxu0 0.0
        %1237 = vmatpush2.msra.mxu0 0.0
        %1238 = vmatprep.subr.mxu0 0.0
        %1239 = vmatpush2.msra.mxu0 0.0
        %1240 = vmatprep.subr.mxu0 0.0
        %1241 = vmatpush2.msra.mxu0 0.0
        %1242 = vmatprep.mubr.f32.mxu0 0.0
        %1243 = vmatmul.mubr.f32.gmra.mxu0 %v1176
        %v1244 = vpop.f32.mrf.mxu0
        %v1245 = vadd.f32 %v829, %v1244
        %v1246 = vpop.f32.mrf.mxu0
        %1247 = vdwg.mxu0
        %vm1248 = vcmask 61440
        %v1249 = vsel %vm1248, %v1029, -inf
        %1250 = vmax.xlane.f32.xlu0 %v1249
        %v1251 = vpop.xlane.xlu0 %1250
        %v1252 = vsel %vm1248, %v1101, -inf
        %1253 = vmax.xlane.f32.xlu0 %v1252
        %v1254 = vpop.xlane.xlu0 %1253
        %v1255 = vsel %vm1248, %v1173, -inf
        %1256 = vmax.xlane.f32.xlu0 %v1255
        %v1257 = vpop.xlane.xlu0 %1256
        %v1258 = vsel %vm1248, %v1245, -inf
        %1259 = vmax.xlane.f32.xlu0 %v1258
        %v1260 = vpop.xlane.xlu0 %1259
        %v1261 = vsub.f32 %v1029, %v1251
        %v1262 = vsub.f32 %v1101, %v1254
        %v1263 = vsub.f32 %v1173, %v1257
        %v1264 = vsub.f32 %v1245, %v1260
        %v1265 = vmul.f32 %v1261, 1.442695
        %v1266 = vpow.pop %v1265
        %v1267 = vmul.f32 %v1262, 1.442695
        %v1268 = vpow.pop %v1267
        %v1269 = vmul.f32 %v1263, 1.442695
        %v1270 = vpow.pop %v1269
        %v1271 = vmul.f32 %v1264, 1.442695
        %v1272 = vpow.pop %v1271
        %v1273 = vsel %vm1248, %v1266, 0.0
        %1274 = vadd.xlane.f32.xlu0 %v1273
        %v1275 = vpop.xlane.xlu0 %1274
        %v1276 = vsel %vm1248, %v1268, 0.0
        %1277 = vadd.xlane.f32.xlu0 %v1276
        %v1278 = vpop.xlane.xlu0 %1277
        %v1279 = vsel %vm1248, %v1270, 0.0
        %1280 = vadd.xlane.f32.xlu0 %v1279
        %v1281 = vpop.xlane.xlu0 %1280
        %v1282 = vsel %vm1248, %v1272, 0.0
        %1283 = vadd.xlane.f32.xlu0 %v1282
        %v1284 = vpop.xlane.xlu0 %1283
        %v1285 = vrcp.pop %v1275
        %v1286 = vrcp.pop %v1278
        %v1287 = vrcp.pop %v1281
        %v1288 = vrcp.pop %v1284
        %v1289 = vmul.f32 %v1266, %v1285
        %v1290 = vmul.f32 %v1268, %v1286
        %v1291 = vmul.f32 %v1270, %v1287
        %v1292 = vmul.f32 %v1272, %v1288
        %1293 = vrot.lane.b32.xlu0 %v721, 96
        %v1294 = vpop.permute.xlu0 %1293
        %1295 = vrot.lane.b32.xlu0 %v817, 96
        %v1296 = vpop.permute.xlu0 %1295
        %1297 = vrot.lane.b32.xlu0 %v820, 96
        %v1298 = vpop.permute.xlu0 %1297
        %1299 = vrot.lane.b32.xlu0 %v823, 96
        %v1300 = vpop.permute.xlu0 %1299
        %1305 = vxpose.xlu0.b32.start [1/16] %v1294, 128
        %1306 = vxpose.xlu0.b32.cont [2/16] 0.0, 128
        %1307 = vxpose.xlu0.b32.cont [3/16] 0.0, 128
        %1308 = vxpose.xlu0.b32.cont [4/16] 0.0, 128
        %1309 = vxpose.xlu0.b32.cont [5/16] 0.0, 128
        %1310 = vxpose.xlu0.b32.cont [6/16] 0.0, 128
        %1311 = vxpose.xlu0.b32.cont [7/16] 0.0, 128
        %1312 = vxpose.xlu0.b32.cont [8/16] 0.0, 128
        %1313 = vxpose.xlu0.b32.cont [9/16] 0.0, 128
        %1314 = vxpose.xlu0.b32.cont [10/16] 0.0, 128
        %1315 = vxpose.xlu0.b32.cont [11/16] 0.0, 128
        %1316 = vxpose.xlu0.b32.cont [12/16] 0.0, 128
        %1317 = vxpose.xlu0.b32.cont [13/16] 0.0, 128
        %1318 = vxpose.xlu0.b32.cont [14/16] 0.0, 128
        %1319 = vxpose.xlu0.b32.cont [15/16] 0.0, 128
        %1320 = vxpose.xlu0.b32.end [16/16] 0.0, 128
        %v1321 = vpop.trf.xlu0
        %v1322 = vpop.trf.xlu0
        %v1323 = vpop.trf.xlu0
        %v1324 = vpop.trf.xlu0
        %v1325 = vpop.trf.xlu0
        %v1326 = vpop.trf.xlu0
        %v1327 = vpop.trf.xlu0
        %v1328 = vpop.trf.xlu0
        %v1329 = vpop.trf.xlu0
        %v1330 = vpop.trf.xlu0
        %v1331 = vpop.trf.xlu0
        %v1332 = vpop.trf.xlu0
        %v1333 = vpop.trf.xlu0
        %v1334 = vpop.trf.xlu0
        %v1335 = vpop.trf.xlu0
        %v1336 = vpop.trf.xlu0
        %1337 = vxpose.xlu0.b32.start [1/16] %v1296, 128
        %1338 = vxpose.xlu0.b32.cont [2/16] 0.0, 128
        %1339 = vxpose.xlu0.b32.cont [3/16] 0.0, 128
        %1340 = vxpose.xlu0.b32.cont [4/16] 0.0, 128
        %1341 = vxpose.xlu0.b32.cont [5/16] 0.0, 128
        %1342 = vxpose.xlu0.b32.cont [6/16] 0.0, 128
        %1343 = vxpose.xlu0.b32.cont [7/16] 0.0, 128
        %1344 = vxpose.xlu0.b32.cont [8/16] 0.0, 128
        %1345 = vxpose.xlu0.b32.cont [9/16] 0.0, 128
        %1346 = vxpose.xlu0.b32.cont [10/16] 0.0, 128
        %1347 = vxpose.xlu0.b32.cont [11/16] 0.0, 128
        %1348 = vxpose.xlu0.b32.cont [12/16] 0.0, 128
        %1349 = vxpose.xlu0.b32.cont [13/16] 0.0, 128
        %1350 = vxpose.xlu0.b32.cont [14/16] 0.0, 128
        %1351 = vxpose.xlu0.b32.cont [15/16] 0.0, 128
        %1352 = vxpose.xlu0.b32.end [16/16] 0.0, 128
        %v1353 = vpop.trf.xlu0
        %v1354 = vpop.trf.xlu0
        %v1355 = vpop.trf.xlu0
        %v1356 = vpop.trf.xlu0
        %v1357 = vpop.trf.xlu0
        %v1358 = vpop.trf.xlu0
        %v1359 = vpop.trf.xlu0
        %v1360 = vpop.trf.xlu0
        %v1361 = vpop.trf.xlu0
        %v1362 = vpop.trf.xlu0
        %v1363 = vpop.trf.xlu0
        %v1364 = vpop.trf.xlu0
        %v1365 = vpop.trf.xlu0
        %v1366 = vpop.trf.xlu0
        %v1367 = vpop.trf.xlu0
        %v1368 = vpop.trf.xlu0
        %1369 = vxpose.xlu0.b32.start [1/16] %v1298, 128
        %1370 = vxpose.xlu0.b32.cont [2/16] 0.0, 128
        %1371 = vxpose.xlu0.b32.cont [3/16] 0.0, 128
        %1372 = vxpose.xlu0.b32.cont [4/16] 0.0, 128
        %1373 = vxpose.xlu0.b32.cont [5/16] 0.0, 128
        %1374 = vxpose.xlu0.b32.cont [6/16] 0.0, 128
        %1375 = vxpose.xlu0.b32.cont [7/16] 0.0, 128
        %1376 = vxpose.xlu0.b32.cont [8/16] 0.0, 128
        %1377 = vxpose.xlu0.b32.cont [9/16] 0.0, 128
        %1378 = vxpose.xlu0.b32.cont [10/16] 0.0, 128
        %1379 = vxpose.xlu0.b32.cont [11/16] 0.0, 128
        %1380 = vxpose.xlu0.b32.cont [12/16] 0.0, 128
        %1381 = vxpose.xlu0.b32.cont [13/16] 0.0, 128
        %1382 = vxpose.xlu0.b32.cont [14/16] 0.0, 128
        %1383 = vxpose.xlu0.b32.cont [15/16] 0.0, 128
        %1384 = vxpose.xlu0.b32.end [16/16] 0.0, 128
        %v1385 = vpop.trf.xlu0
        %v1386 = vpop.trf.xlu0
        %v1387 = vpop.trf.xlu0
        %v1388 = vpop.trf.xlu0
        %v1389 = vpop.trf.xlu0
        %v1390 = vpop.trf.xlu0
        %v1391 = vpop.trf.xlu0
        %v1392 = vpop.trf.xlu0
        %v1393 = vpop.trf.xlu0
        %v1394 = vpop.trf.xlu0
        %v1395 = vpop.trf.xlu0
        %v1396 = vpop.trf.xlu0
        %v1397 = vpop.trf.xlu0
        %v1398 = vpop.trf.xlu0
        %v1399 = vpop.trf.xlu0
        %v1400 = vpop.trf.xlu0
        %1401 = vxpose.xlu0.b32.start [1/16] %v1300, 128
        %1402 = vxpose.xlu0.b32.cont [2/16] 0.0, 128
        %1403 = vxpose.xlu0.b32.cont [3/16] 0.0, 128
        %1404 = vxpose.xlu0.b32.cont [4/16] 0.0, 128
        %1405 = vxpose.xlu0.b32.cont [5/16] 0.0, 128
        %1406 = vxpose.xlu0.b32.cont [6/16] 0.0, 128
        %1407 = vxpose.xlu0.b32.cont [7/16] 0.0, 128
        %1408 = vxpose.xlu0.b32.cont [8/16] 0.0, 128
        %1409 = vxpose.xlu0.b32.cont [9/16] 0.0, 128
        %1410 = vxpose.xlu0.b32.cont [10/16] 0.0, 128
        %1411 = vxpose.xlu0.b32.cont [11/16] 0.0, 128
        %1412 = vxpose.xlu0.b32.cont [12/16] 0.0, 128
        %1413 = vxpose.xlu0.b32.cont [13/16] 0.0, 128
        %1414 = vxpose.xlu0.b32.cont [14/16] 0.0, 128
        %1415 = vxpose.xlu0.b32.cont [15/16] 0.0, 128
        %1416 = vxpose.xlu0.b32.end [16/16] 0.0, 128
        %v1417 = vpop.trf.xlu0
        %v1418 = vpop.trf.xlu0
        %v1419 = vpop.trf.xlu0
        %v1420 = vpop.trf.xlu0
        %v1421 = vpop.trf.xlu0
        %v1422 = vpop.trf.xlu0
        %v1423 = vpop.trf.xlu0
        %v1424 = vpop.trf.xlu0
        %v1425 = vpop.trf.xlu0
        %v1426 = vpop.trf.xlu0
        %v1427 = vpop.trf.xlu0
        %v1428 = vpop.trf.xlu0
        %v1429 = vpop.trf.xlu0
        %v1430 = vpop.trf.xlu0
        %v1431 = vpop.trf.xlu0
        %v1432 = vpop.trf.xlu0
        %v1434 = vsel %vm959, %v1321, 0
        %v1437 = vsel %vm959, %v1289, 0
        %1439 = vmatprep.subr.mxu0 0.0
        %1440 = vmatpush1.xpose.msra.mxu0 0.0
        %1441 = vmatprep.subr.mxu0 0.0
        %1442 = vmatpush1.xpose.msra.mxu0 0.0
        %1443 = vmatprep.subr.mxu0 0.0
        %1444 = vmatpush1.xpose.msra.mxu0 0.0
        %1445 = vmatprep.subr.mxu0 0.0
        %1446 = vmatpush1.xpose.msra.mxu0 0.0
        %1447 = vmatprep.subr.mxu0 0.0
        %1448 = vmatpush1.xpose.msra.mxu0 0.0
        %1449 = vmatprep.subr.mxu0 0.0
        %1450 = vmatpush1.xpose.msra.mxu0 0.0
        %1451 = vmatprep.subr.mxu0 0.0
        %1452 = vmatpush1.xpose.msra.mxu0 0.0
        %1453 = vmatprep.subr.mxu0 0.0
        %1454 = vmatpush1.xpose.msra.mxu0 0.0
        %1455 = vmatprep.subr.mxu0 0.0
        %1456 = vmatpush1.xpose.msra.mxu0 0.0
        %1457 = vmatprep.subr.mxu0 0.0
        %1458 = vmatpush1.xpose.msra.mxu0 0.0
        %1459 = vmatprep.subr.mxu0 0.0
        %1460 = vmatpush1.xpose.msra.mxu0 0.0
        %1461 = vmatprep.subr.mxu0 0.0
        %1462 = vmatpush1.xpose.msra.mxu0 0.0
        %1463 = vmatprep.subr.mxu0 0.0
        %1464 = vmatpush1.xpose.msra.mxu0 0.0
        %1465 = vmatprep.subr.mxu0 0.0
        %1466 = vmatpush1.xpose.msra.mxu0 0.0
        %1467 = vmatprep.subr.mxu0 0.0
        %1468 = vmatpush1.xpose.msra.mxu0 0.0
        %1469 = vmatprep.subr.mxu0 0.0
        %1470 = vmatpush1.xpose.msra.mxu0 %v1437
        %1471 = vmatprep.subr.mxu0 0.0
        %1472 = vmatpush2.xpose.msra.mxu0 0.0
        %1473 = vmatprep.subr.mxu0 0.0
        %1474 = vmatpush2.xpose.msra.mxu0 0.0
        %1475 = vmatprep.subr.mxu0 0.0
        %1476 = vmatpush2.xpose.msra.mxu0 0.0
        %1477 = vmatprep.subr.mxu0 0.0
        %1478 = vmatpush2.xpose.msra.mxu0 0.0
        %1479 = vmatprep.subr.mxu0 0.0
        %1480 = vmatpush2.xpose.msra.mxu0 0.0
        %1481 = vmatprep.subr.mxu0 0.0
        %1482 = vmatpush2.xpose.msra.mxu0 0.0
        %1483 = vmatprep.subr.mxu0 0.0
        %1484 = vmatpush2.xpose.msra.mxu0 0.0
        %1485 = vmatprep.subr.mxu0 0.0
        %1486 = vmatpush2.xpose.msra.mxu0 0.0
        %1487 = vmatprep.subr.mxu0 0.0
        %1488 = vmatpush2.xpose.msra.mxu0 0.0
        %1489 = vmatprep.subr.mxu0 0.0
        %1490 = vmatpush2.xpose.msra.mxu0 0.0
        %1491 = vmatprep.subr.mxu0 0.0
        %1492 = vmatpush2.xpose.msra.mxu0 0.0
        %1493 = vmatprep.subr.mxu0 0.0
        %1494 = vmatpush2.xpose.msra.mxu0 0.0
        %1495 = vmatprep.subr.mxu0 0.0
        %1496 = vmatpush2.xpose.msra.mxu0 0.0
        %1497 = vmatprep.subr.mxu0 0.0
        %1498 = vmatpush2.xpose.msra.mxu0 0.0
        %1499 = vmatprep.subr.mxu0 0.0
        %1500 = vmatpush2.xpose.msra.mxu0 0.0
        %1501 = vmatprep.subr.mxu0 0.0
        %1502 = vmatpush2.xpose.msra.mxu0 0.0
        %1503 = vmatprep.mubr.f32.mxu0 0.0
        %1504 = vmatmul.mubr.f32.gmra.mxu0 %v1434
        %v1505 = vpop.f32.mrf.mxu0
        %v1506 = vadd.f32 0.0, %v1505
        %v1507 = vpop.f32.mrf.mxu0
        %1508 = vdwg.mxu0
        %v1510 = vsel %vm959, %v1353, 0
        %v1513 = vsel %vm959, %v1290, 0
        %1515 = vmatprep.subr.mxu0 0.0
        %1516 = vmatpush1.xpose.msra.mxu0 0.0
        %1517 = vmatprep.subr.mxu0 0.0
        %1518 = vmatpush1.xpose.msra.mxu0 0.0
        %1519 = vmatprep.subr.mxu0 0.0
        %1520 = vmatpush1.xpose.msra.mxu0 0.0
        %1521 = vmatprep.subr.mxu0 0.0
        %1522 = vmatpush1.xpose.msra.mxu0 0.0
        %1523 = vmatprep.subr.mxu0 0.0
        %1524 = vmatpush1.xpose.msra.mxu0 0.0
        %1525 = vmatprep.subr.mxu0 0.0
        %1526 = vmatpush1.xpose.msra.mxu0 0.0
        %1527 = vmatprep.subr.mxu0 0.0
        %1528 = vmatpush1.xpose.msra.mxu0 0.0
        %1529 = vmatprep.subr.mxu0 0.0
        %1530 = vmatpush1.xpose.msra.mxu0 0.0
        %1531 = vmatprep.subr.mxu0 0.0
        %1532 = vmatpush1.xpose.msra.mxu0 0.0
        %1533 = vmatprep.subr.mxu0 0.0
        %1534 = vmatpush1.xpose.msra.mxu0 0.0
        %1535 = vmatprep.subr.mxu0 0.0
        %1536 = vmatpush1.xpose.msra.mxu0 0.0
        %1537 = vmatprep.subr.mxu0 0.0
        %1538 = vmatpush1.xpose.msra.mxu0 0.0
        %1539 = vmatprep.subr.mxu0 0.0
        %1540 = vmatpush1.xpose.msra.mxu0 0.0
        %1541 = vmatprep.subr.mxu0 0.0
        %1542 = vmatpush1.xpose.msra.mxu0 0.0
        %1543 = vmatprep.subr.mxu0 0.0
        %1544 = vmatpush1.xpose.msra.mxu0 0.0
        %1545 = vmatprep.subr.mxu0 0.0
        %1546 = vmatpush1.xpose.msra.mxu0 %v1513
        %1547 = vmatprep.subr.mxu0 0.0
        %1548 = vmatpush2.xpose.msra.mxu0 0.0
        %1549 = vmatprep.subr.mxu0 0.0
        %1550 = vmatpush2.xpose.msra.mxu0 0.0
        %1551 = vmatprep.subr.mxu0 0.0
        %1552 = vmatpush2.xpose.msra.mxu0 0.0
        %1553 = vmatprep.subr.mxu0 0.0
        %1554 = vmatpush2.xpose.msra.mxu0 0.0
        %1555 = vmatprep.subr.mxu0 0.0
        %1556 = vmatpush2.xpose.msra.mxu0 0.0
        %1557 = vmatprep.subr.mxu0 0.0
        %1558 = vmatpush2.xpose.msra.mxu0 0.0
        %1559 = vmatprep.subr.mxu0 0.0
        %1560 = vmatpush2.xpose.msra.mxu0 0.0
        %1561 = vmatprep.subr.mxu0 0.0
        %1562 = vmatpush2.xpose.msra.mxu0 0.0
        %1563 = vmatprep.subr.mxu0 0.0
        %1564 = vmatpush2.xpose.msra.mxu0 0.0
        %1565 = vmatprep.subr.mxu0 0.0
        %1566 = vmatpush2.xpose.msra.mxu0 0.0
        %1567 = vmatprep.subr.mxu0 0.0
        %1568 = vmatpush2.xpose.msra.mxu0 0.0
        %1569 = vmatprep.subr.mxu0 0.0
        %1570 = vmatpush2.xpose.msra.mxu0 0.0
        %1571 = vmatprep.subr.mxu0 0.0
        %1572 = vmatpush2.xpose.msra.mxu0 0.0
        %1573 = vmatprep.subr.mxu0 0.0
        %1574 = vmatpush2.xpose.msra.mxu0 0.0
        %1575 = vmatprep.subr.mxu0 0.0
        %1576 = vmatpush2.xpose.msra.mxu0 0.0
        %1577 = vmatprep.subr.mxu0 0.0
        %1578 = vmatpush2.xpose.msra.mxu0 0.0
        %1579 = vmatprep.mubr.f32.mxu0 0.0
        %1580 = vmatmul.mubr.f32.gmra.mxu0 %v1510
        %v1581 = vpop.f32.mrf.mxu0
        %v1582 = vadd.f32 0.0, %v1581
        %v1583 = vpop.f32.mrf.mxu0
        %1584 = vdwg.mxu0
        %v1586 = vsel %vm959, %v1385, 0
        %v1589 = vsel %vm959, %v1291, 0
        %1591 = vmatprep.subr.mxu0 0.0
        %1592 = vmatpush1.xpose.msra.mxu0 0.0
        %1593 = vmatprep.subr.mxu0 0.0
        %1594 = vmatpush1.xpose.msra.mxu0 0.0
        %1595 = vmatprep.subr.mxu0 0.0
        %1596 = vmatpush1.xpose.msra.mxu0 0.0
        %1597 = vmatprep.subr.mxu0 0.0
        %1598 = vmatpush1.xpose.msra.mxu0 0.0
        %1599 = vmatprep.subr.mxu0 0.0
        %1600 = vmatpush1.xpose.msra.mxu0 0.0
        %1601 = vmatprep.subr.mxu0 0.0
        %1602 = vmatpush1.xpose.msra.mxu0 0.0
        %1603 = vmatprep.subr.mxu0 0.0
        %1604 = vmatpush1.xpose.msra.mxu0 0.0
        %1605 = vmatprep.subr.mxu0 0.0
        %1606 = vmatpush1.xpose.msra.mxu0 0.0
        %1607 = vmatprep.subr.mxu0 0.0
        %1608 = vmatpush1.xpose.msra.mxu0 0.0
        %1609 = vmatprep.subr.mxu0 0.0
        %1610 = vmatpush1.xpose.msra.mxu0 0.0
        %1611 = vmatprep.subr.mxu0 0.0
        %1612 = vmatpush1.xpose.msra.mxu0 0.0
        %1613 = vmatprep.subr.mxu0 0.0
        %1614 = vmatpush1.xpose.msra.mxu0 0.0
        %1615 = vmatprep.subr.mxu0 0.0
        %1616 = vmatpush1.xpose.msra.mxu0 0.0
        %1617 = vmatprep.subr.mxu0 0.0
        %1618 = vmatpush1.xpose.msra.mxu0 0.0
        %1619 = vmatprep.subr.mxu0 0.0
        %1620 = vmatpush1.xpose.msra.mxu0 0.0
        %1621 = vmatprep.subr.mxu0 0.0
        %1622 = vmatpush1.xpose.msra.mxu0 %v1589
        %1623 = vmatprep.subr.mxu0 0.0
        %1624 = vmatpush2.xpose.msra.mxu0 0.0
        %1625 = vmatprep.subr.mxu0 0.0
        %1626 = vmatpush2.xpose.msra.mxu0 0.0
        %1627 = vmatprep.subr.mxu0 0.0
        %1628 = vmatpush2.xpose.msra.mxu0 0.0
        %1629 = vmatprep.subr.mxu0 0.0
        %1630 = vmatpush2.xpose.msra.mxu0 0.0
        %1631 = vmatprep.subr.mxu0 0.0
        %1632 = vmatpush2.xpose.msra.mxu0 0.0
        %1633 = vmatprep.subr.mxu0 0.0
        %1634 = vmatpush2.xpose.msra.mxu0 0.0
        %1635 = vmatprep.subr.mxu0 0.0
        %1636 = vmatpush2.xpose.msra.mxu0 0.0
        %1637 = vmatprep.subr.mxu0 0.0
        %1638 = vmatpush2.xpose.msra.mxu0 0.0
        %1639 = vmatprep.subr.mxu0 0.0
        %1640 = vmatpush2.xpose.msra.mxu0 0.0
        %1641 = vmatprep.subr.mxu0 0.0
        %1642 = vmatpush2.xpose.msra.mxu0 0.0
        %1643 = vmatprep.subr.mxu0 0.0
        %1644 = vmatpush2.xpose.msra.mxu0 0.0
        %1645 = vmatprep.subr.mxu0 0.0
        %1646 = vmatpush2.xpose.msra.mxu0 0.0
        %1647 = vmatprep.subr.mxu0 0.0
        %1648 = vmatpush2.xpose.msra.mxu0 0.0
        %1649 = vmatprep.subr.mxu0 0.0
        %1650 = vmatpush2.xpose.msra.mxu0 0.0
        %1651 = vmatprep.subr.mxu0 0.0
        %1652 = vmatpush2.xpose.msra.mxu0 0.0
        %1653 = vmatprep.subr.mxu0 0.0
        %1654 = vmatpush2.xpose.msra.mxu0 0.0
        %1655 = vmatprep.mubr.f32.mxu0 0.0
        %1656 = vmatmul.mubr.f32.gmra.mxu0 %v1586
        %v1657 = vpop.f32.mrf.mxu0
        %v1658 = vadd.f32 0.0, %v1657
        %v1659 = vpop.f32.mrf.mxu0
        %1660 = vdwg.mxu0
        %v1662 = vsel %vm959, %v1417, 0
        %v1665 = vsel %vm959, %v1292, 0
        %1667 = vmatprep.subr.mxu0 0.0
        %1668 = vmatpush1.xpose.msra.mxu0 0.0
        %1669 = vmatprep.subr.mxu0 0.0
        %1670 = vmatpush1.xpose.msra.mxu0 0.0
        %1671 = vmatprep.subr.mxu0 0.0
        %1672 = vmatpush1.xpose.msra.mxu0 0.0
        %1673 = vmatprep.subr.mxu0 0.0
        %1674 = vmatpush1.xpose.msra.mxu0 0.0
        %1675 = vmatprep.subr.mxu0 0.0
        %1676 = vmatpush1.xpose.msra.mxu0 0.0
        %1677 = vmatprep.subr.mxu0 0.0
        %1678 = vmatpush1.xpose.msra.mxu0 0.0
        %1679 = vmatprep.subr.mxu0 0.0
        %1680 = vmatpush1.xpose.msra.mxu0 0.0
        %1681 = vmatprep.subr.mxu0 0.0
        %1682 = vmatpush1.xpose.msra.mxu0 0.0
        %1683 = vmatprep.subr.mxu0 0.0
        %1684 = vmatpush1.xpose.msra.mxu0 0.0
        %1685 = vmatprep.subr.mxu0 0.0
        %1686 = vmatpush1.xpose.msra.mxu0 0.0
        %1687 = vmatprep.subr.mxu0 0.0
        %1688 = vmatpush1.xpose.msra.mxu0 0.0
        %1689 = vmatprep.subr.mxu0 0.0
        %1690 = vmatpush1.xpose.msra.mxu0 0.0
        %1691 = vmatprep.subr.mxu0 0.0
        %1692 = vmatpush1.xpose.msra.mxu0 0.0
        %1693 = vmatprep.subr.mxu0 0.0
        %1694 = vmatpush1.xpose.msra.mxu0 0.0
        %1695 = vmatprep.subr.mxu0 0.0
        %1696 = vmatpush1.xpose.msra.mxu0 0.0
        %1697 = vmatprep.subr.mxu0 0.0
        %1698 = vmatpush1.xpose.msra.mxu0 %v1665
        %1699 = vmatprep.subr.mxu0 0.0
        %1700 = vmatpush2.xpose.msra.mxu0 0.0
        %1701 = vmatprep.subr.mxu0 0.0
        %1702 = vmatpush2.xpose.msra.mxu0 0.0
        %1703 = vmatprep.subr.mxu0 0.0
        %1704 = vmatpush2.xpose.msra.mxu0 0.0
        %1705 = vmatprep.subr.mxu0 0.0
        %1706 = vmatpush2.xpose.msra.mxu0 0.0
        %1707 = vmatprep.subr.mxu0 0.0
        %1708 = vmatpush2.xpose.msra.mxu0 0.0
        %1709 = vmatprep.subr.mxu0 0.0
        %1710 = vmatpush2.xpose.msra.mxu0 0.0
        %1711 = vmatprep.subr.mxu0 0.0
        %1712 = vmatpush2.xpose.msra.mxu0 0.0
        %1713 = vmatprep.subr.mxu0 0.0
        %1714 = vmatpush2.xpose.msra.mxu0 0.0
        %1715 = vmatprep.subr.mxu0 0.0
        %1716 = vmatpush2.xpose.msra.mxu0 0.0
        %1717 = vmatprep.subr.mxu0 0.0
        %1718 = vmatpush2.xpose.msra.mxu0 0.0
        %1719 = vmatprep.subr.mxu0 0.0
        %1720 = vmatpush2.xpose.msra.mxu0 0.0
        %1721 = vmatprep.subr.mxu0 0.0
        %1722 = vmatpush2.xpose.msra.mxu0 0.0
        %1723 = vmatprep.subr.mxu0 0.0
        %1724 = vmatpush2.xpose.msra.mxu0 0.0
        %1725 = vmatprep.subr.mxu0 0.0
        %1726 = vmatpush2.xpose.msra.mxu0 0.0
        %1727 = vmatprep.subr.mxu0 0.0
        %1728 = vmatpush2.xpose.msra.mxu0 0.0
        %1729 = vmatprep.subr.mxu0 0.0
        %1730 = vmatpush2.xpose.msra.mxu0 0.0
        %1731 = vmatprep.mubr.f32.mxu0 0.0
        %1732 = vmatmul.mubr.f32.gmra.mxu0 %v1662
        %v1733 = vpop.f32.mrf.mxu0
        %v1734 = vadd.f32 0.0, %v1733
        %v1735 = vpop.f32.mrf.mxu0
        %1736 = vdwg.mxu0
        %1737 = vxpose.xlu0.b32.start [1/16] %v1506, 128
        %1738 = vxpose.xlu0.b32.cont [2/16] 0.0, 128
        %1739 = vxpose.xlu0.b32.cont [3/16] 0.0, 128
        %1740 = vxpose.xlu0.b32.cont [4/16] 0.0, 128
        %1741 = vxpose.xlu0.b32.cont [5/16] 0.0, 128
        %1742 = vxpose.xlu0.b32.cont [6/16] 0.0, 128
        %1743 = vxpose.xlu0.b32.cont [7/16] 0.0, 128
        %1744 = vxpose.xlu0.b32.cont [8/16] 0.0, 128
        %1745 = vxpose.xlu0.b32.cont [9/16] 0.0, 128
        %1746 = vxpose.xlu0.b32.cont [10/16] 0.0, 128
        %1747 = vxpose.xlu0.b32.cont [11/16] 0.0, 128
        %1748 = vxpose.xlu0.b32.cont [12/16] 0.0, 128
        %1749 = vxpose.xlu0.b32.cont [13/16] 0.0, 128
        %1750 = vxpose.xlu0.b32.cont [14/16] 0.0, 128
        %1751 = vxpose.xlu0.b32.cont [15/16] 0.0, 128
        %1752 = vxpose.xlu0.b32.end [16/16] 0.0, 128
        %v1753 = vpop.trf.xlu0
        %v1754 = vpop.trf.xlu0
        %v1755 = vpop.trf.xlu0
        %v1756 = vpop.trf.xlu0
        %v1757 = vpop.trf.xlu0
        %v1758 = vpop.trf.xlu0
        %v1759 = vpop.trf.xlu0
        %v1760 = vpop.trf.xlu0
        %v1761 = vpop.trf.xlu0
        %v1762 = vpop.trf.xlu0
        %v1763 = vpop.trf.xlu0
        %v1764 = vpop.trf.xlu0
        %v1765 = vpop.trf.xlu0
        %v1766 = vpop.trf.xlu0
        %v1767 = vpop.trf.xlu0
        %v1768 = vpop.trf.xlu0
        %1769 = vxpose.xlu0.b32.start [1/16] %v1582, 128
        %1770 = vxpose.xlu0.b32.cont [2/16] 0.0, 128
        %1771 = vxpose.xlu0.b32.cont [3/16] 0.0, 128
        %1772 = vxpose.xlu0.b32.cont [4/16] 0.0, 128
        %1773 = vxpose.xlu0.b32.cont [5/16] 0.0, 128
        %1774 = vxpose.xlu0.b32.cont [6/16] 0.0, 128
        %1775 = vxpose.xlu0.b32.cont [7/16] 0.0, 128
        %1776 = vxpose.xlu0.b32.cont [8/16] 0.0, 128
        %1777 = vxpose.xlu0.b32.cont [9/16] 0.0, 128
        %1778 = vxpose.xlu0.b32.cont [10/16] 0.0, 128
        %1779 = vxpose.xlu0.b32.cont [11/16] 0.0, 128
        %1780 = vxpose.xlu0.b32.cont [12/16] 0.0, 128
        %1781 = vxpose.xlu0.b32.cont [13/16] 0.0, 128
        %1782 = vxpose.xlu0.b32.cont [14/16] 0.0, 128
        %1783 = vxpose.xlu0.b32.cont [15/16] 0.0, 128
        %1784 = vxpose.xlu0.b32.end [16/16] 0.0, 128
        %v1785 = vpop.trf.xlu0
        %v1786 = vpop.trf.xlu0
        %v1787 = vpop.trf.xlu0
        %v1788 = vpop.trf.xlu0
        %v1789 = vpop.trf.xlu0
        %v1790 = vpop.trf.xlu0
        %v1791 = vpop.trf.xlu0
        %v1792 = vpop.trf.xlu0
        %v1793 = vpop.trf.xlu0
        %v1794 = vpop.trf.xlu0
        %v1795 = vpop.trf.xlu0
        %v1796 = vpop.trf.xlu0
        %v1797 = vpop.trf.xlu0
        %v1798 = vpop.trf.xlu0
        %v1799 = vpop.trf.xlu0
        %v1800 = vpop.trf.xlu0
        %1801 = vxpose.xlu0.b32.start [1/16] %v1658, 128
        %1802 = vxpose.xlu0.b32.cont [2/16] 0.0, 128
        %1803 = vxpose.xlu0.b32.cont [3/16] 0.0, 128
        %1804 = vxpose.xlu0.b32.cont [4/16] 0.0, 128
        %1805 = vxpose.xlu0.b32.cont [5/16] 0.0, 128
        %1806 = vxpose.xlu0.b32.cont [6/16] 0.0, 128
        %1807 = vxpose.xlu0.b32.cont [7/16] 0.0, 128
        %1808 = vxpose.xlu0.b32.cont [8/16] 0.0, 128
        %1809 = vxpose.xlu0.b32.cont [9/16] 0.0, 128
        %1810 = vxpose.xlu0.b32.cont [10/16] 0.0, 128
        %1811 = vxpose.xlu0.b32.cont [11/16] 0.0, 128
        %1812 = vxpose.xlu0.b32.cont [12/16] 0.0, 128
        %1813 = vxpose.xlu0.b32.cont [13/16] 0.0, 128
        %1814 = vxpose.xlu0.b32.cont [14/16] 0.0, 128
        %1815 = vxpose.xlu0.b32.cont [15/16] 0.0, 128
        %1816 = vxpose.xlu0.b32.end [16/16] 0.0, 128
        %v1817 = vpop.trf.xlu0
        %v1818 = vpop.trf.xlu0
        %v1819 = vpop.trf.xlu0
        %v1820 = vpop.trf.xlu0
        %v1821 = vpop.trf.xlu0
        %v1822 = vpop.trf.xlu0
        %v1823 = vpop.trf.xlu0
        %v1824 = vpop.trf.xlu0
        %v1825 = vpop.trf.xlu0
        %v1826 = vpop.trf.xlu0
        %v1827 = vpop.trf.xlu0
        %v1828 = vpop.trf.xlu0
        %v1829 = vpop.trf.xlu0
        %v1830 = vpop.trf.xlu0
        %v1831 = vpop.trf.xlu0
        %v1832 = vpop.trf.xlu0
        %1833 = vxpose.xlu0.b32.start [1/16] %v1734, 128
        %1834 = vxpose.xlu0.b32.cont [2/16] 0.0, 128
        %1835 = vxpose.xlu0.b32.cont [3/16] 0.0, 128
        %1836 = vxpose.xlu0.b32.cont [4/16] 0.0, 128
        %1837 = vxpose.xlu0.b32.cont [5/16] 0.0, 128
        %1838 = vxpose.xlu0.b32.cont [6/16] 0.0, 128
        %1839 = vxpose.xlu0.b32.cont [7/16] 0.0, 128
        %1840 = vxpose.xlu0.b32.cont [8/16] 0.0, 128
        %1841 = vxpose.xlu0.b32.cont [9/16] 0.0, 128
        %1842 = vxpose.xlu0.b32.cont [10/16] 0.0, 128
        %1843 = vxpose.xlu0.b32.cont [11/16] 0.0, 128
        %1844 = vxpose.xlu0.b32.cont [12/16] 0.0, 128
        %1845 = vxpose.xlu0.b32.cont [13/16] 0.0, 128
        %1846 = vxpose.xlu0.b32.cont [14/16] 0.0, 128
        %1847 = vxpose.xlu0.b32.cont [15/16] 0.0, 128
        %1848 = vxpose.xlu0.b32.end [16/16] 0.0, 128
        %v1849 = vpop.trf.xlu0
        %v1850 = vpop.trf.xlu0
        %v1851 = vpop.trf.xlu0
        %v1852 = vpop.trf.xlu0
        %v1853 = vpop.trf.xlu0
        %v1854 = vpop.trf.xlu0
        %v1855 = vpop.trf.xlu0
        %v1856 = vpop.trf.xlu0
        %v1857 = vpop.trf.xlu0
        %v1858 = vpop.trf.xlu0
        %v1859 = vpop.trf.xlu0
        %v1860 = vpop.trf.xlu0
        %v1861 = vpop.trf.xlu0
        %v1862 = vpop.trf.xlu0
        %v1863 = vpop.trf.xlu0
        %v1864 = vpop.trf.xlu0
        %v1865 = vcombine.low %v1753, %v1817
        %v1866 = vcombine.high %v1753, %v1817
        %v1868 = vunpack.c.l.s4 1983009808
        %v1869 = vunpack.c.0.s8 %v1868
        %v1870 = vlaneseq
        %v1871 = vshrl.u32 %v1870, 7
        %v1872 = vsub.s32 %v1869, %v1871
        %v1873 = vrot.slane %v1865, %v1872
        %v1875 = vunpack.c.l.s4 1983009808
        %v1876 = vunpack.c.0.s8 %v1875
        %v1877 = vlaneseq
        %v1878 = vshrl.u32 %v1877, 7
        %v1879 = vsub.s32 %v1876, %v1878
        %v1880 = vrot.slane %v1866, %v1879
        %v1881 = vcombine.low %v1785, %v1849
        %v1882 = vcombine.high %v1785, %v1849
        %v1884 = vunpack.c.l.s4 1983009808
        %v1885 = vunpack.c.0.s8 %v1884
        %v1886 = vlaneseq
        %v1887 = vshrl.u32 %v1886, 7
        %v1888 = vsub.s32 %v1885, %v1887
        %v1889 = vrot.slane %v1881, %v1888
        %v1891 = vunpack.c.l.s4 1983009808
        %v1892 = vunpack.c.0.s8 %v1891
        %v1893 = vlaneseq
        %v1894 = vshrl.u32 %v1893, 7
        %v1895 = vsub.s32 %v1892, %v1894
        %v1896 = vrot.slane %v1882, %v1895
        %v1897 = vcombine.low %v1873, %v1889
        %v1898 = vcombine.high %v1873, %v1889
        %v1900 = vunpack.c.l.s4 1934713408
        %v1901 = vunpack.c.0.s8 %v1900
        %v1902 = vlaneseq
        %v1903 = vshrl.u32 %v1902, 7
        %v1904 = vsub.s32 %v1901, %v1903
        %v1905 = vrot.slane %v1897, %v1904
        %v1907 = vunpack.c.l.s4 1934713408
        %v1908 = vunpack.c.0.s8 %v1907
        %v1909 = vlaneseq
        %v1910 = vshrl.u32 %v1909, 7
        %v1911 = vsub.s32 %v1908, %v1910
        %v1912 = vrot.slane %v1898, %v1911
        %v1913 = vcombine.low %v1880, %v1896
        %v1914 = vcombine.high %v1905, 0.0
        %v1915 = vcombine.high %v1912, 0.0
        %v1916 = vcombine.low %v1905, %v1912
        %v1918 = vunpack.c.l.s4 1983009808
        %v1919 = vunpack.c.0.s8 %v1918
        %v1920 = vlaneseq
        %v1921 = vshrl.u32 %v1920, 7
        %v1922 = vsub.s32 %v1919, %v1921
        %v1923 = vrot.slane %v1916, %v1922
        %v1924 = vcombine.low %v1914, %v1915
        %v1926 = vunpack.c.l.s4 1983009808
        %v1927 = vunpack.c.0.s8 %v1926
        %v1928 = vlaneseq
        %v1929 = vshrl.u32 %v1928, 7
        %v1930 = vsub.s32 %v1927, %v1929
        %v1931 = vrot.slane %v1924, %v1930
        %v1933 = vunpack.c.l.s4 1934713408
        %v1934 = vunpack.c.0.s8 %v1933
        %v1935 = vlaneseq
        %v1936 = vshrl.u32 %v1935, 7
        %v1937 = vsub.s32 %v1934, %v1936
        %v1938 = vrot.slane %v1913, %v1937
        %v1940 = vunpack.c.l.s4 1983009808
        %v1941 = vunpack.c.0.s8 %v1940
        %v1942 = vlaneseq
        %v1943 = vshrl.u32 %v1942, 7
        %v1944 = vsub.s32 %v1941, %v1943
        %v1945 = vrot.slane %v1938, %v1944
        %v1946 = vcombine.low %v1923, %v1931
        %v1947 = vcombine.high %v1923, %v1931
        %v1949 = vunpack.c.l.s4 1934713408
        %v1950 = vunpack.c.0.s8 %v1949
        %v1951 = vlaneseq
        %v1952 = vshrl.u32 %v1951, 7
        %v1953 = vsub.s32 %v1950, %v1952
        %v1954 = vrot.slane %v1946, %v1953
        %v1956 = vunpack.c.l.s4 1934713408
        %v1957 = vunpack.c.0.s8 %v1956
        %v1958 = vlaneseq
        %v1959 = vshrl.u32 %v1958, 7
        %v1960 = vsub.s32 %v1957, %v1959
        %v1961 = vrot.slane %v1947, %v1960
        %v1962 = vcombine.high %v1945, 0.0
        %v1964 = vunpack.c.l.s4 1934713408
        %v1965 = vunpack.c.0.s8 %v1964
        %v1966 = vlaneseq
        %v1967 = vshrl.u32 %v1966, 7
        %v1968 = vsub.s32 %v1965, %v1967
        %v1969 = vrot.slane %v1945, %v1968
        %v1971 = vunpack.c.l.s4 1934713408
        %v1972 = vunpack.c.0.s8 %v1971
        %v1973 = vlaneseq
        %v1974 = vshrl.u32 %v1973, 7
        %v1975 = vsub.s32 %v1972, %v1974
        %v1976 = vrot.slane %v1962, %v1975
        %v1977 = vcombine.low %v1954, %v1969
        %v1978 = vcombine.high %v1954, %v1969
        %v1979 = vcombine.low %v1961, %v1976
        %v1980 = vcombine.high %v1961, %v1976
        %1982 = vrot.lane.b32.xlu0 %v1978, 8
        %v1983 = vpop.permute.xlu0 %1982
        %1986 = vrot.lane.b32.xlu0 %v1979, 16
        %v1987 = vpop.permute.xlu0 %1986
        %1990 = vrot.lane.b32.xlu0 %v1980, 24
        %v1991 = vpop.permute.xlu0 %1990
        %v1993 = vsel %vm959, %v1977, %v1983
        %vm1994 = vcmask 130048
        %v1995 = vsel %vm1994, %v1993, %v1987
        %vm1996 = vcmask 195584
        %v1997 = vsel %vm1996, %v1995, %v1991
        %v1999 = vlaneseq
        %v2000 = vshrl.u32 %v1999, 7
        %v2001 = vsub.s32 0, %v2000
        %v2002 = vrot.slane %v620, %v2001
        %v2005 = vsel %vm647, %v1997, 0
        %2007 = vmatprep.subr.mxu0 0.0
        %2008 = vmatpush1.msra.mxu0 0.0
        %2009 = vmatprep.subr.mxu0 0.0
        %2010 = vmatpush1.msra.mxu0 0.0
        %2011 = vmatprep.subr.mxu0 0.0
        %2012 = vmatpush1.msra.mxu0 0.0
        %2013 = vmatprep.subr.mxu0 0.0
        %2014 = vmatpush1.msra.mxu0 0.0
        %2015 = vmatprep.subr.mxu0 0.0
        %2016 = vmatpush1.msra.mxu0 0.0
        %2017 = vmatprep.subr.mxu0 0.0
        %2018 = vmatpush1.msra.mxu0 0.0
        %2019 = vmatprep.subr.mxu0 0.0
        %2020 = vmatpush1.msra.mxu0 0.0
        %2021 = vmatprep.subr.mxu0 0.0
        %2022 = vmatpush1.msra.mxu0 0.0
        %2023 = vmatprep.subr.mxu0 0.0
        %2024 = vmatpush1.msra.mxu0 0.0
        %2025 = vmatprep.subr.mxu0 0.0
        %2026 = vmatpush1.msra.mxu0 0.0
        %2027 = vmatprep.subr.mxu0 0.0
        %2028 = vmatpush1.msra.mxu0 0.0
        %2029 = vmatprep.subr.mxu0 0.0
        %2030 = vmatpush1.msra.mxu0 0.0
        %2031 = vmatprep.subr.mxu0 0.0
        %2032 = vmatpush1.msra.mxu0 %v619
        %2033 = vmatprep.subr.mxu0 0.0
        %2034 = vmatpush1.msra.mxu0 %v618
        %2035 = vmatprep.subr.mxu0 0.0
        %2036 = vmatpush1.msra.mxu0 %v617
        %2037 = vmatprep.subr.mxu0 0.0
        %2038 = vmatpush1.msra.mxu0 %v616
        %2039 = vmatprep.subr.mxu0 0.0
        %2040 = vmatpush2.msra.mxu0 0.0
        %2041 = vmatprep.subr.mxu0 0.0
        %2042 = vmatpush2.msra.mxu0 0.0
        %2043 = vmatprep.subr.mxu0 0.0
        %2044 = vmatpush2.msra.mxu0 0.0
        %2045 = vmatprep.subr.mxu0 0.0
        %2046 = vmatpush2.msra.mxu0 0.0
        %2047 = vmatprep.subr.mxu0 0.0
        %2048 = vmatpush2.msra.mxu0 0.0
        %2049 = vmatprep.subr.mxu0 0.0
        %2050 = vmatpush2.msra.mxu0 0.0
        %2051 = vmatprep.subr.mxu0 0.0
        %2052 = vmatpush2.msra.mxu0 0.0
        %2053 = vmatprep.subr.mxu0 0.0
        %2054 = vmatpush2.msra.mxu0 0.0
        %2055 = vmatprep.subr.mxu0 0.0
        %2056 = vmatpush2.msra.mxu0 0.0
        %2057 = vmatprep.subr.mxu0 0.0
        %2058 = vmatpush2.msra.mxu0 0.0
        %2059 = vmatprep.subr.mxu0 0.0
        %2060 = vmatpush2.msra.mxu0 0.0
        %2061 = vmatprep.subr.mxu0 0.0
        %2062 = vmatpush2.msra.mxu0 0.0
        %2063 = vmatprep.subr.mxu0 0.0
        %2064 = vmatpush2.msra.mxu0 0.0
        %2065 = vmatprep.subr.mxu0 0.0
        %2066 = vmatpush2.msra.mxu0 0.0
        %2067 = vmatprep.subr.mxu0 0.0
        %2068 = vmatpush2.msra.mxu0 0.0
        %2069 = vmatprep.subr.mxu0 0.0
        %2070 = vmatpush2.msra.mxu0 0.0
        %2071 = vmatprep.mubr.f32.mxu0 0.0
        %2072 = vmatmul.mubr.f32.gmra.mxu0 %v2005
        %v2073 = vpop.f32.mrf.mxu0
        %v2074 = vadd.f32 %v2002, %v2073
        %v2075 = vpop.f32.mrf.mxu0
        %2076 = vdwg.mxu0
        %vm2077 = vcmask 258048
        %v2078 = vsel %vm2077, %v2074, 0.0
        %2079 = vadd.xlane.f32.xlu0 %v2078
        %v2080 = vpop.xlane.xlu0 %2079
        %v2081 = vrcp.pop 32.0
        %v2082 = vmul.f32 %v2080, %v2081
        %v2083 = vsub.f32 %v2074, %v2082
        %v2084 = vmul.f32 %v2083, %v2083
        %v2085 = vsel %vm2077, %v2084, 0.0
        %2086 = vadd.xlane.f32.xlu0 %v2085
        %v2087 = vpop.xlane.xlu0 %2086
        %v2088 = vmul.f32 %v2087, %v2081
        %v2089 = vadd.f32 %v2088, 1e-05
        %v2090 = vrsqrt.pop %v2089
        %v2091 = vmul.f32 %v2083, %v2090
        %v2093 = vlaneseq
        %v2094 = vshrl.u32 %v2093, 7
        %v2095 = vsub.s32 0, %v2094
        %v2096 = vrot.slane %v621, %v2095
        %v2098 = vmul.f32 %v2091, %v2096
        %v2100 = vlaneseq
        %v2101 = vshrl.u32 %v2100, 7
        %v2102 = vsub.s32 0, %v2101
        %v2103 = vrot.slane %v622, %v2102
        %v2105 = vadd.f32 %v2098, %v2103
        %v2107 = vlaneseq
        %v2108 = vshrl.u32 %v2107, 7
        %v2109 = vsub.s32 0, %v2108
        %v2110 = vrot.slane %v627, %v2109
        %v2113 = vsel %vm647, %v2105, 0
        %2115 = vmatprep.subr.mxu0 0.0
        %2116 = vmatpush1.msra.mxu0 0.0
        %2117 = vmatprep.subr.mxu0 0.0
        %2118 = vmatpush1.msra.mxu0 0.0
        %2119 = vmatprep.subr.mxu0 0.0
        %2120 = vmatpush1.msra.mxu0 0.0
        %2121 = vmatprep.subr.mxu0 0.0
        %2122 = vmatpush1.msra.mxu0 0.0
        %2123 = vmatprep.subr.mxu0 0.0
        %2124 = vmatpush1.msra.mxu0 0.0
        %2125 = vmatprep.subr.mxu0 0.0
        %2126 = vmatpush1.msra.mxu0 0.0
        %2127 = vmatprep.subr.mxu0 0.0
        %2128 = vmatpush1.msra.mxu0 0.0
        %2129 = vmatprep.subr.mxu0 0.0
        %2130 = vmatpush1.msra.mxu0 0.0
        %2131 = vmatprep.subr.mxu0 0.0
        %2132 = vmatpush1.msra.mxu0 0.0
        %2133 = vmatprep.subr.mxu0 0.0
        %2134 = vmatpush1.msra.mxu0 0.0
        %2135 = vmatprep.subr.mxu0 0.0
        %2136 = vmatpush1.msra.mxu0 0.0
        %2137 = vmatprep.subr.mxu0 0.0
        %2138 = vmatpush1.msra.mxu0 0.0
        %2139 = vmatprep.subr.mxu0 0.0
        %2140 = vmatpush1.msra.mxu0 %v626
        %2141 = vmatprep.subr.mxu0 0.0
        %2142 = vmatpush1.msra.mxu0 %v625
        %2143 = vmatprep.subr.mxu0 0.0
        %2144 = vmatpush1.msra.mxu0 %v624
        %2145 = vmatprep.subr.mxu0 0.0
        %2146 = vmatpush1.msra.mxu0 %v623
        %2147 = vmatprep.subr.mxu0 0.0
        %2148 = vmatpush2.msra.mxu0 0.0
        %2149 = vmatprep.subr.mxu0 0.0
        %2150 = vmatpush2.msra.mxu0 0.0
        %2151 = vmatprep.subr.mxu0 0.0
        %2152 = vmatpush2.msra.mxu0 0.0
        %2153 = vmatprep.subr.mxu0 0.0
        %2154 = vmatpush2.msra.mxu0 0.0
        %2155 = vmatprep.subr.mxu0 0.0
        %2156 = vmatpush2.msra.mxu0 0.0
        %2157 = vmatprep.subr.mxu0 0.0
        %2158 = vmatpush2.msra.mxu0 0.0
        %2159 = vmatprep.subr.mxu0 0.0
        %2160 = vmatpush2.msra.mxu0 0.0
        %2161 = vmatprep.subr.mxu0 0.0
        %2162 = vmatpush2.msra.mxu0 0.0
        %2163 = vmatprep.subr.mxu0 0.0
        %2164 = vmatpush2.msra.mxu0 0.0
        %2165 = vmatprep.subr.mxu0 0.0
        %2166 = vmatpush2.msra.mxu0 0.0
        %2167 = vmatprep.subr.mxu0 0.0
        %2168 = vmatpush2.msra.mxu0 0.0
        %2169 = vmatprep.subr.mxu0 0.0
        %2170 = vmatpush2.msra.mxu0 0.0
        %2171 = vmatprep.subr.mxu0 0.0
        %2172 = vmatpush2.msra.mxu0 0.0
        %2173 = vmatprep.subr.mxu0 0.0
        %2174 = vmatpush2.msra.mxu0 0.0
        %2175 = vmatprep.subr.mxu0 0.0
        %2176 = vmatpush2.msra.mxu0 0.0
        %2177 = vmatprep.subr.mxu0 0.0
        %2178 = vmatpush2.msra.mxu0 0.0
        %2179 = vmatprep.mubr.f32.mxu0 0.0
        %2180 = vmatmul.mubr.f32.gmra.mxu0 %v2113
        %v2181 = vpop.f32.mrf.mxu0
        %v2182 = vadd.f32 %v2110, %v2181
        %v2183 = vpop.f32.mrf.mxu0
        %2184 = vdwg.mxu0
        %v2185 = vmax.f32 %v2182, 0.0
        %v2187 = vlaneseq
        %v2188 = vshrl.u32 %v2187, 7
        %v2189 = vsub.s32 0, %v2188
        %v2190 = vrot.slane %v636, %v2189
        %vm2192 = vcmask 523264
        %v2194 = vsel %vm2192, %v2185, 0
        %2196 = vmatprep.subr.mxu0 0.0
        %2197 = vmatpush1.msra.mxu0 0.0
        %2198 = vmatprep.subr.mxu0 0.0
        %2199 = vmatpush1.msra.mxu0 0.0
        %2200 = vmatprep.subr.mxu0 0.0
        %2201 = vmatpush1.msra.mxu0 0.0
        %2202 = vmatprep.subr.mxu0 0.0
        %2203 = vmatpush1.msra.mxu0 0.0
        %2204 = vmatprep.subr.mxu0 0.0
        %2205 = vmatpush1.msra.mxu0 0.0
        %2206 = vmatprep.subr.mxu0 0.0
        %2207 = vmatpush1.msra.mxu0 0.0
        %2208 = vmatprep.subr.mxu0 0.0
        %2209 = vmatpush1.msra.mxu0 0.0
        %2210 = vmatprep.subr.mxu0 0.0
        %2211 = vmatpush1.msra.mxu0 0.0
        %2212 = vmatprep.subr.mxu0 0.0
        %2213 = vmatpush1.msra.mxu0 %v635
        %2214 = vmatprep.subr.mxu0 0.0
        %2215 = vmatpush1.msra.mxu0 %v634
        %2216 = vmatprep.subr.mxu0 0.0
        %2217 = vmatpush1.msra.mxu0 %v633
        %2218 = vmatprep.subr.mxu0 0.0
        %2219 = vmatpush1.msra.mxu0 %v632
        %2220 = vmatprep.subr.mxu0 0.0
        %2221 = vmatpush1.msra.mxu0 %v631
        %2222 = vmatprep.subr.mxu0 0.0
        %2223 = vmatpush1.msra.mxu0 %v630
        %2224 = vmatprep.subr.mxu0 0.0
        %2225 = vmatpush1.msra.mxu0 %v629
        %2226 = vmatprep.subr.mxu0 0.0
        %2227 = vmatpush1.msra.mxu0 %v628
        %2228 = vmatprep.subr.mxu0 0.0
        %2229 = vmatpush2.msra.mxu0 0.0
        %2230 = vmatprep.subr.mxu0 0.0
        %2231 = vmatpush2.msra.mxu0 0.0
        %2232 = vmatprep.subr.mxu0 0.0
        %2233 = vmatpush2.msra.mxu0 0.0
        %2234 = vmatprep.subr.mxu0 0.0
        %2235 = vmatpush2.msra.mxu0 0.0
        %2236 = vmatprep.subr.mxu0 0.0
        %2237 = vmatpush2.msra.mxu0 0.0
        %2238 = vmatprep.subr.mxu0 0.0
        %2239 = vmatpush2.msra.mxu0 0.0
        %2240 = vmatprep.subr.mxu0 0.0
        %2241 = vmatpush2.msra.mxu0 0.0
        %2242 = vmatprep.subr.mxu0 0.0
        %2243 = vmatpush2.msra.mxu0 0.0
        %2244 = vmatprep.subr.mxu0 0.0
        %2245 = vmatpush2.msra.mxu0 0.0
        %2246 = vmatprep.subr.mxu0 0.0
        %2247 = vmatpush2.msra.mxu0 0.0
        %2248 = vmatprep.subr.mxu0 0.0
        %2249 = vmatpush2.msra.mxu0 0.0
        %2250 = vmatprep.subr.mxu0 0.0
        %2251 = vmatpush2.msra.mxu0 0.0
        %2252 = vmatprep.subr.mxu0 0.0
        %2253 = vmatpush2.msra.mxu0 0.0
        %2254 = vmatprep.subr.mxu0 0.0
        %2255 = vmatpush2.msra.mxu0 0.0
        %2256 = vmatprep.subr.mxu0 0.0
        %2257 = vmatpush2.msra.mxu0 0.0
        %2258 = vmatprep.subr.mxu0 0.0
        %2259 = vmatpush2.msra.mxu0 0.0
        %2260 = vmatprep.mubr.f32.mxu0 0.0
        %2261 = vmatmul.mubr.f32.gmra.mxu0 %v2194
        %v2262 = vpop.f32.mrf.mxu0
        %v2263 = vadd.f32 %v2190, %v2262
        %v2264 = vpop.f32.mrf.mxu0
        %2265 = vdwg.mxu0
        %v2266 = vadd.f32 %v2263, %v2105
        %v2267 = vsel %vm2077, %v2266, 0.0
        %2268 = vadd.xlane.f32.xlu0 %v2267
        %v2269 = vpop.xlane.xlu0 %2268
        %v2270 = vmul.f32 %v2269, %v2081
        %v2271 = vsub.f32 %v2266, %v2270
        %v2272 = vmul.f32 %v2271, %v2271
        %v2273 = vsel %vm2077, %v2272, 0.0
        %2274 = vadd.xlane.f32.xlu0 %v2273
        %v2275 = vpop.xlane.xlu0 %2274
        %v2276 = vmul.f32 %v2275, %v2081
        %v2277 = vadd.f32 %v2276, 1e-05
        %v2278 = vrsqrt.pop %v2277
        %v2279 = vmul.f32 %v2271, %v2278
        %v2281 = vlaneseq
        %v2282 = vshrl.u32 %v2281, 7
        %v2283 = vsub.s32 0, %v2282
        %v2284 = vrot.slane %v637, %v2283
        %v2286 = vmul.f32 %v2279, %v2284
        %v2288 = vlaneseq
        %v2289 = vshrl.u32 %v2288, 7
        %v2290 = vsub.s32 0, %v2289
        %v2291 = vrot.slane %v638, %v2290
        %v2293 = vadd.f32 %v2286, %v2291
        %v2295 = vsel %vm647, %v2293, 0
        %2297 = vmatprep.subr.mxu0 0.0
        %2298 = vmatpush1.msra.mxu0 0.0
        %2299 = vmatprep.subr.mxu0 0.0
        %2300 = vmatpush1.msra.mxu0 0.0
        %2301 = vmatprep.subr.mxu0 0.0
        %2302 = vmatpush1.msra.mxu0 0.0
        %2303 = vmatprep.subr.mxu0 0.0
        %2304 = vmatpush1.msra.mxu0 0.0
        %2305 = vmatprep.subr.mxu0 0.0
        %2306 = vmatpush1.msra.mxu0 0.0
        %2307 = vmatprep.subr.mxu0 0.0
        %2308 = vmatpush1.msra.mxu0 0.0
        %2309 = vmatprep.subr.mxu0 0.0
        %2310 = vmatpush1.msra.mxu0 0.0
        %2311 = vmatprep.subr.mxu0 0.0
        %2312 = vmatpush1.msra.mxu0 0.0
        %2313 = vmatprep.subr.mxu0 0.0
        %2314 = vmatpush1.msra.mxu0 0.0
        %2315 = vmatprep.subr.mxu0 0.0
        %2316 = vmatpush1.msra.mxu0 0.0
        %2317 = vmatprep.subr.mxu0 0.0
        %2318 = vmatpush1.msra.mxu0 0.0
        %2319 = vmatprep.subr.mxu0 0.0
        %2320 = vmatpush1.msra.mxu0 0.0
        %2321 = vmatprep.subr.mxu0 0.0
        %2322 = vmatpush1.msra.mxu0 %v609
        %2323 = vmatprep.subr.mxu0 0.0
        %2324 = vmatpush1.msra.mxu0 %v608
        %2325 = vmatprep.subr.mxu0 0.0
        %2326 = vmatpush1.msra.mxu0 %v607
        %2327 = vmatprep.subr.mxu0 0.0
        %2328 = vmatpush1.msra.mxu0 %v606
        %2329 = vmatprep.subr.mxu0 0.0
        %2330 = vmatpush2.msra.mxu0 0.0
        %2331 = vmatprep.subr.mxu0 0.0
        %2332 = vmatpush2.msra.mxu0 0.0
        %2333 = vmatprep.subr.mxu0 0.0
        %2334 = vmatpush2.msra.mxu0 0.0
        %2335 = vmatprep.subr.mxu0 0.0
        %2336 = vmatpush2.msra.mxu0 0.0
        %2337 = vmatprep.subr.mxu0 0.0
        %2338 = vmatpush2.msra.mxu0 0.0
        %2339 = vmatprep.subr.mxu0 0.0
        %2340 = vmatpush2.msra.mxu0 0.0
        %2341 = vmatprep.subr.mxu0 0.0
        %2342 = vmatpush2.msra.mxu0 0.0
        %2343 = vmatprep.subr.mxu0 0.0
        %2344 = vmatpush2.msra.mxu0 0.0
        %2345 = vmatprep.subr.mxu0 0.0
        %2346 = vmatpush2.msra.mxu0 0.0
        %2347 = vmatprep.subr.mxu0 0.0
        %2348 = vmatpush2.msra.mxu0 0.0
        %2349 = vmatprep.subr.mxu0 0.0
        %2350 = vmatpush2.msra.mxu0 0.0
        %2351 = vmatprep.subr.mxu0 0.0
        %2352 = vmatpush2.msra.mxu0 0.0
        %2353 = vmatprep.subr.mxu0 0.0
        %2354 = vmatpush2.msra.mxu0 0.0
        %2355 = vmatprep.subr.mxu0 0.0
        %2356 = vmatpush2.msra.mxu0 0.0
        %2357 = vmatprep.subr.mxu0 0.0
        %2358 = vmatpush2.msra.mxu0 0.0
        %2359 = vmatprep.subr.mxu0 0.0
        %2360 = vmatpush2.msra.mxu0 0.0
        %2361 = vmatprep.mubr.f32.mxu0 0.0
        %2362 = vmatmul.mubr.f32.gmra.mxu0 %v2295
        %v2363 = vpop.f32.mrf.mxu0
        %v2364 = vadd.f32 %v733, %v2363
        %v2365 = vpop.f32.mrf.mxu0
        %2366 = vdwg.mxu0
        %2368 = vrot.lane.b32.xlu0 %v2364, 120
        %v2369 = vpop.permute.xlu0 %2368
        %2370 = vrot.lane.b32.xlu0 %v2364, 112
        %v2371 = vpop.permute.xlu0 %2370
        %2372 = vrot.lane.b32.xlu0 %v2364, 104
        %v2373 = vpop.permute.xlu0 %2372
        %2375 = vrot.lane.b32.xlu0 %v726, 120
        %v2376 = vpop.permute.xlu0 %2375
        %2378 = vrot.lane.b32.xlu0 %v726, 112
        %v2379 = vpop.permute.xlu0 %2378
        %2381 = vrot.lane.b32.xlu0 %v726, 104
        %v2382 = vpop.permute.xlu0 %2381
        %2384 = vxpose.xlu0.b32.start [1/16] %v726, 128
        %2385 = vxpose.xlu0.b32.cont [2/16] 0.0, 128
        %2386 = vxpose.xlu0.b32.cont [3/16] 0.0, 128
        %2387 = vxpose.xlu0.b32.cont [4/16] 0.0, 128
        %2388 = vxpose.xlu0.b32.cont [5/16] 0.0, 128
        %2389 = vxpose.xlu0.b32.cont [6/16] 0.0, 128
        %2390 = vxpose.xlu0.b32.cont [7/16] 0.0, 128
        %2391 = vxpose.xlu0.b32.cont [8/16] 0.0, 128
        %2392 = vxpose.xlu0.b32.cont [9/16] 0.0, 128
        %2393 = vxpose.xlu0.b32.cont [10/16] 0.0, 128
        %2394 = vxpose.xlu0.b32.cont [11/16] 0.0, 128
        %2395 = vxpose.xlu0.b32.cont [12/16] 0.0, 128
        %2396 = vxpose.xlu0.b32.cont [13/16] 0.0, 128
        %2397 = vxpose.xlu0.b32.cont [14/16] 0.0, 128
        %2398 = vxpose.xlu0.b32.cont [15/16] 0.0, 128
        %2399 = vxpose.xlu0.b32.end [16/16] 0.0, 128
        %v2400 = vpop.trf.xlu0
        %v2401 = vpop.trf.xlu0
        %v2402 = vpop.trf.xlu0
        %v2403 = vpop.trf.xlu0
        %v2404 = vpop.trf.xlu0
        %v2405 = vpop.trf.xlu0
        %v2406 = vpop.trf.xlu0
        %v2407 = vpop.trf.xlu0
        %v2408 = vpop.trf.xlu0
        %v2409 = vpop.trf.xlu0
        %v2410 = vpop.trf.xlu0
        %v2411 = vpop.trf.xlu0
        %v2412 = vpop.trf.xlu0
        %v2413 = vpop.trf.xlu0
        %v2414 = vpop.trf.xlu0
        %v2415 = vpop.trf.xlu0
        %2416 = vxpose.xlu0.b32.start [1/16] %v2376, 128
        %2417 = vxpose.xlu0.b32.cont [2/16] 0.0, 128
        %2418 = vxpose.xlu0.b32.cont [3/16] 0.0, 128
        %2419 = vxpose.xlu0.b32.cont [4/16] 0.0, 128
        %2420 = vxpose.xlu0.b32.cont [5/16] 0.0, 128
        %2421 = vxpose.xlu0.b32.cont [6/16] 0.0, 128
        %2422 = vxpose.xlu0.b32.cont [7/16] 0.0, 128
        %2423 = vxpose.xlu0.b32.cont [8/16] 0.0, 128
        %2424 = vxpose.xlu0.b32.cont [9/16] 0.0, 128
        %2425 = vxpose.xlu0.b32.cont [10/16] 0.0, 128
        %2426 = vxpose.xlu0.b32.cont [11/16] 0.0, 128
        %2427 = vxpose.xlu0.b32.cont [12/16] 0.0, 128
        %2428 = vxpose.xlu0.b32.cont [13/16] 0.0, 128
        %2429 = vxpose.xlu0.b32.cont [14/16] 0.0, 128
        %2430 = vxpose.xlu0.b32.cont [15/16] 0.0, 128
        %2431 = vxpose.xlu0.b32.end [16/16] 0.0, 128
        %v2432 = vpop.trf.xlu0
        %v2433 = vpop.trf.xlu0
        %v2434 = vpop.trf.xlu0
        %v2435 = vpop.trf.xlu0
        %v2436 = vpop.trf.xlu0
        %v2437 = vpop.trf.xlu0
        %v2438 = vpop.trf.xlu0
        %v2439 = vpop.trf.xlu0
        %v2440 = vpop.trf.xlu0
        %v2441 = vpop.trf.xlu0
        %v2442 = vpop.trf.xlu0
        %v2443 = vpop.trf.xlu0
        %v2444 = vpop.trf.xlu0
        %v2445 = vpop.trf.xlu0
        %v2446 = vpop.trf.xlu0
        %v2447 = vpop.trf.xlu0
        %2448 = vxpose.xlu0.b32.start [1/16] %v2379, 128
        %2449 = vxpose.xlu0.b32.cont [2/16] 0.0, 128
        %2450 = vxpose.xlu0.b32.cont [3/16] 0.0, 128
        %2451 = vxpose.xlu0.b32.cont [4/16] 0.0, 128
        %2452 = vxpose.xlu0.b32.cont [5/16] 0.0, 128
        %2453 = vxpose.xlu0.b32.cont [6/16] 0.0, 128
        %2454 = vxpose.xlu0.b32.cont [7/16] 0.0, 128
        %2455 = vxpose.xlu0.b32.cont [8/16] 0.0, 128
        %2456 = vxpose.xlu0.b32.cont [9/16] 0.0, 128
        %2457 = vxpose.xlu0.b32.cont [10/16] 0.0, 128
        %2458 = vxpose.xlu0.b32.cont [11/16] 0.0, 128
        %2459 = vxpose.xlu0.b32.cont [12/16] 0.0, 128
        %2460 = vxpose.xlu0.b32.cont [13/16] 0.0, 128
        %2461 = vxpose.xlu0.b32.cont [14/16] 0.0, 128
        %2462 = vxpose.xlu0.b32.cont [15/16] 0.0, 128
        %2463 = vxpose.xlu0.b32.end [16/16] 0.0, 128
        %v2464 = vpop.trf.xlu0
        %v2465 = vpop.trf.xlu0
        %v2466 = vpop.trf.xlu0
        %v2467 = vpop.trf.xlu0
        %v2468 = vpop.trf.xlu0
        %v2469 = vpop.trf.xlu0
        %v2470 = vpop.trf.xlu0
        %v2471 = vpop.trf.xlu0
        %v2472 = vpop.trf.xlu0
        %v2473 = vpop.trf.xlu0
        %v2474 = vpop.trf.xlu0
        %v2475 = vpop.trf.xlu0
        %v2476 = vpop.trf.xlu0
        %v2477 = vpop.trf.xlu0
        %v2478 = vpop.trf.xlu0
        %v2479 = vpop.trf.xlu0
        %2480 = vxpose.xlu0.b32.start [1/16] %v2382, 128
        %2481 = vxpose.xlu0.b32.cont [2/16] 0.0, 128
        %2482 = vxpose.xlu0.b32.cont [3/16] 0.0, 128
        %2483 = vxpose.xlu0.b32.cont [4/16] 0.0, 128
        %2484 = vxpose.xlu0.b32.cont [5/16] 0.0, 128
        %2485 = vxpose.xlu0.b32.cont [6/16] 0.0, 128
        %2486 = vxpose.xlu0.b32.cont [7/16] 0.0, 128
        %2487 = vxpose.xlu0.b32.cont [8/16] 0.0, 128
        %2488 = vxpose.xlu0.b32.cont [9/16] 0.0, 128
        %2489 = vxpose.xlu0.b32.cont [10/16] 0.0, 128
        %2490 = vxpose.xlu0.b32.cont [11/16] 0.0, 128
        %2491 = vxpose.xlu0.b32.cont [12/16] 0.0, 128
        %2492 = vxpose.xlu0.b32.cont [13/16] 0.0, 128
        %2493 = vxpose.xlu0.b32.cont [14/16] 0.0, 128
        %2494 = vxpose.xlu0.b32.cont [15/16] 0.0, 128
        %2495 = vxpose.xlu0.b32.end [16/16] 0.0, 128
        %v2496 = vpop.trf.xlu0
        %v2497 = vpop.trf.xlu0
        %v2498 = vpop.trf.xlu0
        %v2499 = vpop.trf.xlu0
        %v2500 = vpop.trf.xlu0
        %v2501 = vpop.trf.xlu0
        %v2502 = vpop.trf.xlu0
        %v2503 = vpop.trf.xlu0
        %v2504 = vpop.trf.xlu0
        %v2505 = vpop.trf.xlu0
        %v2506 = vpop.trf.xlu0
        %v2507 = vpop.trf.xlu0
        %v2508 = vpop.trf.xlu0
        %v2509 = vpop.trf.xlu0
        %v2510 = vpop.trf.xlu0
        %v2511 = vpop.trf.xlu0
        %v2512 = vsel %vm959, %v2364, 0
        %2514 = vmatprep.subr.mxu0 0.0
        %2515 = vmatpush1.msra.mxu0 0.0
        %2516 = vmatprep.subr.mxu0 0.0
        %2517 = vmatpush1.msra.mxu0 0.0
        %2518 = vmatprep.subr.mxu0 0.0
        %2519 = vmatpush1.msra.mxu0 0.0
        %2520 = vmatprep.subr.mxu0 0.0
        %2521 = vmatpush1.msra.mxu0 0.0
        %2522 = vmatprep.subr.mxu0 0.0
        %2523 = vmatpush1.msra.mxu0 0.0
        %2524 = vmatprep.subr.mxu0 0.0
        %2525 = vmatpush1.msra.mxu0 0.0
        %2526 = vmatprep.subr.mxu0 0.0
        %2527 = vmatpush1.msra.mxu0 0.0
        %2528 = vmatprep.subr.mxu0 0.0
        %2529 = vmatpush1.msra.mxu0 0.0
        %2530 = vmatprep.subr.mxu0 0.0
        %2531 = vmatpush1.msra.mxu0 0.0
        %2532 = vmatprep.subr.mxu0 0.0
        %2533 = vmatpush1.msra.mxu0 0.0
        %2534 = vmatprep.subr.mxu0 0.0
        %2535 = vmatpush1.msra.mxu0 0.0
        %2536 = vmatprep.subr.mxu0 0.0
        %2537 = vmatpush1.msra.mxu0 0.0
        %2538 = vmatprep.subr.mxu0 0.0
        %2539 = vmatpush1.msra.mxu0 0.0
        %2540 = vmatprep.subr.mxu0 0.0
        %2541 = vmatpush1.msra.mxu0 0.0
        %2542 = vmatprep.subr.mxu0 0.0
        %2543 = vmatpush1.msra.mxu0 0.0
        %2544 = vmatprep.subr.mxu0 0.0
        %2545 = vmatpush1.msra.mxu0 %v2400
        %2546 = vmatprep.subr.mxu0 0.0
        %2547 = vmatpush2.msra.mxu0 0.0
        %2548 = vmatprep.subr.mxu0 0.0
        %2549 = vmatpush2.msra.mxu0 0.0
        %2550 = vmatprep.subr.mxu0 0.0
        %2551 = vmatpush2.msra.mxu0 0.0
        %2552 = vmatprep.subr.mxu0 0.0
        %2553 = vmatpush2.msra.mxu0 0.0
        %2554 = vmatprep.subr.mxu0 0.0
        %2555 = vmatpush2.msra.mxu0 0.0
        %2556 = vmatprep.subr.mxu0 0.0
        %2557 = vmatpush2.msra.mxu0 0.0
        %2558 = vmatprep.subr.mxu0 0.0
        %2559 = vmatpush2.msra.mxu0 0.0
        %2560 = vmatprep.subr.mxu0 0.0
        %2561 = vmatpush2.msra.mxu0 0.0
        %2562 = vmatprep.subr.mxu0 0.0
        %2563 = vmatpush2.msra.mxu0 0.0
        %2564 = vmatprep.subr.mxu0 0.0
        %2565 = vmatpush2.msra.mxu0 0.0
        %2566 = vmatprep.subr.mxu0 0.0
        %2567 = vmatpush2.msra.mxu0 0.0
        %2568 = vmatprep.subr.mxu0 0.0
        %2569 = vmatpush2.msra.mxu0 0.0
        %2570 = vmatprep.subr.mxu0 0.0
        %2571 = vmatpush2.msra.mxu0 0.0
        %2572 = vmatprep.subr.mxu0 0.0
        %2573 = vmatpush2.msra.mxu0 0.0
        %2574 = vmatprep.subr.mxu0 0.0
        %2575 = vmatpush2.msra.mxu0 0.0
        %2576 = vmatprep.subr.mxu0 0.0
        %2577 = vmatpush2.msra.mxu0 0.0
        %2578 = vmatprep.mubr.f32.mxu0 0.0
        %2579 = vmatmul.mubr.f32.gmra.mxu0 %v2512
        %v2580 = vpop.f32.mrf.mxu0
        %v2581 = vadd.f32 %v829, %v2580
        %v2582 = vpop.f32.mrf.mxu0
        %2583 = vdwg.mxu0
        %v2584 = vsel %vm959, %v2369, 0
        %2586 = vmatprep.subr.mxu0 0.0
        %2587 = vmatpush1.msra.mxu0 0.0
        %2588 = vmatprep.subr.mxu0 0.0
        %2589 = vmatpush1.msra.mxu0 0.0
        %2590 = vmatprep.subr.mxu0 0.0
        %2591 = vmatpush1.msra.mxu0 0.0
        %2592 = vmatprep.subr.mxu0 0.0
        %2593 = vmatpush1.msra.mxu0 0.0
        %2594 = vmatprep.subr.mxu0 0.0
        %2595 = vmatpush1.msra.mxu0 0.0
        %2596 = vmatprep.subr.mxu0 0.0
        %2597 = vmatpush1.msra.mxu0 0.0
        %2598 = vmatprep.subr.mxu0 0.0
        %2599 = vmatpush1.msra.mxu0 0.0
        %2600 = vmatprep.subr.mxu0 0.0
        %2601 = vmatpush1.msra.mxu0 0.0
        %2602 = vmatprep.subr.mxu0 0.0
        %2603 = vmatpush1.msra.mxu0 0.0
        %2604 = vmatprep.subr.mxu0 0.0
        %2605 = vmatpush1.msra.mxu0 0.0
        %2606 = vmatprep.subr.mxu0 0.0
        %2607 = vmatpush1.msra.mxu0 0.0
        %2608 = vmatprep.subr.mxu0 0.0
        %2609 = vmatpush1.msra.mxu0 0.0
        %2610 = vmatprep.subr.mxu0 0.0
        %2611 = vmatpush1.msra.mxu0 0.0
        %2612 = vmatprep.subr.mxu0 0.0
        %2613 = vmatpush1.msra.mxu0 0.0
        %2614 = vmatprep.subr.mxu0 0.0
        %2615 = vmatpush1.msra.mxu0 0.0
        %2616 = vmatprep.subr.mxu0 0.0
        %2617 = vmatpush1.msra.mxu0 %v2432
        %2618 = vmatprep.subr.mxu0 0.0
        %2619 = vmatpush2.msra.mxu0 0.0
        %2620 = vmatprep.subr.mxu0 0.0
        %2621 = vmatpush2.msra.mxu0 0.0
        %2622 = vmatprep.subr.mxu0 0.0
        %2623 = vmatpush2.msra.mxu0 0.0
        %2624 = vmatprep.subr.mxu0 0.0
        %2625 = vmatpush2.msra.mxu0 0.0
        %2626 = vmatprep.subr.mxu0 0.0
        %2627 = vmatpush2.msra.mxu0 0.0
        %2628 = vmatprep.subr.mxu0 0.0
        %2629 = vmatpush2.msra.mxu0 0.0
        %2630 = vmatprep.subr.mxu0 0.0
        %2631 = vmatpush2.msra.mxu0 0.0
        %2632 = vmatprep.subr.mxu0 0.0
        %2633 = vmatpush2.msra.mxu0 0.0
        %2634 = vmatprep.subr.mxu0 0.0
        %2635 = vmatpush2.msra.mxu0 0.0
        %2636 = vmatprep.subr.mxu0 0.0
        %2637 = vmatpush2.msra.mxu0 0.0
        %2638 = vmatprep.subr.mxu0 0.0
        %2639 = vmatpush2.msra.mxu0 0.0
        %2640 = vmatprep.subr.mxu0 0.0
        %2641 = vmatpush2.msra.mxu0 0.0
        %2642 = vmatprep.subr.mxu0 0.0
        %2643 = vmatpush2.msra.mxu0 0.0
        %2644 = vmatprep.subr.mxu0 0.0
        %2645 = vmatpush2.msra.mxu0 0.0
        %2646 = vmatprep.subr.mxu0 0.0
        %2647 = vmatpush2.msra.mxu0 0.0
        %2648 = vmatprep.subr.mxu0 0.0
        %2649 = vmatpush2.msra.mxu0 0.0
        %2650 = vmatprep.mubr.f32.mxu0 0.0
        %2651 = vmatmul.mubr.f32.gmra.mxu0 %v2584
        %v2652 = vpop.f32.mrf.mxu0
        %v2653 = vadd.f32 %v829, %v2652
        %v2654 = vpop.f32.mrf.mxu0
        %2655 = vdwg.mxu0
        %v2656 = vsel %vm959, %v2371, 0
        %2658 = vmatprep.subr.mxu0 0.0
        %2659 = vmatpush1.msra.mxu0 0.0
        %2660 = vmatprep.subr.mxu0 0.0
        %2661 = vmatpush1.msra.mxu0 0.0
        %2662 = vmatprep.subr.mxu0 0.0
        %2663 = vmatpush1.msra.mxu0 0.0
        %2664 = vmatprep.subr.mxu0 0.0
        %2665 = vmatpush1.msra.mxu0 0.0
        %2666 = vmatprep.subr.mxu0 0.0
        %2667 = vmatpush1.msra.mxu0 0.0
        %2668 = vmatprep.subr.mxu0 0.0
        %2669 = vmatpush1.msra.mxu0 0.0
        %2670 = vmatprep.subr.mxu0 0.0
        %2671 = vmatpush1.msra.mxu0 0.0
        %2672 = vmatprep.subr.mxu0 0.0
        %2673 = vmatpush1.msra.mxu0 0.0
        %2674 = vmatprep.subr.mxu0 0.0
        %2675 = vmatpush1.msra.mxu0 0.0
        %2676 = vmatprep.subr.mxu0 0.0
        %2677 = vmatpush1.msra.mxu0 0.0
        %2678 = vmatprep.subr.mxu0 0.0
        %2679 = vmatpush1.msra.mxu0 0.0
        %2680 = vmatprep.subr.mxu0 0.0
        %2681 = vmatpush1.msra.mxu0 0.0
        %2682 = vmatprep.subr.mxu0 0.0
        %2683 = vmatpush1.msra.mxu0 0.0
        %2684 = vmatprep.subr.mxu0 0.0
        %2685 = vmatpush1.msra.mxu0 0.0
        %2686 = vmatprep.subr.mxu0 0.0
        %2687 = vmatpush1.msra.mxu0 0.0
        %2688 = vmatprep.subr.mxu0 0.0
        %2689 = vmatpush1.msra.mxu0 %v2464
        %2690 = vmatprep.subr.mxu0 0.0
        %2691 = vmatpush2.msra.mxu0 0.0
        %2692 = vmatprep.subr.mxu0 0.0
        %2693 = vmatpush2.msra.mxu0 0.0
        %2694 = vmatprep.subr.mxu0 0.0
        %2695 = vmatpush2.msra.mxu0 0.0
        %2696 = vmatprep.subr.mxu0 0.0
        %2697 = vmatpush2.msra.mxu0 0.0
        %2698 = vmatprep.subr.mxu0 0.0
        %2699 = vmatpush2.msra.mxu0 0.0
        %2700 = vmatprep.subr.mxu0 0.0
        %2701 = vmatpush2.msra.mxu0 0.0
        %2702 = vmatprep.subr.mxu0 0.0
        %2703 = vmatpush2.msra.mxu0 0.0
        %2704 = vmatprep.subr.mxu0 0.0
        %2705 = vmatpush2.msra.mxu0 0.0
        %2706 = vmatprep.subr.mxu0 0.0
        %2707 = vmatpush2.msra.mxu0 0.0
        %2708 = vmatprep.subr.mxu0 0.0
        %2709 = vmatpush2.msra.mxu0 0.0
        %2710 = vmatprep.subr.mxu0 0.0
        %2711 = vmatpush2.msra.mxu0 0.0
        %2712 = vmatprep.subr.mxu0 0.0
        %2713 = vmatpush2.msra.mxu0 0.0
        %2714 = vmatprep.subr.mxu0 0.0
        %2715 = vmatpush2.msra.mxu0 0.0
        %2716 = vmatprep.subr.mxu0 0.0
        %2717 = vmatpush2.msra.mxu0 0.0
        %2718 = vmatprep.subr.mxu0 0.0
        %2719 = vmatpush2.msra.mxu0 0.0
        %2720 = vmatprep.subr.mxu0 0.0
        %2721 = vmatpush2.msra.mxu0 0.0
        %2722 = vmatprep.mubr.f32.mxu0 0.0
        %2723 = vmatmul.mubr.f32.gmra.mxu0 %v2656
        %v2724 = vpop.f32.mrf.mxu0
        %v2725 = vadd.f32 %v829, %v2724
        %v2726 = vpop.f32.mrf.mxu0
        %2727 = vdwg.mxu0
        %v2728 = vsel %vm959, %v2373, 0
        %2730 = vmatprep.subr.mxu0 0.0
        %2731 = vmatpush1.msra.mxu0 0.0
        %2732 = vmatprep.subr.mxu0 0.0
        %2733 = vmatpush1.msra.mxu0 0.0
        %2734 = vmatprep.subr.mxu0 0.0
        %2735 = vmatpush1.msra.mxu0 0.0
        %2736 = vmatprep.subr.mxu0 0.0
        %2737 = vmatpush1.msra.mxu0 0.0
        %2738 = vmatprep.subr.mxu0 0.0
        %2739 = vmatpush1.msra.mxu0 0.0
        %2740 = vmatprep.subr.mxu0 0.0
        %2741 = vmatpush1.msra.mxu0 0.0
        %2742 = vmatprep.subr.mxu0 0.0
        %2743 = vmatpush1.msra.mxu0 0.0
        %2744 = vmatprep.subr.mxu0 0.0
        %2745 = vmatpush1.msra.mxu0 0.0
        %2746 = vmatprep.subr.mxu0 0.0
        %2747 = vmatpush1.msra.mxu0 0.0
        %2748 = vmatprep.subr.mxu0 0.0
        %2749 = vmatpush1.msra.mxu0 0.0
        %2750 = vmatprep.subr.mxu0 0.0
        %2751 = vmatpush1.msra.mxu0 0.0
        %2752 = vmatprep.subr.mxu0 0.0
        %2753 = vmatpush1.msra.mxu0 0.0
        %2754 = vmatprep.subr.mxu0 0.0
        %2755 = vmatpush1.msra.mxu0 0.0
        %2756 = vmatprep.subr.mxu0 0.0
        %2757 = vmatpush1.msra.mxu0 0.0
        %2758 = vmatprep.subr.mxu0 0.0
        %2759 = vmatpush1.msra.mxu0 0.0
        %2760 = vmatprep.subr.mxu0 0.0
        %2761 = vmatpush1.msra.mxu0 %v2496
        %2762 = vmatprep.subr.mxu0 0.0
        %2763 = vmatpush2.msra.mxu0 0.0
        %2764 = vmatprep.subr.mxu0 0.0
        %2765 = vmatpush2.msra.mxu0 0.0
        %2766 = vmatprep.subr.mxu0 0.0
        %2767 = vmatpush2.msra.mxu0 0.0
        %2768 = vmatprep.subr.mxu0 0.0
        %2769 = vmatpush2.msra.mxu0 0.0
        %2770 = vmatprep.subr.mxu0 0.0
        %2771 = vmatpush2.msra.mxu0 0.0
        %2772 = vmatprep.subr.mxu0 0.0
        %2773 = vmatpush2.msra.mxu0 0.0
        %2774 = vmatprep.subr.mxu0 0.0
        %2775 = vmatpush2.msra.mxu0 0.0
        %2776 = vmatprep.subr.mxu0 0.0
        %2777 = vmatpush2.msra.mxu0 0.0
        %2778 = vmatprep.subr.mxu0 0.0
        %2779 = vmatpush2.msra.mxu0 0.0
        %2780 = vmatprep.subr.mxu0 0.0
        %2781 = vmatpush2.msra.mxu0 0.0
        %2782 = vmatprep.subr.mxu0 0.0
        %2783 = vmatpush2.msra.mxu0 0.0
        %2784 = vmatprep.subr.mxu0 0.0
        %2785 = vmatpush2.msra.mxu0 0.0
        %2786 = vmatprep.subr.mxu0 0.0
        %2787 = vmatpush2.msra.mxu0 0.0
        %2788 = vmatprep.subr.mxu0 0.0
        %2789 = vmatpush2.msra.mxu0 0.0
        %2790 = vmatprep.subr.mxu0 0.0
        %2791 = vmatpush2.msra.mxu0 0.0
        %2792 = vmatprep.subr.mxu0 0.0
        %2793 = vmatpush2.msra.mxu0 0.0
        %2794 = vmatprep.mubr.f32.mxu0 0.0
        %2795 = vmatmul.mubr.f32.gmra.mxu0 %v2728
        %v2796 = vpop.f32.mrf.mxu0
        %v2797 = vadd.f32 %v829, %v2796
        %v2798 = vpop.f32.mrf.mxu0
        %2799 = vdwg.mxu0
        %v2800 = vsel %vm1248, %v2581, -inf
        %2801 = vmax.xlane.f32.xlu0 %v2800
        %v2802 = vpop.xlane.xlu0 %2801
        %v2803 = vsel %vm1248, %v2653, -inf
        %2804 = vmax.xlane.f32.xlu0 %v2803
        %v2805 = vpop.xlane.xlu0 %2804
        %v2806 = vsel %vm1248, %v2725, -inf
        %2807 = vmax.xlane.f32.xlu0 %v2806
        %v2808 = vpop.xlane.xlu0 %2807
        %v2809 = vsel %vm1248, %v2797, -inf
        %2810 = vmax.xlane.f32.xlu0 %v2809
        %v2811 = vpop.xlane.xlu0 %2810
        %v2812 = vsub.f32 %v2581, %v2802
        %v2813 = vsub.f32 %v2653, %v2805
        %v2814 = vsub.f32 %v2725, %v2808
        %v2815 = vsub.f32 %v2797, %v2811
        %v2816 = vmul.f32 %v2812, 1.442695
        %v2817 = vpow.pop %v2816
        %v2818 = vmul.f32 %v2813, 1.442695
        %v2819 = vpow.pop %v2818
        %v2820 = vmul.f32 %v2814, 1.442695
        %v2821 = vpow.pop %v2820
        %v2822 = vmul.f32 %v2815, 1.442695
        %v2823 = vpow.pop %v2822
        %v2824 = vsel %vm1248, %v2817, 0.0
        %2825 = vadd.xlane.f32.xlu0 %v2824
        %v2826 = vpop.xlane.xlu0 %2825
        %v2827 = vsel %vm1248, %v2819, 0.0
        %2828 = vadd.xlane.f32.xlu0 %v2827
        %v2829 = vpop.xlane.xlu0 %2828
        %v2830 = vsel %vm1248, %v2821, 0.0
        %2831 = vadd.xlane.f32.xlu0 %v2830
        %v2832 = vpop.xlane.xlu0 %2831
        %v2833 = vsel %vm1248, %v2823, 0.0
        %2834 = vadd.xlane.f32.xlu0 %v2833
        %v2835 = vpop.xlane.xlu0 %2834
        %v2836 = vrcp.pop %v2826
        %v2837 = vrcp.pop %v2829
        %v2838 = vrcp.pop %v2832
        %v2839 = vrcp.pop %v2835
        %v2840 = vmul.f32 %v2817, %v2836
        %v2841 = vmul.f32 %v2819, %v2837
        %v2842 = vmul.f32 %v2821, %v2838
        %v2843 = vmul.f32 %v2823, %v2839
        %2844 = vrot.lane.b32.xlu0 %v726, 96
        %v2845 = vpop.permute.xlu0 %2844
        %2846 = vrot.lane.b32.xlu0 %v2376, 96
        %v2847 = vpop.permute.xlu0 %2846
        %2848 = vrot.lane.b32.xlu0 %v2379, 96
        %v2849 = vpop.permute.xlu0 %2848
        %2850 = vrot.lane.b32.xlu0 %v2382, 96
        %v2851 = vpop.permute.xlu0 %2850
        %2856 = vxpose.xlu0.b32.start [1/16] %v2845, 128
        %2857 = vxpose.xlu0.b32.cont [2/16] 0.0, 128
        %2858 = vxpose.xlu0.b32.cont [3/16] 0.0, 128
        %2859 = vxpose.xlu0.b32.cont [4/16] 0.0, 128
        %2860 = vxpose.xlu0.b32.cont [5/16] 0.0, 128
        %2861 = vxpose.xlu0.b32.cont [6/16] 0.0, 128
        %2862 = vxpose.xlu0.b32.cont [7/16] 0.0, 128
        %2863 = vxpose.xlu0.b32.cont [8/16] 0.0, 128
        %2864 = vxpose.xlu0.b32.cont [9/16] 0.0, 128
        %2865 = vxpose.xlu0.b32.cont [10/16] 0.0, 128
        %2866 = vxpose.xlu0.b32.cont [11/16] 0.0, 128
        %2867 = vxpose.xlu0.b32.cont [12/16] 0.0, 128
        %2868 = vxpose.xlu0.b32.cont [13/16] 0.0, 128
        %2869 = vxpose.xlu0.b32.cont [14/16] 0.0, 128
        %2870 = vxpose.xlu0.b32.cont [15/16] 0.0, 128
        %2871 = vxpose.xlu0.b32.end [16/16] 0.0, 128
        %v2872 = vpop.trf.xlu0
        %v2873 = vpop.trf.xlu0
        %v2874 = vpop.trf.xlu0
        %v2875 = vpop.trf.xlu0
        %v2876 = vpop.trf.xlu0
        %v2877 = vpop.trf.xlu0
        %v2878 = vpop.trf.xlu0
        %v2879 = vpop.trf.xlu0
        %v2880 = vpop.trf.xlu0
        %v2881 = vpop.trf.xlu0
        %v2882 = vpop.trf.xlu0
        %v2883 = vpop.trf.xlu0
        %v2884 = vpop.trf.xlu0
        %v2885 = vpop.trf.xlu0
        %v2886 = vpop.trf.xlu0
        %v2887 = vpop.trf.xlu0
        %2888 = vxpose.xlu0.b32.start [1/16] %v2847, 128
        %2889 = vxpose.xlu0.b32.cont [2/16] 0.0, 128
        %2890 = vxpose.xlu0.b32.cont [3/16] 0.0, 128
        %2891 = vxpose.xlu0.b32.cont [4/16] 0.0, 128
        %2892 = vxpose.xlu0.b32.cont [5/16] 0.0, 128
        %2893 = vxpose.xlu0.b32.cont [6/16] 0.0, 128
        %2894 = vxpose.xlu0.b32.cont [7/16] 0.0, 128
        %2895 = vxpose.xlu0.b32.cont [8/16] 0.0, 128
        %2896 = vxpose.xlu0.b32.cont [9/16] 0.0, 128
        %2897 = vxpose.xlu0.b32.cont [10/16] 0.0, 128
        %2898 = vxpose.xlu0.b32.cont [11/16] 0.0, 128
        %2899 = vxpose.xlu0.b32.cont [12/16] 0.0, 128
        %2900 = vxpose.xlu0.b32.cont [13/16] 0.0, 128
        %2901 = vxpose.xlu0.b32.cont [14/16] 0.0, 128
        %2902 = vxpose.xlu0.b32.cont [15/16] 0.0, 128
        %2903 = vxpose.xlu0.b32.end [16/16] 0.0, 128
        %v2904 = vpop.trf.xlu0
        %v2905 = vpop.trf.xlu0
        %v2906 = vpop.trf.xlu0
        %v2907 = vpop.trf.xlu0
        %v2908 = vpop.trf.xlu0
        %v2909 = vpop.trf.xlu0
        %v2910 = vpop.trf.xlu0
        %v2911 = vpop.trf.xlu0
        %v2912 = vpop.trf.xlu0
        %v2913 = vpop.trf.xlu0
        %v2914 = vpop.trf.xlu0
        %v2915 = vpop.trf.xlu0
        %v2916 = vpop.trf.xlu0
        %v2917 = vpop.trf.xlu0
        %v2918 = vpop.trf.xlu0
        %v2919 = vpop.trf.xlu0
        %2920 = vxpose.xlu0.b32.start [1/16] %v2849, 128
        %2921 = vxpose.xlu0.b32.cont [2/16] 0.0, 128
        %2922 = vxpose.xlu0.b32.cont [3/16] 0.0, 128
        %2923 = vxpose.xlu0.b32.cont [4/16] 0.0, 128
        %2924 = vxpose.xlu0.b32.cont [5/16] 0.0, 128
        %2925 = vxpose.xlu0.b32.cont [6/16] 0.0, 128
        %2926 = vxpose.xlu0.b32.cont [7/16] 0.0, 128
        %2927 = vxpose.xlu0.b32.cont [8/16] 0.0, 128
        %2928 = vxpose.xlu0.b32.cont [9/16] 0.0, 128
        %2929 = vxpose.xlu0.b32.cont [10/16] 0.0, 128
        %2930 = vxpose.xlu0.b32.cont [11/16] 0.0, 128
        %2931 = vxpose.xlu0.b32.cont [12/16] 0.0, 128
        %2932 = vxpose.xlu0.b32.cont [13/16] 0.0, 128
        %2933 = vxpose.xlu0.b32.cont [14/16] 0.0, 128
        %2934 = vxpose.xlu0.b32.cont [15/16] 0.0, 128
        %2935 = vxpose.xlu0.b32.end [16/16] 0.0, 128
        %v2936 = vpop.trf.xlu0
        %v2937 = vpop.trf.xlu0
        %v2938 = vpop.trf.xlu0
        %v2939 = vpop.trf.xlu0
        %v2940 = vpop.trf.xlu0
        %v2941 = vpop.trf.xlu0
        %v2942 = vpop.trf.xlu0
        %v2943 = vpop.trf.xlu0
        %v2944 = vpop.trf.xlu0
        %v2945 = vpop.trf.xlu0
        %v2946 = vpop.trf.xlu0
        %v2947 = vpop.trf.xlu0
        %v2948 = vpop.trf.xlu0
        %v2949 = vpop.trf.xlu0
        %v2950 = vpop.trf.xlu0
        %v2951 = vpop.trf.xlu0
        %2952 = vxpose.xlu0.b32.start [1/16] %v2851, 128
        %2953 = vxpose.xlu0.b32.cont [2/16] 0.0, 128
        %2954 = vxpose.xlu0.b32.cont [3/16] 0.0, 128
        %2955 = vxpose.xlu0.b32.cont [4/16] 0.0, 128
        %2956 = vxpose.xlu0.b32.cont [5/16] 0.0, 128
        %2957 = vxpose.xlu0.b32.cont [6/16] 0.0, 128
        %2958 = vxpose.xlu0.b32.cont [7/16] 0.0, 128
        %2959 = vxpose.xlu0.b32.cont [8/16] 0.0, 128
        %2960 = vxpose.xlu0.b32.cont [9/16] 0.0, 128
        %2961 = vxpose.xlu0.b32.cont [10/16] 0.0, 128
        %2962 = vxpose.xlu0.b32.cont [11/16] 0.0, 128
        %2963 = vxpose.xlu0.b32.cont [12/16] 0.0, 128
        %2964 = vxpose.xlu0.b32.cont [13/16] 0.0, 128
        %2965 = vxpose.xlu0.b32.cont [14/16] 0.0, 128
        %2966 = vxpose.xlu0.b32.cont [15/16] 0.0, 128
        %2967 = vxpose.xlu0.b32.end [16/16] 0.0, 128
        %v2968 = vpop.trf.xlu0
        %v2969 = vpop.trf.xlu0
        %v2970 = vpop.trf.xlu0
        %v2971 = vpop.trf.xlu0
        %v2972 = vpop.trf.xlu0
        %v2973 = vpop.trf.xlu0
        %v2974 = vpop.trf.xlu0
        %v2975 = vpop.trf.xlu0
        %v2976 = vpop.trf.xlu0
        %v2977 = vpop.trf.xlu0
        %v2978 = vpop.trf.xlu0
        %v2979 = vpop.trf.xlu0
        %v2980 = vpop.trf.xlu0
        %v2981 = vpop.trf.xlu0
        %v2982 = vpop.trf.xlu0
        %v2983 = vpop.trf.xlu0
        %v2985 = vsel %vm959, %v2872, 0
        %v2988 = vsel %vm959, %v2840, 0
        %2990 = vmatprep.subr.mxu0 0.0
        %2991 = vmatpush1.xpose.msra.mxu0 0.0
        %2992 = vmatprep.subr.mxu0 0.0
        %2993 = vmatpush1.xpose.msra.mxu0 0.0
        %2994 = vmatprep.subr.mxu0 0.0
        %2995 = vmatpush1.xpose.msra.mxu0 0.0
        %2996 = vmatprep.subr.mxu0 0.0
        %2997 = vmatpush1.xpose.msra.mxu0 0.0
        %2998 = vmatprep.subr.mxu0 0.0
        %2999 = vmatpush1.xpose.msra.mxu0 0.0
        %3000 = vmatprep.subr.mxu0 0.0
        %3001 = vmatpush1.xpose.msra.mxu0 0.0
        %3002 = vmatprep.subr.mxu0 0.0
        %3003 = vmatpush1.xpose.msra.mxu0 0.0
        %3004 = vmatprep.subr.mxu0 0.0
        %3005 = vmatpush1.xpose.msra.mxu0 0.0
        %3006 = vmatprep.subr.mxu0 0.0
        %3007 = vmatpush1.xpose.msra.mxu0 0.0
        %3008 = vmatprep.subr.mxu0 0.0
        %3009 = vmatpush1.xpose.msra.mxu0 0.0
        %3010 = vmatprep.subr.mxu0 0.0
        %3011 = vmatpush1.xpose.msra.mxu0 0.0
        %3012 = vmatprep.subr.mxu0 0.0
        %3013 = vmatpush1.xpose.msra.mxu0 0.0
        %3014 = vmatprep.subr.mxu0 0.0
        %3015 = vmatpush1.xpose.msra.mxu0 0.0
        %3016 = vmatprep.subr.mxu0 0.0
        %3017 = vmatpush1.xpose.msra.mxu0 0.0
        %3018 = vmatprep.subr.mxu0 0.0
        %3019 = vmatpush1.xpose.msra.mxu0 0.0
        %3020 = vmatprep.subr.mxu0 0.0
        %3021 = vmatpush1.xpose.msra.mxu0 %v2988
        %3022 = vmatprep.subr.mxu0 0.0
        %3023 = vmatpush2.xpose.msra.mxu0 0.0
        %3024 = vmatprep.subr.mxu0 0.0
        %3025 = vmatpush2.xpose.msra.mxu0 0.0
        %3026 = vmatprep.subr.mxu0 0.0
        %3027 = vmatpush2.xpose.msra.mxu0 0.0
        %3028 = vmatprep.subr.mxu0 0.0
        %3029 = vmatpush2.xpose.msra.mxu0 0.0
        %3030 = vmatprep.subr.mxu0 0.0
        %3031 = vmatpush2.xpose.msra.mxu0 0.0
        %3032 = vmatprep.subr.mxu0 0.0
        %3033 = vmatpush2.xpose.msra.mxu0 0.0
        %3034 = vmatprep.subr.mxu0 0.0
        %3035 = vmatpush2.xpose.msra.mxu0 0.0
        %3036 = vmatprep.subr.mxu0 0.0
        %3037 = vmatpush2.xpose.msra.mxu0 0.0
        %3038 = vmatprep.subr.mxu0 0.0
        %3039 = vmatpush2.xpose.msra.mxu0 0.0
        %3040 = vmatprep.subr.mxu0 0.0
        %3041 = vmatpush2.xpose.msra.mxu0 0.0
        %3042 = vmatprep.subr.mxu0 0.0
        %3043 = vmatpush2.xpose.msra.mxu0 0.0
        %3044 = vmatprep.subr.mxu0 0.0
        %3045 = vmatpush2.xpose.msra.mxu0 0.0
        %3046 = vmatprep.subr.mxu0 0.0
        %3047 = vmatpush2.xpose.msra.mxu0 0.0
        %3048 = vmatprep.subr.mxu0 0.0
        %3049 = vmatpush2.xpose.msra.mxu0 0.0
        %3050 = vmatprep.subr.mxu0 0.0
        %3051 = vmatpush2.xpose.msra.mxu0 0.0
        %3052 = vmatprep.subr.mxu0 0.0
        %3053 = vmatpush2.xpose.msra.mxu0 0.0
        %3054 = vmatprep.mubr.f32.mxu0 0.0
        %3055 = vmatmul.mubr.f32.gmra.mxu0 %v2985
        %v3056 = vpop.f32.mrf.mxu0
        %v3057 = vadd.f32 0.0, %v3056
        %v3058 = vpop.f32.mrf.mxu0
        %3059 = vdwg.mxu0
        %v3061 = vsel %vm959, %v2904, 0
        %v3064 = vsel %vm959, %v2841, 0
        %3066 = vmatprep.subr.mxu0 0.0
        %3067 = vmatpush1.xpose.msra.mxu0 0.0
        %3068 = vmatprep.subr.mxu0 0.0
        %3069 = vmatpush1.xpose.msra.mxu0 0.0
        %3070 = vmatprep.subr.mxu0 0.0
        %3071 = vmatpush1.xpose.msra.mxu0 0.0
        %3072 = vmatprep.subr.mxu0 0.0
        %3073 = vmatpush1.xpose.msra.mxu0 0.0
        %3074 = vmatprep.subr.mxu0 0.0
        %3075 = vmatpush1.xpose.msra.mxu0 0.0
        %3076 = vmatprep.subr.mxu0 0.0
        %3077 = vmatpush1.xpose.msra.mxu0 0.0
        %3078 = vmatprep.subr.mxu0 0.0
        %3079 = vmatpush1.xpose.msra.mxu0 0.0
        %3080 = vmatprep.subr.mxu0 0.0
        %3081 = vmatpush1.xpose.msra.mxu0 0.0
        %3082 = vmatprep.subr.mxu0 0.0
        %3083 = vmatpush1.xpose.msra.mxu0 0.0
        %3084 = vmatprep.subr.mxu0 0.0
        %3085 = vmatpush1.xpose.msra.mxu0 0.0
        %3086 = vmatprep.subr.mxu0 0.0
        %3087 = vmatpush1.xpose.msra.mxu0 0.0
        %3088 = vmatprep.subr.mxu0 0.0
        %3089 = vmatpush1.xpose.msra.mxu0 0.0
        %3090 = vmatprep.subr.mxu0 0.0
        %3091 = vmatpush1.xpose.msra.mxu0 0.0
        %3092 = vmatprep.subr.mxu0 0.0
        %3093 = vmatpush1.xpose.msra.mxu0 0.0
        %3094 = vmatprep.subr.mxu0 0.0
        %3095 = vmatpush1.xpose.msra.mxu0 0.0
        %3096 = vmatprep.subr.mxu0 0.0
        %3097 = vmatpush1.xpose.msra.mxu0 %v3064
        %3098 = vmatprep.subr.mxu0 0.0
        %3099 = vmatpush2.xpose.msra.mxu0 0.0
        %3100 = vmatprep.subr.mxu0 0.0
        %3101 = vmatpush2.xpose.msra.mxu0 0.0
        %3102 = vmatprep.subr.mxu0 0.0
        %3103 = vmatpush2.xpose.msra.mxu0 0.0
        %3104 = vmatprep.subr.mxu0 0.0
        %3105 = vmatpush2.xpose.msra.mxu0 0.0
        %3106 = vmatprep.subr.mxu0 0.0
        %3107 = vmatpush2.xpose.msra.mxu0 0.0
        %3108 = vmatprep.subr.mxu0 0.0
        %3109 = vmatpush2.xpose.msra.mxu0 0.0
        %3110 = vmatprep.subr.mxu0 0.0
        %3111 = vmatpush2.xpose.msra.mxu0 0.0
        %3112 = vmatprep.subr.mxu0 0.0
        %3113 = vmatpush2.xpose.msra.mxu0 0.0
        %3114 = vmatprep.subr.mxu0 0.0
        %3115 = vmatpush2.xpose.msra.mxu0 0.0
        %3116 = vmatprep.subr.mxu0 0.0
        %3117 = vmatpush2.xpose.msra.mxu0 0.0
        %3118 = vmatprep.subr.mxu0 0.0
        %3119 = vmatpush2.xpose.msra.mxu0 0.0
        %3120 = vmatprep.subr.mxu0 0.0
        %3121 = vmatpush2.xpose.msra.mxu0 0.0
        %3122 = vmatprep.subr.mxu0 0.0
        %3123 = vmatpush2.xpose.msra.mxu0 0.0
        %3124 = vmatprep.subr.mxu0 0.0
        %3125 = vmatpush2.xpose.msra.mxu0 0.0
        %3126 = vmatprep.subr.mxu0 0.0
        %3127 = vmatpush2.xpose.msra.mxu0 0.0
        %3128 = vmatprep.subr.mxu0 0.0
        %3129 = vmatpush2.xpose.msra.mxu0 0.0
        %3130 = vmatprep.mubr.f32.mxu0 0.0
        %3131 = vmatmul.mubr.f32.gmra.mxu0 %v3061
        %v3132 = vpop.f32.mrf.mxu0
        %v3133 = vadd.f32 0.0, %v3132
        %v3134 = vpop.f32.mrf.mxu0
        %3135 = vdwg.mxu0
        %v3137 = vsel %vm959, %v2936, 0
        %v3140 = vsel %vm959, %v2842, 0
        %3142 = vmatprep.subr.mxu0 0.0
        %3143 = vmatpush1.xpose.msra.mxu0 0.0
        %3144 = vmatprep.subr.mxu0 0.0
        %3145 = vmatpush1.xpose.msra.mxu0 0.0
        %3146 = vmatprep.subr.mxu0 0.0
        %3147 = vmatpush1.xpose.msra.mxu0 0.0
        %3148 = vmatprep.subr.mxu0 0.0
        %3149 = vmatpush1.xpose.msra.mxu0 0.0
        %3150 = vmatprep.subr.mxu0 0.0
        %3151 = vmatpush1.xpose.msra.mxu0 0.0
        %3152 = vmatprep.subr.mxu0 0.0
        %3153 = vmatpush1.xpose.msra.mxu0 0.0
        %3154 = vmatprep.subr.mxu0 0.0
        %3155 = vmatpush1.xpose.msra.mxu0 0.0
        %3156 = vmatprep.subr.mxu0 0.0
        %3157 = vmatpush1.xpose.msra.mxu0 0.0
        %3158 = vmatprep.subr.mxu0 0.0
        %3159 = vmatpush1.xpose.msra.mxu0 0.0
        %3160 = vmatprep.subr.mxu0 0.0
        %3161 = vmatpush1.xpose.msra.mxu0 0.0
        %3162 = vmatprep.subr.mxu0 0.0
        %3163 = vmatpush1.xpose.msra.mxu0 0.0
        %3164 = vmatprep.subr.mxu0 0.0
        %3165 = vmatpush1.xpose.msra.mxu0 0.0
        %3166 = vmatprep.subr.mxu0 0.0
        %3167 = vmatpush1.xpose.msra.mxu0 0.0
        %3168 = vmatprep.subr.mxu0 0.0
        %3169 = vmatpush1.xpose.msra.mxu0 0.0
        %3170 = vmatprep.subr.mxu0 0.0
        %3171 = vmatpush1.xpose.msra.mxu0 0.0
        %3172 = vmatprep.subr.mxu0 0.0
        %3173 = vmatpush1.xpose.msra.mxu0 %v3140
        %3174 = vmatprep.subr.mxu0 0.0
        %3175 = vmatpush2.xpose.msra.mxu0 0.0
        %3176 = vmatprep.subr.mxu0 0.0
        %3177 = vmatpush2.xpose.msra.mxu0 0.0
        %3178 = vmatprep.subr.mxu0 0.0
        %3179 = vmatpush2.xpose.msra.mxu0 0.0
        %3180 = vmatprep.subr.mxu0 0.0
        %3181 = vmatpush2.xpose.msra.mxu0 0.0
        %3182 = vmatprep.subr.mxu0 0.0
        %3183 = vmatpush2.xpose.msra.mxu0 0.0
        %3184 = vmatprep.subr.mxu0 0.0
        %3185 = vmatpush2.xpose.msra.mxu0 0.0
        %3186 = vmatprep.subr.mxu0 0.0
        %3187 = vmatpush2.xpose.msra.mxu0 0.0
        %3188 = vmatprep.subr.mxu0 0.0
        %3189 = vmatpush2.xpose.msra.mxu0 0.0
        %3190 = vmatprep.subr.mxu0 0.0
        %3191 = vmatpush2.xpose.msra.mxu0 0.0
        %3192 = vmatprep.subr.mxu0 0.0
        %3193 = vmatpush2.xpose.msra.mxu0 0.0
        %3194 = vmatprep.subr.mxu0 0.0
        %3195 = vmatpush2.xpose.msra.mxu0 0.0
        %3196 = vmatprep.subr.mxu0 0.0
        %3197 = vmatpush2.xpose.msra.mxu0 0.0
        %3198 = vmatprep.subr.mxu0 0.0
        %3199 = vmatpush2.xpose.msra.mxu0 0.0
        %3200 = vmatprep.subr.mxu0 0.0
        %3201 = vmatpush2.xpose.msra.mxu0 0.0
        %3202 = vmatprep.subr.mxu0 0.0
        %3203 = vmatpush2.xpose.msra.mxu0 0.0
        %3204 = vmatprep.subr.mxu0 0.0
        %3205 = vmatpush2.xpose.msra.mxu0 0.0
        %3206 = vmatprep.mubr.f32.mxu0 0.0
        %3207 = vmatmul.mubr.f32.gmra.mxu0 %v3137
        %v3208 = vpop.f32.mrf.mxu0
        %v3209 = vadd.f32 0.0, %v3208
        %v3210 = vpop.f32.mrf.mxu0
        %3211 = vdwg.mxu0
        %v3213 = vsel %vm959, %v2968, 0
        %v3216 = vsel %vm959, %v2843, 0
        %3218 = vmatprep.subr.mxu0 0.0
        %3219 = vmatpush1.xpose.msra.mxu0 0.0
        %3220 = vmatprep.subr.mxu0 0.0
        %3221 = vmatpush1.xpose.msra.mxu0 0.0
        %3222 = vmatprep.subr.mxu0 0.0
        %3223 = vmatpush1.xpose.msra.mxu0 0.0
        %3224 = vmatprep.subr.mxu0 0.0
        %3225 = vmatpush1.xpose.msra.mxu0 0.0
        %3226 = vmatprep.subr.mxu0 0.0
        %3227 = vmatpush1.xpose.msra.mxu0 0.0
        %3228 = vmatprep.subr.mxu0 0.0
        %3229 = vmatpush1.xpose.msra.mxu0 0.0
        %3230 = vmatprep.subr.mxu0 0.0
        %3231 = vmatpush1.xpose.msra.mxu0 0.0
        %3232 = vmatprep.subr.mxu0 0.0
        %3233 = vmatpush1.xpose.msra.mxu0 0.0
        %3234 = vmatprep.subr.mxu0 0.0
        %3235 = vmatpush1.xpose.msra.mxu0 0.0
        %3236 = vmatprep.subr.mxu0 0.0
        %3237 = vmatpush1.xpose.msra.mxu0 0.0
        %3238 = vmatprep.subr.mxu0 0.0
        %3239 = vmatpush1.xpose.msra.mxu0 0.0
        %3240 = vmatprep.subr.mxu0 0.0
        %3241 = vmatpush1.xpose.msra.mxu0 0.0
        %3242 = vmatprep.subr.mxu0 0.0
        %3243 = vmatpush1.xpose.msra.mxu0 0.0
        %3244 = vmatprep.subr.mxu0 0.0
        %3245 = vmatpush1.xpose.msra.mxu0 0.0
        %3246 = vmatprep.subr.mxu0 0.0
        %3247 = vmatpush1.xpose.msra.mxu0 0.0
        %3248 = vmatprep.subr.mxu0 0.0
        %3249 = vmatpush1.xpose.msra.mxu0 %v3216
        %3250 = vmatprep.subr.mxu0 0.0
        %3251 = vmatpush2.xpose.msra.mxu0 0.0
        %3252 = vmatprep.subr.mxu0 0.0
        %3253 = vmatpush2.xpose.msra.mxu0 0.0
        %3254 = vmatprep.subr.mxu0 0.0
        %3255 = vmatpush2.xpose.msra.mxu0 0.0
        %3256 = vmatprep.subr.mxu0 0.0
        %3257 = vmatpush2.xpose.msra.mxu0 0.0
        %3258 = vmatprep.subr.mxu0 0.0
        %3259 = vmatpush2.xpose.msra.mxu0 0.0
        %3260 = vmatprep.subr.mxu0 0.0
        %3261 = vmatpush2.xpose.msra.mxu0 0.0
        %3262 = vmatprep.subr.mxu0 0.0
        %3263 = vmatpush2.xpose.msra.mxu0 0.0
        %3264 = vmatprep.subr.mxu0 0.0
        %3265 = vmatpush2.xpose.msra.mxu0 0.0
        %3266 = vmatprep.subr.mxu0 0.0
        %3267 = vmatpush2.xpose.msra.mxu0 0.0
        %3268 = vmatprep.subr.mxu0 0.0
        %3269 = vmatpush2.xpose.msra.mxu0 0.0
        %3270 = vmatprep.subr.mxu0 0.0
        %3271 = vmatpush2.xpose.msra.mxu0 0.0
        %3272 = vmatprep.subr.mxu0 0.0
        %3273 = vmatpush2.xpose.msra.mxu0 0.0
        %3274 = vmatprep.subr.mxu0 0.0
        %3275 = vmatpush2.xpose.msra.mxu0 0.0
        %3276 = vmatprep.subr.mxu0 0.0
        %3277 = vmatpush2.xpose.msra.mxu0 0.0
        %3278 = vmatprep.subr.mxu0 0.0
        %3279 = vmatpush2.xpose.msra.mxu0 0.0
        %3280 = vmatprep.subr.mxu0 0.0
        %3281 = vmatpush2.xpose.msra.mxu0 0.0
        %3282 = vmatprep.mubr.f32.mxu0 0.0
        %3283 = vmatmul.mubr.f32.gmra.mxu0 %v3213
        %v3284 = vpop.f32.mrf.mxu0
        %v3285 = vadd.f32 0.0, %v3284
        %v3286 = vpop.f32.mrf.mxu0
        %3287 = vdwg.mxu0
        %3288 = vxpose.xlu0.b32.start [1/16] %v3057, 128
        %3289 = vxpose.xlu0.b32.cont [2/16] 0.0, 128
        %3290 = vxpose.xlu0.b32.cont [3/16] 0.0, 128
        %3291 = vxpose.xlu0.b32.cont [4/16] 0.0, 128
        %3292 = vxpose.xlu0.b32.cont [5/16] 0.0, 128
        %3293 = vxpose.xlu0.b32.cont [6/16] 0.0, 128
        %3294 = vxpose.xlu0.b32.cont [7/16] 0.0, 128
        %3295 = vxpose.xlu0.b32.cont [8/16] 0.0, 128
        %3296 = vxpose.xlu0.b32.cont [9/16] 0.0, 128
        %3297 = vxpose.xlu0.b32.cont [10/16] 0.0, 128
        %3298 = vxpose.xlu0.b32.cont [11/16] 0.0, 128
        %3299 = vxpose.xlu0.b32.cont [12/16] 0.0, 128
        %3300 = vxpose.xlu0.b32.cont [13/16] 0.0, 128
        %3301 = vxpose.xlu0.b32.cont [14/16] 0.0, 128
        %3302 = vxpose.xlu0.b32.cont [15/16] 0.0, 128
        %3303 = vxpose.xlu0.b32.end [16/16] 0.0, 128
        %v3304 = vpop.trf.xlu0
        %v3305 = vpop.trf.xlu0
        %v3306 = vpop.trf.xlu0
        %v3307 = vpop.trf.xlu0
        %v3308 = vpop.trf.xlu0
        %v3309 = vpop.trf.xlu0
        %v3310 = vpop.trf.xlu0
        %v3311 = vpop.trf.xlu0
        %v3312 = vpop.trf.xlu0
        %v3313 = vpop.trf.xlu0
        %v3314 = vpop.trf.xlu0
        %v3315 = vpop.trf.xlu0
        %v3316 = vpop.trf.xlu0
        %v3317 = vpop.trf.xlu0
        %v3318 = vpop.trf.xlu0
        %v3319 = vpop.trf.xlu0
        %3320 = vxpose.xlu0.b32.start [1/16] %v3133, 128
        %3321 = vxpose.xlu0.b32.cont [2/16] 0.0, 128
        %3322 = vxpose.xlu0.b32.cont [3/16] 0.0, 128
        %3323 = vxpose.xlu0.b32.cont [4/16] 0.0, 128
        %3324 = vxpose.xlu0.b32.cont [5/16] 0.0, 128
        %3325 = vxpose.xlu0.b32.cont [6/16] 0.0, 128
        %3326 = vxpose.xlu0.b32.cont [7/16] 0.0, 128
        %3327 = vxpose.xlu0.b32.cont [8/16] 0.0, 128
        %3328 = vxpose.xlu0.b32.cont [9/16] 0.0, 128
        %3329 = vxpose.xlu0.b32.cont [10/16] 0.0, 128
        %3330 = vxpose.xlu0.b32.cont [11/16] 0.0, 128
        %3331 = vxpose.xlu0.b32.cont [12/16] 0.0, 128
        %3332 = vxpose.xlu0.b32.cont [13/16] 0.0, 128
        %3333 = vxpose.xlu0.b32.cont [14/16] 0.0, 128
        %3334 = vxpose.xlu0.b32.cont [15/16] 0.0, 128
        %3335 = vxpose.xlu0.b32.end [16/16] 0.0, 128
        %v3336 = vpop.trf.xlu0
        %v3337 = vpop.trf.xlu0
        %v3338 = vpop.trf.xlu0
        %v3339 = vpop.trf.xlu0
        %v3340 = vpop.trf.xlu0
        %v3341 = vpop.trf.xlu0
        %v3342 = vpop.trf.xlu0
        %v3343 = vpop.trf.xlu0
        %v3344 = vpop.trf.xlu0
        %v3345 = vpop.trf.xlu0
        %v3346 = vpop.trf.xlu0
        %v3347 = vpop.trf.xlu0
        %v3348 = vpop.trf.xlu0
        %v3349 = vpop.trf.xlu0
        %v3350 = vpop.trf.xlu0
        %v3351 = vpop.trf.xlu0
        %3352 = vxpose.xlu0.b32.start [1/16] %v3209, 128
        %3353 = vxpose.xlu0.b32.cont [2/16] 0.0, 128
        %3354 = vxpose.xlu0.b32.cont [3/16] 0.0, 128
        %3355 = vxpose.xlu0.b32.cont [4/16] 0.0, 128
        %3356 = vxpose.xlu0.b32.cont [5/16] 0.0, 128
        %3357 = vxpose.xlu0.b32.cont [6/16] 0.0, 128
        %3358 = vxpose.xlu0.b32.cont [7/16] 0.0, 128
        %3359 = vxpose.xlu0.b32.cont [8/16] 0.0, 128
        %3360 = vxpose.xlu0.b32.cont [9/16] 0.0, 128
        %3361 = vxpose.xlu0.b32.cont [10/16] 0.0, 128
        %3362 = vxpose.xlu0.b32.cont [11/16] 0.0, 128
        %3363 = vxpose.xlu0.b32.cont [12/16] 0.0, 128
        %3364 = vxpose.xlu0.b32.cont [13/16] 0.0, 128
        %3365 = vxpose.xlu0.b32.cont [14/16] 0.0, 128
        %3366 = vxpose.xlu0.b32.cont [15/16] 0.0, 128
        %3367 = vxpose.xlu0.b32.end [16/16] 0.0, 128
        %v3368 = vpop.trf.xlu0
        %v3369 = vpop.trf.xlu0
        %v3370 = vpop.trf.xlu0
        %v3371 = vpop.trf.xlu0
        %v3372 = vpop.trf.xlu0
        %v3373 = vpop.trf.xlu0
        %v3374 = vpop.trf.xlu0
        %v3375 = vpop.trf.xlu0
        %v3376 = vpop.trf.xlu0
        %v3377 = vpop.trf.xlu0
        %v3378 = vpop.trf.xlu0
        %v3379 = vpop.trf.xlu0
        %v3380 = vpop.trf.xlu0
        %v3381 = vpop.trf.xlu0
        %v3382 = vpop.trf.xlu0
        %v3383 = vpop.trf.xlu0
        %3384 = vxpose.xlu0.b32.start [1/16] %v3285, 128
        %3385 = vxpose.xlu0.b32.cont [2/16] 0.0, 128
        %3386 = vxpose.xlu0.b32.cont [3/16] 0.0, 128
        %3387 = vxpose.xlu0.b32.cont [4/16] 0.0, 128
        %3388 = vxpose.xlu0.b32.cont [5/16] 0.0, 128
        %3389 = vxpose.xlu0.b32.cont [6/16] 0.0, 128
        %3390 = vxpose.xlu0.b32.cont [7/16] 0.0, 128
        %3391 = vxpose.xlu0.b32.cont [8/16] 0.0, 128
        %3392 = vxpose.xlu0.b32.cont [9/16] 0.0, 128
        %3393 = vxpose.xlu0.b32.cont [10/16] 0.0, 128
        %3394 = vxpose.xlu0.b32.cont [11/16] 0.0, 128
        %3395 = vxpose.xlu0.b32.cont [12/16] 0.0, 128
        %3396 = vxpose.xlu0.b32.cont [13/16] 0.0, 128
        %3397 = vxpose.xlu0.b32.cont [14/16] 0.0, 128
        %3398 = vxpose.xlu0.b32.cont [15/16] 0.0, 128
        %3399 = vxpose.xlu0.b32.end [16/16] 0.0, 128
        %v3400 = vpop.trf.xlu0
        %v3401 = vpop.trf.xlu0
        %v3402 = vpop.trf.xlu0
        %v3403 = vpop.trf.xlu0
        %v3404 = vpop.trf.xlu0
        %v3405 = vpop.trf.xlu0
        %v3406 = vpop.trf.xlu0
        %v3407 = vpop.trf.xlu0
        %v3408 = vpop.trf.xlu0
        %v3409 = vpop.trf.xlu0
        %v3410 = vpop.trf.xlu0
        %v3411 = vpop.trf.xlu0
        %v3412 = vpop.trf.xlu0
        %v3413 = vpop.trf.xlu0
        %v3414 = vpop.trf.xlu0
        %v3415 = vpop.trf.xlu0
        %v3416 = vcombine.low %v3304, %v3368
        %v3417 = vcombine.high %v3304, %v3368
        %v3419 = vunpack.c.l.s4 1983009808
        %v3420 = vunpack.c.0.s8 %v3419
        %v3421 = vlaneseq
        %v3422 = vshrl.u32 %v3421, 7
        %v3423 = vsub.s32 %v3420, %v3422
        %v3424 = vrot.slane %v3416, %v3423
        %v3426 = vunpack.c.l.s4 1983009808
        %v3427 = vunpack.c.0.s8 %v3426
        %v3428 = vlaneseq
        %v3429 = vshrl.u32 %v3428, 7
        %v3430 = vsub.s32 %v3427, %v3429
        %v3431 = vrot.slane %v3417, %v3430
        %v3432 = vcombine.low %v3336, %v3400
        %v3433 = vcombine.high %v3336, %v3400
        %v3435 = vunpack.c.l.s4 1983009808
        %v3436 = vunpack.c.0.s8 %v3435
        %v3437 = vlaneseq
        %v3438 = vshrl.u32 %v3437, 7
        %v3439 = vsub.s32 %v3436, %v3438
        %v3440 = vrot.slane %v3432, %v3439
        %v3442 = vunpack.c.l.s4 1983009808
        %v3443 = vunpack.c.0.s8 %v3442
        %v3444 = vlaneseq
        %v3445 = vshrl.u32 %v3444, 7
        %v3446 = vsub.s32 %v3443, %v3445
        %v3447 = vrot.slane %v3433, %v3446
        %v3448 = vcombine.low %v3424, %v3440
        %v3449 = vcombine.high %v3424, %v3440
        %v3451 = vunpack.c.l.s4 1934713408
        %v3452 = vunpack.c.0.s8 %v3451
        %v3453 = vlaneseq
        %v3454 = vshrl.u32 %v3453, 7
        %v3455 = vsub.s32 %v3452, %v3454
        %v3456 = vrot.slane %v3448, %v3455
        %v3458 = vunpack.c.l.s4 1934713408
        %v3459 = vunpack.c.0.s8 %v3458
        %v3460 = vlaneseq
        %v3461 = vshrl.u32 %v3460, 7
        %v3462 = vsub.s32 %v3459, %v3461
        %v3463 = vrot.slane %v3449, %v3462
        %v3464 = vcombine.low %v3431, %v3447
        %v3465 = vcombine.high %v3456, 0.0
        %v3466 = vcombine.high %v3463, 0.0
        %v3467 = vcombine.low %v3456, %v3463
        %v3469 = vunpack.c.l.s4 1983009808
        %v3470 = vunpack.c.0.s8 %v3469
        %v3471 = vlaneseq
        %v3472 = vshrl.u32 %v3471, 7
        %v3473 = vsub.s32 %v3470, %v3472
        %v3474 = vrot.slane %v3467, %v3473
        %v3475 = vcombine.low %v3465, %v3466
        %v3477 = vunpack.c.l.s4 1983009808
        %v3478 = vunpack.c.0.s8 %v3477
        %v3479 = vlaneseq
        %v3480 = vshrl.u32 %v3479, 7
        %v3481 = vsub.s32 %v3478, %v3480
        %v3482 = vrot.slane %v3475, %v3481
        %v3484 = vunpack.c.l.s4 1934713408
        %v3485 = vunpack.c.0.s8 %v3484
        %v3486 = vlaneseq
        %v3487 = vshrl.u32 %v3486, 7
        %v3488 = vsub.s32 %v3485, %v3487
        %v3489 = vrot.slane %v3464, %v3488
        %v3491 = vunpack.c.l.s4 1983009808
        %v3492 = vunpack.c.0.s8 %v3491
        %v3493 = vlaneseq
        %v3494 = vshrl.u32 %v3493, 7
        %v3495 = vsub.s32 %v3492, %v3494
        %v3496 = vrot.slane %v3489, %v3495
        %v3497 = vcombine.low %v3474, %v3482
        %v3498 = vcombine.high %v3474, %v3482
        %v3500 = vunpack.c.l.s4 1934713408
        %v3501 = vunpack.c.0.s8 %v3500
        %v3502 = vlaneseq
        %v3503 = vshrl.u32 %v3502, 7
        %v3504 = vsub.s32 %v3501, %v3503
        %v3505 = vrot.slane %v3497, %v3504
        %v3507 = vunpack.c.l.s4 1934713408
        %v3508 = vunpack.c.0.s8 %v3507
        %v3509 = vlaneseq
        %v3510 = vshrl.u32 %v3509, 7
        %v3511 = vsub.s32 %v3508, %v3510
        %v3512 = vrot.slane %v3498, %v3511
        %v3513 = vcombine.high %v3496, 0.0
        %v3515 = vunpack.c.l.s4 1934713408
        %v3516 = vunpack.c.0.s8 %v3515
        %v3517 = vlaneseq
        %v3518 = vshrl.u32 %v3517, 7
        %v3519 = vsub.s32 %v3516, %v3518
        %v3520 = vrot.slane %v3496, %v3519
        %v3522 = vunpack.c.l.s4 1934713408
        %v3523 = vunpack.c.0.s8 %v3522
        %v3524 = vlaneseq
        %v3525 = vshrl.u32 %v3524, 7
        %v3526 = vsub.s32 %v3523, %v3525
        %v3527 = vrot.slane %v3513, %v3526
        %v3528 = vcombine.low %v3505, %v3520
        %v3529 = vcombine.high %v3505, %v3520
        %v3530 = vcombine.low %v3512, %v3527
        %v3531 = vcombine.high %v3512, %v3527
        %3533 = vrot.lane.b32.xlu0 %v3529, 8
        %v3534 = vpop.permute.xlu0 %3533
        %3537 = vrot.lane.b32.xlu0 %v3530, 16
        %v3538 = vpop.permute.xlu0 %3537
        %3541 = vrot.lane.b32.xlu0 %v3531, 24
        %v3542 = vpop.permute.xlu0 %3541
        %v3544 = vsel %vm959, %v3528, %v3534
        %v3545 = vsel %vm1994, %v3544, %v3538
        %v3546 = vsel %vm1996, %v3545, %v3542
        %v3548 = vsel %vm647, %v3546, 0
        %3550 = vmatprep.subr.mxu0 0.0
        %3551 = vmatpush1.msra.mxu0 0.0
        %3552 = vmatprep.subr.mxu0 0.0
        %3553 = vmatpush1.msra.mxu0 0.0
        %3554 = vmatprep.subr.mxu0 0.0
        %3555 = vmatpush1.msra.mxu0 0.0
        %3556 = vmatprep.subr.mxu0 0.0
        %3557 = vmatpush1.msra.mxu0 0.0
        %3558 = vmatprep.subr.mxu0 0.0
        %3559 = vmatpush1.msra.mxu0 0.0
        %3560 = vmatprep.subr.mxu0 0.0
        %3561 = vmatpush1.msra.mxu0 0.0
        %3562 = vmatprep.subr.mxu0 0.0
        %3563 = vmatpush1.msra.mxu0 0.0
        %3564 = vmatprep.subr.mxu0 0.0
        %3565 = vmatpush1.msra.mxu0 0.0
        %3566 = vmatprep.subr.mxu0 0.0
        %3567 = vmatpush1.msra.mxu0 0.0
        %3568 = vmatprep.subr.mxu0 0.0
        %3569 = vmatpush1.msra.mxu0 0.0
        %3570 = vmatprep.subr.mxu0 0.0
        %3571 = vmatpush1.msra.mxu0 0.0
        %3572 = vmatprep.subr.mxu0 0.0
        %3573 = vmatpush1.msra.mxu0 0.0
        %3574 = vmatprep.subr.mxu0 0.0
        %3575 = vmatpush1.msra.mxu0 %v619
        %3576 = vmatprep.subr.mxu0 0.0
        %3577 = vmatpush1.msra.mxu0 %v618
        %3578 = vmatprep.subr.mxu0 0.0
        %3579 = vmatpush1.msra.mxu0 %v617
        %3580 = vmatprep.subr.mxu0 0.0
        %3581 = vmatpush1.msra.mxu0 %v616
        %3582 = vmatprep.subr.mxu0 0.0
        %3583 = vmatpush2.msra.mxu0 0.0
        %3584 = vmatprep.subr.mxu0 0.0
        %3585 = vmatpush2.msra.mxu0 0.0
        %3586 = vmatprep.subr.mxu0 0.0
        %3587 = vmatpush2.msra.mxu0 0.0
        %3588 = vmatprep.subr.mxu0 0.0
        %3589 = vmatpush2.msra.mxu0 0.0
        %3590 = vmatprep.subr.mxu0 0.0
        %3591 = vmatpush2.msra.mxu0 0.0
        %3592 = vmatprep.subr.mxu0 0.0
        %3593 = vmatpush2.msra.mxu0 0.0
        %3594 = vmatprep.subr.mxu0 0.0
        %3595 = vmatpush2.msra.mxu0 0.0
        %3596 = vmatprep.subr.mxu0 0.0
        %3597 = vmatpush2.msra.mxu0 0.0
        %3598 = vmatprep.subr.mxu0 0.0
        %3599 = vmatpush2.msra.mxu0 0.0
        %3600 = vmatprep.subr.mxu0 0.0
        %3601 = vmatpush2.msra.mxu0 0.0
        %3602 = vmatprep.subr.mxu0 0.0
        %3603 = vmatpush2.msra.mxu0 0.0
        %3604 = vmatprep.subr.mxu0 0.0
        %3605 = vmatpush2.msra.mxu0 0.0
        %3606 = vmatprep.subr.mxu0 0.0
        %3607 = vmatpush2.msra.mxu0 0.0
        %3608 = vmatprep.subr.mxu0 0.0
        %3609 = vmatpush2.msra.mxu0 0.0
        %3610 = vmatprep.subr.mxu0 0.0
        %3611 = vmatpush2.msra.mxu0 0.0
        %3612 = vmatprep.subr.mxu0 0.0
        %3613 = vmatpush2.msra.mxu0 0.0
        %3614 = vmatprep.mubr.f32.mxu0 0.0
        %3615 = vmatmul.mubr.f32.gmra.mxu0 %v3548
        %v3616 = vpop.f32.mrf.mxu0
        %v3617 = vadd.f32 %v2002, %v3616
        %v3618 = vpop.f32.mrf.mxu0
        %3619 = vdwg.mxu0
        %v3620 = vsel %vm2077, %v3617, 0.0
        %3621 = vadd.xlane.f32.xlu0 %v3620
        %v3622 = vpop.xlane.xlu0 %3621
        %v3623 = vmul.f32 %v3622, %v2081
        %v3624 = vsub.f32 %v3617, %v3623
        %v3625 = vmul.f32 %v3624, %v3624
        %v3626 = vsel %vm2077, %v3625, 0.0
        %3627 = vadd.xlane.f32.xlu0 %v3626
        %v3628 = vpop.xlane.xlu0 %3627
        %v3629 = vmul.f32 %v3628, %v2081
        %v3630 = vadd.f32 %v3629, 1e-05
        %v3631 = vrsqrt.pop %v3630
        %v3632 = vmul.f32 %v3624, %v3631
        %v3633 = vmul.f32 %v3632, %v2096
        %v3634 = vadd.f32 %v3633, %v2103
        %v3636 = vsel %vm647, %v3634, 0
        %3638 = vmatprep.subr.mxu0 0.0
        %3639 = vmatpush1.msra.mxu0 0.0
        %3640 = vmatprep.subr.mxu0 0.0
        %3641 = vmatpush1.msra.mxu0 0.0
        %3642 = vmatprep.subr.mxu0 0.0
        %3643 = vmatpush1.msra.mxu0 0.0
        %3644 = vmatprep.subr.mxu0 0.0
        %3645 = vmatpush1.msra.mxu0 0.0
        %3646 = vmatprep.subr.mxu0 0.0
        %3647 = vmatpush1.msra.mxu0 0.0
        %3648 = vmatprep.subr.mxu0 0.0
        %3649 = vmatpush1.msra.mxu0 0.0
        %3650 = vmatprep.subr.mxu0 0.0
        %3651 = vmatpush1.msra.mxu0 0.0
        %3652 = vmatprep.subr.mxu0 0.0
        %3653 = vmatpush1.msra.mxu0 0.0
        %3654 = vmatprep.subr.mxu0 0.0
        %3655 = vmatpush1.msra.mxu0 0.0
        %3656 = vmatprep.subr.mxu0 0.0
        %3657 = vmatpush1.msra.mxu0 0.0
        %3658 = vmatprep.subr.mxu0 0.0
        %3659 = vmatpush1.msra.mxu0 0.0
        %3660 = vmatprep.subr.mxu0 0.0
        %3661 = vmatpush1.msra.mxu0 0.0
        %3662 = vmatprep.subr.mxu0 0.0
        %3663 = vmatpush1.msra.mxu0 %v626
        %3664 = vmatprep.subr.mxu0 0.0
        %3665 = vmatpush1.msra.mxu0 %v625
        %3666 = vmatprep.subr.mxu0 0.0
        %3667 = vmatpush1.msra.mxu0 %v624
        %3668 = vmatprep.subr.mxu0 0.0
        %3669 = vmatpush1.msra.mxu0 %v623
        %3670 = vmatprep.subr.mxu0 0.0
        %3671 = vmatpush2.msra.mxu0 0.0
        %3672 = vmatprep.subr.mxu0 0.0
        %3673 = vmatpush2.msra.mxu0 0.0
        %3674 = vmatprep.subr.mxu0 0.0
        %3675 = vmatpush2.msra.mxu0 0.0
        %3676 = vmatprep.subr.mxu0 0.0
        %3677 = vmatpush2.msra.mxu0 0.0
        %3678 = vmatprep.subr.mxu0 0.0
        %3679 = vmatpush2.msra.mxu0 0.0
        %3680 = vmatprep.subr.mxu0 0.0
        %3681 = vmatpush2.msra.mxu0 0.0
        %3682 = vmatprep.subr.mxu0 0.0
        %3683 = vmatpush2.msra.mxu0 0.0
        %3684 = vmatprep.subr.mxu0 0.0
        %3685 = vmatpush2.msra.mxu0 0.0
        %3686 = vmatprep.subr.mxu0 0.0
        %3687 = vmatpush2.msra.mxu0 0.0
        %3688 = vmatprep.subr.mxu0 0.0
        %3689 = vmatpush2.msra.mxu0 0.0
        %3690 = vmatprep.subr.mxu0 0.0
        %3691 = vmatpush2.msra.mxu0 0.0
        %3692 = vmatprep.subr.mxu0 0.0
        %3693 = vmatpush2.msra.mxu0 0.0
        %3694 = vmatprep.subr.mxu0 0.0
        %3695 = vmatpush2.msra.mxu0 0.0
        %3696 = vmatprep.subr.mxu0 0.0
        %3697 = vmatpush2.msra.mxu0 0.0
        %3698 = vmatprep.subr.mxu0 0.0
        %3699 = vmatpush2.msra.mxu0 0.0
        %3700 = vmatprep.subr.mxu0 0.0
        %3701 = vmatpush2.msra.mxu0 0.0
        %3702 = vmatprep.mubr.f32.mxu0 0.0
        %3703 = vmatmul.mubr.f32.gmra.mxu0 %v3636
        %v3704 = vpop.f32.mrf.mxu0
        %v3705 = vadd.f32 %v2110, %v3704
        %v3706 = vpop.f32.mrf.mxu0
        %3707 = vdwg.mxu0
        %v3708 = vmax.f32 %v3705, 0.0
        %v3710 = vsel %vm2192, %v3708, 0
        %3712 = vmatprep.subr.mxu0 0.0
        %3713 = vmatpush1.msra.mxu0 0.0
        %3714 = vmatprep.subr.mxu0 0.0
        %3715 = vmatpush1.msra.mxu0 0.0
        %3716 = vmatprep.subr.mxu0 0.0
        %3717 = vmatpush1.msra.mxu0 0.0
        %3718 = vmatprep.subr.mxu0 0.0
        %3719 = vmatpush1.msra.mxu0 0.0
        %3720 = vmatprep.subr.mxu0 0.0
        %3721 = vmatpush1.msra.mxu0 0.0
        %3722 = vmatprep.subr.mxu0 0.0
        %3723 = vmatpush1.msra.mxu0 0.0
        %3724 = vmatprep.subr.mxu0 0.0
        %3725 = vmatpush1.msra.mxu0 0.0
        %3726 = vmatprep.subr.mxu0 0.0
        %3727 = vmatpush1.msra.mxu0 0.0
        %3728 = vmatprep.subr.mxu0 0.0
        %3729 = vmatpush1.msra.mxu0 %v635
        %3730 = vmatprep.subr.mxu0 0.0
        %3731 = vmatpush1.msra.mxu0 %v634
        %3732 = vmatprep.subr.mxu0 0.0
        %3733 = vmatpush1.msra.mxu0 %v633
        %3734 = vmatprep.subr.mxu0 0.0
        %3735 = vmatpush1.msra.mxu0 %v632
        %3736 = vmatprep.subr.mxu0 0.0
        %3737 = vmatpush1.msra.mxu0 %v631
        %3738 = vmatprep.subr.mxu0 0.0
        %3739 = vmatpush1.msra.mxu0 %v630
        %3740 = vmatprep.subr.mxu0 0.0
        %3741 = vmatpush1.msra.mxu0 %v629
        %3742 = vmatprep.subr.mxu0 0.0
        %3743 = vmatpush1.msra.mxu0 %v628
        %3744 = vmatprep.subr.mxu0 0.0
        %3745 = vmatpush2.msra.mxu0 0.0
        %3746 = vmatprep.subr.mxu0 0.0
        %3747 = vmatpush2.msra.mxu0 0.0
        %3748 = vmatprep.subr.mxu0 0.0
        %3749 = vmatpush2.msra.mxu0 0.0
        %3750 = vmatprep.subr.mxu0 0.0
        %3751 = vmatpush2.msra.mxu0 0.0
        %3752 = vmatprep.subr.mxu0 0.0
        %3753 = vmatpush2.msra.mxu0 0.0
        %3754 = vmatprep.subr.mxu0 0.0
        %3755 = vmatpush2.msra.mxu0 0.0
        %3756 = vmatprep.subr.mxu0 0.0
        %3757 = vmatpush2.msra.mxu0 0.0
        %3758 = vmatprep.subr.mxu0 0.0
        %3759 = vmatpush2.msra.mxu0 0.0
        %3760 = vmatprep.subr.mxu0 0.0
        %3761 = vmatpush2.msra.mxu0 0.0
        %3762 = vmatprep.subr.mxu0 0.0
        %3763 = vmatpush2.msra.mxu0 0.0
        %3764 = vmatprep.subr.mxu0 0.0
        %3765 = vmatpush2.msra.mxu0 0.0
        %3766 = vmatprep.subr.mxu0 0.0
        %3767 = vmatpush2.msra.mxu0 0.0
        %3768 = vmatprep.subr.mxu0 0.0
        %3769 = vmatpush2.msra.mxu0 0.0
        %3770 = vmatprep.subr.mxu0 0.0
        %3771 = vmatpush2.msra.mxu0 0.0
        %3772 = vmatprep.subr.mxu0 0.0
        %3773 = vmatpush2.msra.mxu0 0.0
        %3774 = vmatprep.subr.mxu0 0.0
        %3775 = vmatpush2.msra.mxu0 0.0
        %3776 = vmatprep.mubr.f32.mxu0 0.0
        %3777 = vmatmul.mubr.f32.gmra.mxu0 %v3710
        %v3778 = vpop.f32.mrf.mxu0
        %v3779 = vadd.f32 %v2190, %v3778
        %v3780 = vpop.f32.mrf.mxu0
        %3781 = vdwg.mxu0
        %v3782 = vadd.f32 %v3779, %v3634
        %v3783 = vsel %vm2077, %v3782, 0.0
        %3784 = vadd.xlane.f32.xlu0 %v3783
        %v3785 = vpop.xlane.xlu0 %3784
        %v3786 = vmul.f32 %v3785, %v2081
        %v3787 = vsub.f32 %v3782, %v3786
        %v3788 = vmul.f32 %v3787, %v3787
        %v3789 = vsel %vm2077, %v3788, 0.0
        %3790 = vadd.xlane.f32.xlu0 %v3789
        %v3791 = vpop.xlane.xlu0 %3790
        %v3792 = vmul.f32 %v3791, %v2081
        %v3793 = vadd.f32 %v3792, 1e-05
        %v3794 = vrsqrt.pop %v3793
        %v3795 = vmul.f32 %v3787, %v3794
        %v3796 = vmul.f32 %v3795, %v2284
        %v3797 = vadd.f32 %v3796, %v2291
        %3798 = vst.msk [vmem:[%s602] sm:$0x1f] %vm2077, %v3797
        %p3799 = scmp.lt.s32.totalorder %s30, 1
        %s3800 = scalar_select %p3799, %s30, 1
        %s3801 = smul.addr %s3800, 8
        %s3802 = scalar_lea.vmem %s17, %s3801
        // Predicated region
        $region101: #{tpu_custom_call.1} parent=87 // pred_check
          %p3803 = pneg %p415
        $region102: #{tpu_custom_call.1} parent=87 // pred_check_branch
          %3805 = sbr.rel (%p3803) target = $region104
        $region103: #{tpu_custom_call.1} parent=87 // pred_region
          _
        $region104: #{tpu_custom_call.1} parent=87 // pred_fallthru
          _
      $region88: #{tpu_custom_call.1} parent=5 // pred_fallthru
        _
      %p3806 = scmp.le.s32.totalorder 2, %s25
      // Predicated region
      $region105: #{tpu_custom_call.1} parent=5 // pred_check
        %p3807 = pneg %p3806
      $region106: #{tpu_custom_call.1} parent=5 // pred_check_branch
        %3809 = sbr.rel (%p3807) target = $region108
      $region107: #{tpu_custom_call.1} parent=5 // pred_region
        %s3810 = ssub.s32 %s25, 2
        // Predicated region
        $region109: #{tpu_custom_call.1} parent=107 // pred_check
          %p3811 = pneg %p421
        $region110: #{tpu_custom_call.1} parent=107 // pred_check_branch
          %3813 = sbr.rel (%p3811) target = $region112
        $region111: #{tpu_custom_call.1} parent=107 // pred_region
          %p3814 = scmp.lt.s32.totalorder %s31, 1
          %s3815 = scalar_select %p3814, %s31, 1
          %s3816 = smul.addr %s3815, 8
          %s3817 = scalar_lea.vmem %s17, %s3816
        $region112: #{tpu_custom_call.1} parent=107 // pred_fallthru
          _
      $region108: #{tpu_custom_call.1} parent=5 // pred_fallthru
        _
    $region6: #{tpu_custom_call.1} parent=1 // loop_footer
      %s29 = sadd.s32 1, %s25
    $region7: #{tpu_custom_call.1} parent=1 // loop_footer_branch
      %24 = sbr.rel target = $region3
    $region8: #{tpu_custom_call.1} parent=1 // loop_exit
      _
    %3818 = vsyncpa [#allocation3], 1
    %s3819 = scalar_lea.sflag [#allocation3], 1
    %3820 = vsyncpa %s3819, 1
    %3821 = vsyncpa [#allocation5], 1

</llo_original>
